<compile_context>
chip_gen: v5e
topology: v5e:2x2
jax: 0.10.0
libtpu: 0.0.40
codegen_flags: <defaults>
</compile_context>

<pallas_src>
import functools

import jax
import jax.numpy as jnp
from jax import lax
from jax.experimental import pallas as pl
from jax.experimental.pallas import tpu as pltpu


def _res_se_kernel(x_ref, w1_ref, b1_ref, w2_ref, b2_ref,
                   wsc_ref, bsc_ref,
                   wse1_ref, bse1_ref, wse2_ref, bse2_ref,
                   o_ref, xpad_ref, hpad_ref):
    TB, C_in, L = x_ref.shape
    C_out, L_out = o_ref.shape[1], o_ref.shape[2]

    # Zero the (C, L+2) padded scratch slabs once per grid step; only the two
    # boundary columns must stay zero (they implement the conv zero-padding).
    xpad_ref[...] = jnp.zeros_like(xpad_ref)
    hpad_ref[...] = jnp.zeros_like(hpad_ref)

    # MaxPool1d(2) as two column-selection matmuls (the MXU is otherwise idle;
    # avoids strided lane slicing).  Built once per grid step from 2-D iota.
    row = lax.broadcasted_iota(jnp.int32, (L, L_out), 0)
    col = lax.broadcasted_iota(jnp.int32, (L, L_out), 1)
    sel_even = jnp.where(row == 2 * col, 1.0, 0.0)        # (L, L_out) f32
    sel_odd = jnp.where(row == 2 * col + 1, 1.0, 0.0)     # (L, L_out) f32

    # Small weights: load once, reuse for every batch row in the block.
    w1 = w1_ref[...]      # (3, C_out, C_in)   conv1 taps, BN1 folded
    b1 = b1_ref[...]      # (C_out, 1)
    w2 = w2_ref[...]      # (3, C_out, C_out)  conv2 taps, BN2 folded
    b2 = b2_ref[...]      # (C_out, 1)
    wsc = wsc_ref[...]    # (C_out, C_in)      1x1 shortcut, BN_sc folded
    bsc = bsc_ref[...]    # (C_out, 1)
    wse1 = wse1_ref[...]  # (C_out, H) == fc1.weight.T
    bse1 = bse1_ref[...]  # (1, H)
    wse2 = wse2_ref[...]  # (C_out, H) == fc2.weight
    bse2 = bse2_ref[...]  # (C_out, 1)

    for b in range(TB):                        # static unroll, TB is small
        xb = x_ref[b].astype(jnp.float32)      # (C_in, L), f32 compute

        # ---- shortcut path: 1x1 conv + folded BN (no ReLU) ------------------
        res = jnp.dot(wsc, xb, preferred_element_type=jnp.float32) + bsc

        # ---- conv1 (k=3, pad=1) + BN1 + ReLU: 3 shifted matmuls -------------
        xpad_ref[:, 1:L + 1] = xb
        acc = jnp.dot(w1[1], xb, preferred_element_type=jnp.float32)
        acc = acc + jnp.dot(w1[0], xpad_ref[:, 0:L],
                            preferred_element_type=jnp.float32)
        acc = acc + jnp.dot(w1[2], xpad_ref[:, 2:L + 2],
                            preferred_element_type=jnp.float32)
        h1 = jnp.maximum(acc + b1, 0.0)        # (C_out, L)

        # ---- conv2 (k=3, pad=1) + BN2 + ReLU --------------------------------
        hpad_ref[:, 1:L + 1] = h1
        acc2 = jnp.dot(w2[1], h1, preferred_element_type=jnp.float32)
        acc2 = acc2 + jnp.dot(w2[0], hpad_ref[:, 0:L],
                              preferred_element_type=jnp.float32)
        acc2 = acc2 + jnp.dot(w2[2], hpad_ref[:, 2:L + 2],
                              preferred_element_type=jnp.float32)
        h2 = jnp.maximum(acc2 + b2, 0.0)       # (C_out, L)

        # ---- SE gate: squeeze over L, tiny 2-layer MLP, sigmoid -------------
        y = jnp.mean(h2, axis=1, keepdims=True)                     # (C_out, 1)
        z = jnp.sum(wse1 * y, axis=0, keepdims=True) + bse1         # (1, H)
        z = jnp.maximum(z, 0.0)
        g = jnp.sum(wse2 * z, axis=1, keepdims=True) + bse2         # (C_out, 1)
        gate = jax.nn.sigmoid(g)

        # ---- scale + FUSED residual add + ReLU ------------------------------
        pre = jnp.maximum(h2 * gate + res, 0.0)                     # (C_out, L)

        # ---- MaxPool1d(2): even/odd column select via MXU, take max ---------
        p_even = jnp.dot(pre, sel_even, preferred_element_type=jnp.float32)
        p_odd = jnp.dot(pre, sel_odd, preferred_element_type=jnp.float32)
        o_ref[b] = jnp.maximum(p_even, p_odd).astype(o_ref.dtype)
        # TODO(synk): nn.Dropout is identity here (eval mode); training-mode
        # dropout would need pltpu.prng_* masking.


def _fold_bn(w, b, gamma, beta, mean, var, eps=1e-5):
    """Fold eval-mode BatchNorm1d into the preceding conv's weight/bias."""
    scale = gamma / jnp.sqrt(var + eps)                  # (C_out,)
    w_f = w * scale[:, None, None]
    b_f = (b - mean) * scale + beta
    return w_f, b_f


def prepare_params(p, eps=1e-5):
    """Rearrange PyTorch-layout parameters for the fused kernel."""
    out_ch = p["conv1_w"].shape[0]

    w1, b1 = _fold_bn(p["conv1_w"], p["conv1_b"], *p["bn1"], eps=eps)
    w2, b2 = _fold_bn(p["conv2_w"], p["conv2_b"], *p["bn2"], eps=eps)

    if p.get("sc_w") is not None:                        # in_ch != out_ch
        wsc3, bsc = _fold_bn(p["sc_w"], p["sc_b"], *p["bn_sc"], eps=eps)
        wsc = wsc3[:, :, 0]
    else:                                                # identity shortcut
        wsc = jnp.eye(out_ch, dtype=jnp.float32)
        bsc = jnp.zeros((out_ch,), jnp.float32)

    return dict(
        w1=jnp.transpose(w1, (2, 0, 1)),                 # (3, C_out, C_in)
        b1=b1.reshape(out_ch, 1),
        w2=jnp.transpose(w2, (2, 0, 1)),                 # (3, C_out, C_out)
        b2=b2.reshape(out_ch, 1),
        wsc=wsc,                                         # (C_out, C_in)
        bsc=bsc.reshape(out_ch, 1),
        wse1=p["fc1_w"].T,                               # (C_out, H)
        bse1=p["fc1_b"].reshape(1, -1),                  # (1, H)
        wse2=p["fc2_w"],                                 # (C_out, H)
        bse2=p["fc2_b"].reshape(out_ch, 1),              # (C_out, 1)
    )


@functools.partial(jax.jit, static_argnames=("tb",))
def residual_se_block(x, kp, *, tb=2):
    B, C_in, L = x.shape
    C_out = kp["w1"].shape[1]
    H = kp["wse1"].shape[1]
    assert B % tb == 0, "batch must be divisible by the batch tile"
    assert L % 2 == 0, "MaxPool1d(2) needs even L"
    L_out = L // 2

    flops_per_b = (2 * C_out * C_in * L            # shortcut 1x1 conv
                   + 3 * 2 * C_out * C_in * L      # conv1
                   + 3 * 2 * C_out * C_out * L     # conv2
                   + 2 * 2 * C_out * L * L_out     # maxpool select matmuls
                   + 4 * C_out * H)                # SE MLP
    cost = pl.CostEstimate(
        flops=B * flops_per_b,
        transcendentals=B * C_out,                 # sigmoid
        bytes_accessed=4 * (B * C_in * L + B * C_out * L_out)
        + sum(v.size * 4 for v in kp.values()),
    )

    const2 = lambda i: (0, 0)
    const3 = lambda i: (0, 0, 0)
    grid_spec = pltpu.PrefetchScalarGridSpec(
        num_scalar_prefetch=0,
        grid=(B // tb,),
        in_specs=[
            pl.BlockSpec((tb, C_in, L), lambda i: (i, 0, 0)),    # x
            pl.BlockSpec((3, C_out, C_in), const3),              # w1
            pl.BlockSpec((C_out, 1), const2),                    # b1
            pl.BlockSpec((3, C_out, C_out), const3),             # w2
            pl.BlockSpec((C_out, 1), const2),                    # b2
            pl.BlockSpec((C_out, C_in), const2),                 # wsc
            pl.BlockSpec((C_out, 1), const2),                    # bsc
            pl.BlockSpec((C_out, H), const2),                    # wse1
            pl.BlockSpec((1, H), const2),                        # bse1
            pl.BlockSpec((C_out, H), const2),                    # wse2
            pl.BlockSpec((C_out, 1), const2),                    # bse2
        ],
        out_specs=pl.BlockSpec((tb, C_out, L_out), lambda i: (i, 0, 0)),
        scratch_shapes=[
            pltpu.VMEM((C_in, L + 2), jnp.float32),   # zero-padded x row
            pltpu.VMEM((C_out, L + 2), jnp.float32),  # zero-padded conv1 out
        ],
    )
    return pl.pallas_call(
        _res_se_kernel,
        out_shape=jax.ShapeDtypeStruct((B, C_out, L_out), x.dtype),
        grid_spec=grid_spec,
        compiler_params=pltpu.CompilerParams(
            dimension_semantics=("parallel",),
        ),
        cost_estimate=cost,
    )(x, kp["w1"], kp["b1"], kp["w2"], kp["b2"], kp["wsc"], kp["bsc"],
      kp["wse1"], kp["bse1"], kp["wse2"], kp["bse2"])


def residual_se_block_ref(x, p, eps=1e-5):
    """Pure-JAX eval-mode reference of ResidualSEBlock.forward (dropout = id)."""
    def conv1d(h, w, b):
        k = w.shape[-1]
        pad = k // 2
        hp = jnp.pad(h, ((0, 0), (0, 0), (pad, pad)))
        L = h.shape[-1]
        out = sum(jnp.einsum("oi,bil->bol", w[:, :, t], hp[:, :, t:t + L])
                  for t in range(k))
        return out + b[None, :, None]

    def bn(h, gamma, beta, mean, var):
        inv = gamma / jnp.sqrt(var + eps)
        return (h - mean[None, :, None]) * inv[None, :, None] + beta[None, :, None]

    if p.get("sc_w") is not None:
        res = bn(conv1d(x, p["sc_w"], p["sc_b"]), *p["bn_sc"])
    else:
        res = x
    h = jax.nn.relu(bn(conv1d(x, p["conv1_w"], p["conv1_b"]), *p["bn1"]))
    h = jax.nn.relu(bn(conv1d(h, p["conv2_w"], p["conv2_b"]), *p["bn2"]))
    # SE
    y = jnp.mean(h, axis=-1)                                    # (B, C)
    z = jax.nn.relu(y @ p["fc1_w"].T + p["fc1_b"])
    s = jax.nn.sigmoid(z @ p["fc2_w"].T + p["fc2_b"])
    h = h * s[:, :, None]
    h = jax.nn.relu(h + res)
    B, C, L = h.shape
    h = jnp.max(h.reshape(B, C, L // 2, 2), axis=-1)            # MaxPool1d(2)
    return h                                                    # dropout: identity


if __name__ == "__main__":
    B, in_ch, out_ch, L = 4, 16, 32, 256
    reduction = 8
    H = out_ch // reduction
    K = 3

    key = jax.random.PRNGKey(0)
    keys = jax.random.split(key, 14)

    def uni(k, shape, fan_in):
        bound = 1.0 / (fan_in ** 0.5)
        return jax.random.uniform(k, shape, jnp.float32, -bound, bound)

    def bn_params(k):
        k1, k2, k3, k4 = jax.random.split(k, 4)
        gamma = jax.random.uniform(k1, (out_ch,), jnp.float32, 0.5, 1.5)
        beta = 0.1 * jax.random.normal(k2, (out_ch,), jnp.float32)
        mean = 0.1 * jax.random.normal(k3, (out_ch,), jnp.float32)
        var = jax.random.uniform(k4, (out_ch,), jnp.float32, 0.5, 1.5)
        return (gamma, beta, mean, var)

    x = jax.random.normal(keys[0], (B, in_ch, L), jnp.float32)
    params = dict(
        conv1_w=uni(keys[1], (out_ch, in_ch, K), in_ch * K),
        conv1_b=uni(keys[2], (out_ch,), in_ch * K),
        bn1=bn_params(keys[3]),
        conv2_w=uni(keys[4], (out_ch, out_ch, K), out_ch * K),
        conv2_b=uni(keys[5], (out_ch,), out_ch * K),
        bn2=bn_params(keys[6]),
        sc_w=uni(keys[7], (out_ch, in_ch, 1), in_ch),
        sc_b=uni(keys[8], (out_ch,), in_ch),
        bn_sc=bn_params(keys[9]),
        fc1_w=uni(keys[10], (H, out_ch), out_ch),
        fc1_b=uni(keys[11], (H,), out_ch),
        fc2_w=uni(keys[12], (out_ch, H), H),
        fc2_b=uni(keys[13], (out_ch,), H),
    )

    kp = prepare_params(params)
    out = residual_se_block(x, kp, tb=2)
    out = jax.block_until_ready(out)

    ref = residual_se_block_ref(x, params)
    assert out.shape == (B, out_ch, L // 2)
    max_err = float(jnp.max(jnp.abs(out - ref)))
    assert jnp.allclose(out, ref, atol=2e-3, rtol=2e-3), f"max_err={max_err}"
    print("KERNEL_OK")
</pallas_src>

<mosaic_0001>
module attributes {stable_mosaic.version = 11 : i64} {
  func.func @_res_se_kernel(%arg0: i32, %arg1: memref<2x16x256xf32, #tpu.memory_space<vmem>>, %arg2: memref<3x32x16xf32, #tpu.memory_space<vmem>>, %arg3: memref<32x1xf32, #tpu.memory_space<vmem>>, %arg4: memref<3x32x32xf32, #tpu.memory_space<vmem>>, %arg5: memref<32x1xf32, #tpu.memory_space<vmem>>, %arg6: memref<32x16xf32, #tpu.memory_space<vmem>>, %arg7: memref<32x1xf32, #tpu.memory_space<vmem>>, %arg8: memref<32x4xf32, #tpu.memory_space<vmem>>, %arg9: memref<1x4xf32, #tpu.memory_space<vmem>>, %arg10: memref<32x4xf32, #tpu.memory_space<vmem>>, %arg11: memref<32x1xf32, #tpu.memory_space<vmem>>, %arg12: memref<2x32x128xf32, #tpu.memory_space<vmem>>, %arg13: memref<16x258xf32, #tpu.memory_space<vmem>>, %arg14: memref<32x258xf32, #tpu.memory_space<vmem>>) attributes {dimension_semantics = [#tpu.dimension_semantics<parallel>], iteration_bounds = array<i64: 2>, scalar_prefetch = 0 : i64, scratch_operands = 2 : i64, tpu.core_type = #tpu.core_type<tc>, window_params = [{transform_indices = @transform_0, window_bounds = array<i64: 2, 16, 256>}, {pipeline_mode = #tpu.pipeline_mode<synchronous>, transform_indices = @transform_1, window_bounds = array<i64: 3, 32, 16>}, {pipeline_mode = #tpu.pipeline_mode<synchronous>, transform_indices = @transform_2, window_bounds = array<i64: 32, 1>}, {pipeline_mode = #tpu.pipeline_mode<synchronous>, transform_indices = @transform_3, window_bounds = array<i64: 3, 32, 32>}, {pipeline_mode = #tpu.pipeline_mode<synchronous>, transform_indices = @transform_4, window_bounds = array<i64: 32, 1>}, {pipeline_mode = #tpu.pipeline_mode<synchronous>, transform_indices = @transform_5, window_bounds = array<i64: 32, 16>}, {pipeline_mode = #tpu.pipeline_mode<synchronous>, transform_indices = @transform_6, window_bounds = array<i64: 32, 1>}, {pipeline_mode = #tpu.pipeline_mode<synchronous>, transform_indices = @transform_7, window_bounds = array<i64: 32, 4>}, {pipeline_mode = #tpu.pipeline_mode<synchronous>, transform_indices = @transform_8, window_bounds = array<i64: 1, 4>}, {pipeline_mode = #tpu.pipeline_mode<synchronous>, transform_indices = @transform_9, window_bounds = array<i64: 32, 4>}, {pipeline_mode = #tpu.pipeline_mode<synchronous>, transform_indices = @transform_10, window_bounds = array<i64: 32, 1>}, {transform_indices = @transform_11, window_bounds = array<i64: 2, 32, 128>}]} {
    %cst = arith.constant 0.000000e+00 : f32
    %0 = vector.broadcast %cst : f32 to vector<16x258xf32>
    %c0 = arith.constant 0 : index
    %c0_0 = arith.constant 0 : index
    %1 = vector.load %arg13[%c0, %c0_0] : memref<16x258xf32, #tpu.memory_space<vmem>>, vector<16x258xf32>
    tpu.vector_store %arg13[%c0, %c0_0], %0 {strides = array<i32>} : memref<16x258xf32, #tpu.memory_space<vmem>>, vector<16x258xf32>,
    %cst_1 = arith.constant 0.000000e+00 : f32
    %2 = vector.broadcast %cst_1 : f32 to vector<32x258xf32>
    %c0_2 = arith.constant 0 : index
    %c0_3 = arith.constant 0 : index
    %3 = vector.load %arg14[%c0_2, %c0_3] : memref<32x258xf32, #tpu.memory_space<vmem>>, vector<32x258xf32>
    tpu.vector_store %arg14[%c0_2, %c0_3], %2 {strides = array<i32>} : memref<32x258xf32, #tpu.memory_space<vmem>>, vector<32x258xf32>,
    %4 = tpu.iota {dimensions = array<i32: 0>} : vector<256x128xi32>
    %5 = tpu.iota {dimensions = array<i32: 1>} : vector<256x128xi32>
    %c2_i32 = arith.constant 2 : i32
    %6 = vector.broadcast %c2_i32 : i32 to vector<256x128xi32>
    %7 = arith.muli %6, %5 : vector<256x128xi32>
    %8 = arith.cmpi eq, %4, %7 : vector<256x128xi32>
    %cst_4 = arith.constant 1.000000e+00 : f32
    %cst_5 = arith.constant 0.000000e+00 : f32
    %9 = vector.broadcast %cst_4 : f32 to vector<256x128xf32>
    %10 = vector.broadcast %cst_5 : f32 to vector<256x128xf32>
    %11 = arith.select %8, %9, %10 : vector<256x128xi1>, vector<256x128xf32>
    %c2_i32_6 = arith.constant 2 : i32
    %12 = vector.broadcast %c2_i32_6 : i32 to vector<256x128xi32>
    %13 = arith.muli %12, %5 : vector<256x128xi32>
    %c1_i32 = arith.constant 1 : i32
    %14 = vector.broadcast %c1_i32 : i32 to vector<256x128xi32>
    %15 = arith.addi %13, %14 : vector<256x128xi32>
    %16 = arith.cmpi eq, %4, %15 : vector<256x128xi32>
    %cst_7 = arith.constant 1.000000e+00 : f32
    %cst_8 = arith.constant 0.000000e+00 : f32
    %17 = vector.broadcast %cst_7 : f32 to vector<256x128xf32>
    %18 = vector.broadcast %cst_8 : f32 to vector<256x128xf32>
    %19 = arith.select %16, %17, %18 : vector<256x128xi1>, vector<256x128xf32>
    %c0_9 = arith.constant 0 : index
    %c0_10 = arith.constant 0 : index
    %c0_11 = arith.constant 0 : index
    %20 = vector.load %arg2[%c0_9, %c0_10, %c0_11] : memref<3x32x16xf32, #tpu.memory_space<vmem>>, vector<3x32x16xf32>
    %c0_12 = arith.constant 0 : index
    %c0_13 = arith.constant 0 : index
    %21 = vector.load %arg3[%c0_12, %c0_13] : memref<32x1xf32, #tpu.memory_space<vmem>>, vector<32x1xf32>
    %c0_14 = arith.constant 0 : index
    %c0_15 = arith.constant 0 : index
    %c0_16 = arith.constant 0 : index
    %22 = vector.load %arg4[%c0_14, %c0_15, %c0_16] : memref<3x32x32xf32, #tpu.memory_space<vmem>>, vector<3x32x32xf32>
    %c0_17 = arith.constant 0 : index
    %c0_18 = arith.constant 0 : index
    %23 = vector.load %arg5[%c0_17, %c0_18] : memref<32x1xf32, #tpu.memory_space<vmem>>, vector<32x1xf32>
    %c0_19 = arith.constant 0 : index
    %c0_20 = arith.constant 0 : index
    %24 = vector.load %arg6[%c0_19, %c0_20] : memref<32x16xf32, #tpu.memory_space<vmem>>, vector<32x16xf32>
    %c0_21 = arith.constant 0 : index
    %c0_22 = arith.constant 0 : index
    %25 = vector.load %arg7[%c0_21, %c0_22] : memref<32x1xf32, #tpu.memory_space<vmem>>, vector<32x1xf32>
    %c0_23 = arith.constant 0 : index
    %c0_24 = arith.constant 0 : index
    %26 = vector.load %arg8[%c0_23, %c0_24] : memref<32x4xf32, #tpu.memory_space<vmem>>, vector<32x4xf32>
    %c0_25 = arith.constant 0 : index
    %c0_26 = arith.constant 0 : index
    %27 = vector.load %arg9[%c0_25, %c0_26] : memref<1x4xf32, #tpu.memory_space<vmem>>, vector<1x4xf32>
    %c0_27 = arith.constant 0 : index
    %c0_28 = arith.constant 0 : index
    %28 = vector.load %arg10[%c0_27, %c0_28] : memref<32x4xf32, #tpu.memory_space<vmem>>, vector<32x4xf32>
    %c0_29 = arith.constant 0 : index
    %c0_30 = arith.constant 0 : index
    %29 = vector.load %arg11[%c0_29, %c0_30] : memref<32x1xf32, #tpu.memory_space<vmem>>, vector<32x1xf32>
    %c0_31 = arith.constant 0 : index
    %c0_32 = arith.constant 0 : index
    %c0_33 = arith.constant 0 : index
    %30 = vector.load %arg1[%c0_31, %c0_32, %c0_33] : memref<2x16x256xf32, #tpu.memory_space<vmem>>, vector<1x16x256xf32>
    %31 = vector.shape_cast %30 : vector<1x16x256xf32> to vector<16x256xf32>
    %cst_34 = arith.constant dense<0.000000e+00> : vector<32x256xf32>
    %32 = tpu.matmul %24, %31, %cst_34 {dimension_numbers = #tpu.dot_dimension_numbers<[1], [0], [0], [1], [0, 0, 1, 1], [], []>} : vector<32x16xf32>, vector<16x256xf32>, vector<32x256xf32> -> vector<32x256xf32>
    %33 = vector.broadcast %25 : vector<32x1xf32> to vector<32x256xf32>
    %34 = arith.addf %32, %33 : vector<32x256xf32>
    %c0_35 = arith.constant 0 : index
    %c1 = arith.constant 1 : index
    %35 = vector.load %arg13[%c0_35, %c1] : memref<16x258xf32, #tpu.memory_space<vmem>>, vector<16x256xf32>
    tpu.vector_store %arg13[%c0_35, %c1], %31 {strides = array<i32>} : memref<16x258xf32, #tpu.memory_space<vmem>>, vector<16x256xf32>,
    %36 = vector.extract_strided_slice %20 {offsets = [1, 0, 0], sizes = [1, 32, 16], strides = [1, 1, 1]} : vector<3x32x16xf32> to vector<1x32x16xf32>
    %37 = vector.shape_cast %36 : vector<1x32x16xf32> to vector<32x16xf32>
    %cst_36 = arith.constant dense<0.000000e+00> : vector<32x256xf32>
    %38 = tpu.matmul %37, %31, %cst_36 {dimension_numbers = #tpu.dot_dimension_numbers<[1], [0], [0], [1], [0, 0, 1, 1], [], []>} : vector<32x16xf32>, vector<16x256xf32>, vector<32x256xf32> -> vector<32x256xf32>
    %39 = vector.extract_strided_slice %20 {offsets = [0, 0, 0], sizes = [1, 32, 16], strides = [1, 1, 1]} : vector<3x32x16xf32> to vector<1x32x16xf32>
    %40 = vector.shape_cast %39 : vector<1x32x16xf32> to vector<32x16xf32>
    %c0_37 = arith.constant 0 : index
    %c0_38 = arith.constant 0 : index
    %41 = vector.load %arg13[%c0_37, %c0_38] : memref<16x258xf32, #tpu.memory_space<vmem>>, vector<16x256xf32>
    %cst_39 = arith.constant dense<0.000000e+00> : vector<32x256xf32>
    %42 = tpu.matmul %40, %41, %cst_39 {dimension_numbers = #tpu.dot_dimension_numbers<[1], [0], [0], [1], [0, 0, 1, 1], [], []>} : vector<32x16xf32>, vector<16x256xf32>, vector<32x256xf32> -> vector<32x256xf32>
    %43 = arith.addf %38, %42 : vector<32x256xf32>
    %44 = vector.extract_strided_slice %20 {offsets = [2, 0, 0], sizes = [1, 32, 16], strides = [1, 1, 1]} : vector<3x32x16xf32> to vector<1x32x16xf32>
    %45 = vector.shape_cast %44 : vector<1x32x16xf32> to vector<32x16xf32>
    %c0_40 = arith.constant 0 : index
    %c2 = arith.constant 2 : index
    %46 = vector.load %arg13[%c0_40, %c2] : memref<16x258xf32, #tpu.memory_space<vmem>>, vector<16x256xf32>
    %cst_41 = arith.constant dense<0.000000e+00> : vector<32x256xf32>
    %47 = tpu.matmul %45, %46, %cst_41 {dimension_numbers = #tpu.dot_dimension_numbers<[1], [0], [0], [1], [0, 0, 1, 1], [], []>} : vector<32x16xf32>, vector<16x256xf32>, vector<32x256xf32> -> vector<32x256xf32>
    %48 = arith.addf %43, %47 : vector<32x256xf32>
    %49 = vector.broadcast %21 : vector<32x1xf32> to vector<32x256xf32>
    %50 = arith.addf %48, %49 : vector<32x256xf32>
    %cst_42 = arith.constant 0.000000e+00 : f32
    %51 = vector.broadcast %cst_42 : f32 to vector<32x256xf32>
    %52 = arith.maximumf %50, %51 : vector<32x256xf32>
    %c0_43 = arith.constant 0 : index
    %c1_44 = arith.constant 1 : index
    %53 = vector.load %arg14[%c0_43, %c1_44] : memref<32x258xf32, #tpu.memory_space<vmem>>, vector<32x256xf32>
    tpu.vector_store %arg14[%c0_43, %c1_44], %52 {strides = array<i32>} : memref<32x258xf32, #tpu.memory_space<vmem>>, vector<32x256xf32>,
    %54 = vector.extract_strided_slice %22 {offsets = [1, 0, 0], sizes = [1, 32, 32], strides = [1, 1, 1]} : vector<3x32x32xf32> to vector<1x32x32xf32>
    %55 = vector.shape_cast %54 : vector<1x32x32xf32> to vector<32x32xf32>
    %cst_45 = arith.constant dense<0.000000e+00> : vector<32x256xf32>
    %56 = tpu.matmul %55, %52, %cst_45 {dimension_numbers = #tpu.dot_dimension_numbers<[1], [0], [0], [1], [0, 0, 1, 1], [], []>} : vector<32x32xf32>, vector<32x256xf32>, vector<32x256xf32> -> vector<32x256xf32>
    %57 = vector.extract_strided_slice %22 {offsets = [0, 0, 0], sizes = [1, 32, 32], strides = [1, 1, 1]} : vector<3x32x32xf32> to vector<1x32x32xf32>
    %58 = vector.shape_cast %57 : vector<1x32x32xf32> to vector<32x32xf32>
    %c0_46 = arith.constant 0 : index
    %c0_47 = arith.constant 0 : index
    %59 = vector.load %arg14[%c0_46, %c0_47] : memref<32x258xf32, #tpu.memory_space<vmem>>, vector<32x256xf32>
    %cst_48 = arith.constant dense<0.000000e+00> : vector<32x256xf32>
    %60 = tpu.matmul %58, %59, %cst_48 {dimension_numbers = #tpu.dot_dimension_numbers<[1], [0], [0], [1], [0, 0, 1, 1], [], []>} : vector<32x32xf32>, vector<32x256xf32>, vector<32x256xf32> -> vector<32x256xf32>
    %61 = arith.addf %56, %60 : vector<32x256xf32>
    %62 = vector.extract_strided_slice %22 {offsets = [2, 0, 0], sizes = [1, 32, 32], strides = [1, 1, 1]} : vector<3x32x32xf32> to vector<1x32x32xf32>
    %63 = vector.shape_cast %62 : vector<1x32x32xf32> to vector<32x32xf32>
    %c0_49 = arith.constant 0 : index
    %c2_50 = arith.constant 2 : index
    %64 = vector.load %arg14[%c0_49, %c2_50] : memref<32x258xf32, #tpu.memory_space<vmem>>, vector<32x256xf32>
    %cst_51 = arith.constant dense<0.000000e+00> : vector<32x256xf32>
    %65 = tpu.matmul %63, %64, %cst_51 {dimension_numbers = #tpu.dot_dimension_numbers<[1], [0], [0], [1], [0, 0, 1, 1], [], []>} : vector<32x32xf32>, vector<32x256xf32>, vector<32x256xf32> -> vector<32x256xf32>
    %66 = arith.addf %61, %65 : vector<32x256xf32>
    %67 = vector.broadcast %23 : vector<32x1xf32> to vector<32x256xf32>
    %68 = arith.addf %66, %67 : vector<32x256xf32>
    %cst_52 = arith.constant 0.000000e+00 : f32
    %69 = vector.broadcast %cst_52 : f32 to vector<32x256xf32>
    %70 = arith.maximumf %68, %69 : vector<32x256xf32>
    %cst_53 = arith.constant dense<0.000000e+00> : vector<32xf32>
    %71 = vector.multi_reduction <add>, %70, %cst_53 [1] : vector<32x256xf32> to vector<32xf32>
    %72 = vector.shape_cast %71 : vector<32xf32> to vector<32x1xf32>
    %cst_54 = arith.constant 2.560000e+02 : f32
    %73 = vector.broadcast %cst_54 : f32 to vector<32x1xf32>
    %74 = arith.divf %72, %73 : vector<32x1xf32>
    %75 = vector.broadcast %74 : vector<32x1xf32> to vector<32x4xf32>
    %76 = arith.mulf %26, %75 : vector<32x4xf32>
    %cst_55 = arith.constant dense<0.000000e+00> : vector<4xf32>
    %77 = vector.multi_reduction <add>, %76, %cst_55 [0] : vector<32x4xf32> to vector<4xf32>
    %78 = vector.shape_cast %77 : vector<4xf32> to vector<1x4xf32>
    %79 = arith.addf %78, %27 : vector<1x4xf32>
    %cst_56 = arith.constant 0.000000e+00 : f32
    %80 = vector.broadcast %cst_56 : f32 to vector<1x4xf32>
    %81 = arith.maximumf %79, %80 : vector<1x4xf32>
    %82 = vector.broadcast %81 : vector<1x4xf32> to vector<32x4xf32>
    %83 = arith.mulf %28, %82 : vector<32x4xf32>
    %cst_57 = arith.constant dense<0.000000e+00> : vector<32xf32>
    %84 = vector.multi_reduction <add>, %83, %cst_57 [1] : vector<32x4xf32> to vector<32xf32>
    %85 = vector.shape_cast %84 : vector<32xf32> to vector<32x1xf32>
    %86 = arith.addf %85, %29 : vector<32x1xf32>
    %87 = arith.negf %86 : vector<32x1xf32>
    %88 = math.exp %87 : vector<32x1xf32>
    %cst_58 = arith.constant 1.000000e+00 : f32
    %89 = vector.broadcast %cst_58 : f32 to vector<32x1xf32>
    %90 = arith.addf %89, %88 : vector<32x1xf32>
    %91 = arith.divf %89, %90 : vector<32x1xf32>
    %92 = vector.broadcast %91 : vector<32x1xf32> to vector<32x256xf32>
    %93 = arith.mulf %70, %92 : vector<32x256xf32>
    %94 = arith.addf %93, %34 : vector<32x256xf32>
    %cst_59 = arith.constant 0.000000e+00 : f32
    %95 = vector.broadcast %cst_59 : f32 to vector<32x256xf32>
    %96 = arith.maximumf %94, %95 : vector<32x256xf32>
    %cst_60 = arith.constant dense<0.000000e+00> : vector<32x128xf32>
    %97 = tpu.matmul %96, %11, %cst_60 {dimension_numbers = #tpu.dot_dimension_numbers<[1], [0], [0], [1], [0, 0, 1, 1], [], []>} : vector<32x256xf32>, vector<256x128xf32>, vector<32x128xf32> -> vector<32x128xf32>
    %cst_61 = arith.constant dense<0.000000e+00> : vector<32x128xf32>
    %98 = tpu.matmul %96, %19, %cst_61 {dimension_numbers = #tpu.dot_dimension_numbers<[1], [0], [0], [1], [0, 0, 1, 1], [], []>} : vector<32x256xf32>, vector<256x128xf32>, vector<32x128xf32> -> vector<32x128xf32>
    %99 = arith.maximumf %97, %98 : vector<32x128xf32>
    %c0_62 = arith.constant 0 : index
    %c0_63 = arith.constant 0 : index
    %c0_64 = arith.constant 0 : index
    %100 = vector.load %arg12[%c0_62, %c0_63, %c0_64] : memref<2x32x128xf32, #tpu.memory_space<vmem>>, vector<1x32x128xf32>
    %101 = vector.shape_cast %100 : vector<1x32x128xf32> to vector<32x128xf32>
    %102 = vector.shape_cast %99 : vector<32x128xf32> to vector<1x32x128xf32>
    tpu.vector_store %arg12[%c0_62, %c0_63, %c0_64], %102 {strides = array<i32>} : memref<2x32x128xf32, #tpu.memory_space<vmem>>, vector<1x32x128xf32>,
    %c1_65 = arith.constant 1 : index
    %c0_66 = arith.constant 0 : index
    %c0_67 = arith.constant 0 : index
    %103 = vector.load %arg1[%c1_65, %c0_66, %c0_67] : memref<2x16x256xf32, #tpu.memory_space<vmem>>, vector<1x16x256xf32>
    %104 = vector.shape_cast %103 : vector<1x16x256xf32> to vector<16x256xf32>
    %cst_68 = arith.constant dense<0.000000e+00> : vector<32x256xf32>
    %105 = tpu.matmul %24, %104, %cst_68 {dimension_numbers = #tpu.dot_dimension_numbers<[1], [0], [0], [1], [0, 0, 1, 1], [], []>} : vector<32x16xf32>, vector<16x256xf32>, vector<32x256xf32> -> vector<32x256xf32>
    %106 = vector.broadcast %25 : vector<32x1xf32> to vector<32x256xf32>
    %107 = arith.addf %105, %106 : vector<32x256xf32>
    %c0_69 = arith.constant 0 : index
    %c1_70 = arith.constant 1 : index
    %108 = vector.load %arg13[%c0_69, %c1_70] : memref<16x258xf32, #tpu.memory_space<vmem>>, vector<16x256xf32>
    tpu.vector_store %arg13[%c0_69, %c1_70], %104 {strides = array<i32>} : memref<16x258xf32, #tpu.memory_space<vmem>>, vector<16x256xf32>,
    %109 = vector.extract_strided_slice %20 {offsets = [1, 0, 0], sizes = [1, 32, 16], strides = [1, 1, 1]} : vector<3x32x16xf32> to vector<1x32x16xf32>
    %110 = vector.shape_cast %109 : vector<1x32x16xf32> to vector<32x16xf32>
    %cst_71 = arith.constant dense<0.000000e+00> : vector<32x256xf32>
    %111 = tpu.matmul %110, %104, %cst_71 {dimension_numbers = #tpu.dot_dimension_numbers<[1], [0], [0], [1], [0, 0, 1, 1], [], []>} : vector<32x16xf32>, vector<16x256xf32>, vector<32x256xf32> -> vector<32x256xf32>
    %112 = vector.extract_strided_slice %20 {offsets = [0, 0, 0], sizes = [1, 32, 16], strides = [1, 1, 1]} : vector<3x32x16xf32> to vector<1x32x16xf32>
    %113 = vector.shape_cast %112 : vector<1x32x16xf32> to vector<32x16xf32>
    %c0_72 = arith.constant 0 : index
    %c0_73 = arith.constant 0 : index
    %114 = vector.load %arg13[%c0_72, %c0_73] : memref<16x258xf32, #tpu.memory_space<vmem>>, vector<16x256xf32>
    %cst_74 = arith.constant dense<0.000000e+00> : vector<32x256xf32>
    %115 = tpu.matmul %113, %114, %cst_74 {dimension_numbers = #tpu.dot_dimension_numbers<[1], [0], [0], [1], [0, 0, 1, 1], [], []>} : vector<32x16xf32>, vector<16x256xf32>, vector<32x256xf32> -> vector<32x256xf32>
    %116 = arith.addf %111, %115 : vector<32x256xf32>
    %117 = vector.extract_strided_slice %20 {offsets = [2, 0, 0], sizes = [1, 32, 16], strides = [1, 1, 1]} : vector<3x32x16xf32> to vector<1x32x16xf32>
    %118 = vector.shape_cast %117 : vector<1x32x16xf32> to vector<32x16xf32>
    %c0_75 = arith.constant 0 : index
    %c2_76 = arith.constant 2 : index
    %119 = vector.load %arg13[%c0_75, %c2_76] : memref<16x258xf32, #tpu.memory_space<vmem>>, vector<16x256xf32>
    %cst_77 = arith.constant dense<0.000000e+00> : vector<32x256xf32>
    %120 = tpu.matmul %118, %119, %cst_77 {dimension_numbers = #tpu.dot_dimension_numbers<[1], [0], [0], [1], [0, 0, 1, 1], [], []>} : vector<32x16xf32>, vector<16x256xf32>, vector<32x256xf32> -> vector<32x256xf32>
    %121 = arith.addf %116, %120 : vector<32x256xf32>
    %122 = vector.broadcast %21 : vector<32x1xf32> to vector<32x256xf32>
    %123 = arith.addf %121, %122 : vector<32x256xf32>
    %cst_78 = arith.constant 0.000000e+00 : f32
    %124 = vector.broadcast %cst_78 : f32 to vector<32x256xf32>
    %125 = arith.maximumf %123, %124 : vector<32x256xf32>
    %c0_79 = arith.constant 0 : index
    %c1_80 = arith.constant 1 : index
    %126 = vector.load %arg14[%c0_79, %c1_80] : memref<32x258xf32, #tpu.memory_space<vmem>>, vector<32x256xf32>
    tpu.vector_store %arg14[%c0_79, %c1_80], %125 {strides = array<i32>} : memref<32x258xf32, #tpu.memory_space<vmem>>, vector<32x256xf32>,
    %127 = vector.extract_strided_slice %22 {offsets = [1, 0, 0], sizes = [1, 32, 32], strides = [1, 1, 1]} : vector<3x32x32xf32> to vector<1x32x32xf32>
    %128 = vector.shape_cast %127 : vector<1x32x32xf32> to vector<32x32xf32>
    %cst_81 = arith.constant dense<0.000000e+00> : vector<32x256xf32>
    %129 = tpu.matmul %128, %125, %cst_81 {dimension_numbers = #tpu.dot_dimension_numbers<[1], [0], [0], [1], [0, 0, 1, 1], [], []>} : vector<32x32xf32>, vector<32x256xf32>, vector<32x256xf32> -> vector<32x256xf32>
    %130 = vector.extract_strided_slice %22 {offsets = [0, 0, 0], sizes = [1, 32, 32], strides = [1, 1, 1]} : vector<3x32x32xf32> to vector<1x32x32xf32>
    %131 = vector.shape_cast %130 : vector<1x32x32xf32> to vector<32x32xf32>
    %c0_82 = arith.constant 0 : index
    %c0_83 = arith.constant 0 : index
    %132 = vector.load %arg14[%c0_82, %c0_83] : memref<32x258xf32, #tpu.memory_space<vmem>>, vector<32x256xf32>
    %cst_84 = arith.constant dense<0.000000e+00> : vector<32x256xf32>
    %133 = tpu.matmul %131, %132, %cst_84 {dimension_numbers = #tpu.dot_dimension_numbers<[1], [0], [0], [1], [0, 0, 1, 1], [], []>} : vector<32x32xf32>, vector<32x256xf32>, vector<32x256xf32> -> vector<32x256xf32>
    %134 = arith.addf %129, %133 : vector<32x256xf32>
    %135 = vector.extract_strided_slice %22 {offsets = [2, 0, 0], sizes = [1, 32, 32], strides = [1, 1, 1]} : vector<3x32x32xf32> to vector<1x32x32xf32>
    %136 = vector.shape_cast %135 : vector<1x32x32xf32> to vector<32x32xf32>
    %c0_85 = arith.constant 0 : index
    %c2_86 = arith.constant 2 : index
    %137 = vector.load %arg14[%c0_85, %c2_86] : memref<32x258xf32, #tpu.memory_space<vmem>>, vector<32x256xf32>
    %cst_87 = arith.constant dense<0.000000e+00> : vector<32x256xf32>
    %138 = tpu.matmul %136, %137, %cst_87 {dimension_numbers = #tpu.dot_dimension_numbers<[1], [0], [0], [1], [0, 0, 1, 1], [], []>} : vector<32x32xf32>, vector<32x256xf32>, vector<32x256xf32> -> vector<32x256xf32>
    %139 = arith.addf %134, %138 : vector<32x256xf32>
    %140 = vector.broadcast %23 : vector<32x1xf32> to vector<32x256xf32>
    %141 = arith.addf %139, %140 : vector<32x256xf32>
    %cst_88 = arith.constant 0.000000e+00 : f32
    %142 = vector.broadcast %cst_88 : f32 to vector<32x256xf32>
    %143 = arith.maximumf %141, %142 : vector<32x256xf32>
    %cst_89 = arith.constant dense<0.000000e+00> : vector<32xf32>
    %144 = vector.multi_reduction <add>, %143, %cst_89 [1] : vector<32x256xf32> to vector<32xf32>
    %145 = vector.shape_cast %144 : vector<32xf32> to vector<32x1xf32>
    %cst_90 = arith.constant 2.560000e+02 : f32
    %146 = vector.broadcast %cst_90 : f32 to vector<32x1xf32>
    %147 = arith.divf %145, %146 : vector<32x1xf32>
    %148 = vector.broadcast %147 : vector<32x1xf32> to vector<32x4xf32>
    %149 = arith.mulf %26, %148 : vector<32x4xf32>
    %cst_91 = arith.constant dense<0.000000e+00> : vector<4xf32>
    %150 = vector.multi_reduction <add>, %149, %cst_91 [0] : vector<32x4xf32> to vector<4xf32>
    %151 = vector.shape_cast %150 : vector<4xf32> to vector<1x4xf32>
    %152 = arith.addf %151, %27 : vector<1x4xf32>
    %cst_92 = arith.constant 0.000000e+00 : f32
    %153 = vector.broadcast %cst_92 : f32 to vector<1x4xf32>
    %154 = arith.maximumf %152, %153 : vector<1x4xf32>
    %155 = vector.broadcast %154 : vector<1x4xf32> to vector<32x4xf32>
    %156 = arith.mulf %28, %155 : vector<32x4xf32>
    %cst_93 = arith.constant dense<0.000000e+00> : vector<32xf32>
    %157 = vector.multi_reduction <add>, %156, %cst_93 [1] : vector<32x4xf32> to vector<32xf32>
    %158 = vector.shape_cast %157 : vector<32xf32> to vector<32x1xf32>
    %159 = arith.addf %158, %29 : vector<32x1xf32>
    %160 = arith.negf %159 : vector<32x1xf32>
    %161 = math.exp %160 : vector<32x1xf32>
    %cst_94 = arith.constant 1.000000e+00 : f32
    %162 = vector.broadcast %cst_94 : f32 to vector<32x1xf32>
    %163 = arith.addf %162, %161 : vector<32x1xf32>
    %164 = arith.divf %162, %163 : vector<32x1xf32>
    %165 = vector.broadcast %164 : vector<32x1xf32> to vector<32x256xf32>
    %166 = arith.mulf %143, %165 : vector<32x256xf32>
    %167 = arith.addf %166, %107 : vector<32x256xf32>
    %cst_95 = arith.constant 0.000000e+00 : f32
    %168 = vector.broadcast %cst_95 : f32 to vector<32x256xf32>
    %169 = arith.maximumf %167, %168 : vector<32x256xf32>
    %cst_96 = arith.constant dense<0.000000e+00> : vector<32x128xf32>
    %170 = tpu.matmul %169, %11, %cst_96 {dimension_numbers = #tpu.dot_dimension_numbers<[1], [0], [0], [1], [0, 0, 1, 1], [], []>} : vector<32x256xf32>, vector<256x128xf32>, vector<32x128xf32> -> vector<32x128xf32>
    %cst_97 = arith.constant dense<0.000000e+00> : vector<32x128xf32>
    %171 = tpu.matmul %169, %19, %cst_97 {dimension_numbers = #tpu.dot_dimension_numbers<[1], [0], [0], [1], [0, 0, 1, 1], [], []>} : vector<32x256xf32>, vector<256x128xf32>, vector<32x128xf32> -> vector<32x128xf32>
    %172 = arith.maximumf %170, %171 : vector<32x128xf32>
    %c1_98 = arith.constant 1 : index
    %c0_99 = arith.constant 0 : index
    %c0_100 = arith.constant 0 : index
    %173 = vector.load %arg12[%c1_98, %c0_99, %c0_100] : memref<2x32x128xf32, #tpu.memory_space<vmem>>, vector<1x32x128xf32>
    %174 = vector.shape_cast %173 : vector<1x32x128xf32> to vector<32x128xf32>
    %175 = vector.shape_cast %172 : vector<32x128xf32> to vector<1x32x128xf32>
    tpu.vector_store %arg12[%c1_98, %c0_99, %c0_100], %175 {strides = array<i32>} : memref<2x32x128xf32, #tpu.memory_space<vmem>>, vector<1x32x128xf32>,
    return
  }
  func.func @transform_0(%arg0: i32) -> (i32, i32, i32) {
    %c0_i32 = arith.constant 0 : i32
    %c0_i32_0 = arith.constant 0 : i32
    %c0_i32_1 = arith.constant 0 : i32
    return %arg0, %c0_i32, %c0_i32_0 : i32, i32, i32
  }
  func.func @transform_1(%arg0: i32) -> (i32, i32, i32) {
    %c0_i32 = arith.constant 0 : i32
    %c0_i32_0 = arith.constant 0 : i32
    %c0_i32_1 = arith.constant 0 : i32
    %c0_i32_2 = arith.constant 0 : i32
    return %c0_i32, %c0_i32_0, %c0_i32_1 : i32, i32, i32
  }
  func.func @transform_2(%arg0: i32) -> (i32, i32) {
    %c0_i32 = arith.constant 0 : i32
    %c0_i32_0 = arith.constant 0 : i32
    %c0_i32_1 = arith.constant 0 : i32
    return %c0_i32, %c0_i32_0 : i32, i32
  }
  func.func @transform_3(%arg0: i32) -> (i32, i32, i32) {
    %c0_i32 = arith.constant 0 : i32
    %c0_i32_0 = arith.constant 0 : i32
    %c0_i32_1 = arith.constant 0 : i32
    %c0_i32_2 = arith.constant 0 : i32
    return %c0_i32, %c0_i32_0, %c0_i32_1 : i32, i32, i32
  }
  func.func @transform_4(%arg0: i32) -> (i32, i32) {
    %c0_i32 = arith.constant 0 : i32
    %c0_i32_0 = arith.constant 0 : i32
    %c0_i32_1 = arith.constant 0 : i32
    return %c0_i32, %c0_i32_0 : i32, i32
  }
  func.func @transform_5(%arg0: i32) -> (i32, i32) {
    %c0_i32 = arith.constant 0 : i32
    %c0_i32_0 = arith.constant 0 : i32
    %c0_i32_1 = arith.constant 0 : i32
    return %c0_i32, %c0_i32_0 : i32, i32
  }
  func.func @transform_6(%arg0: i32) -> (i32, i32) {
    %c0_i32 = arith.constant 0 : i32
    %c0_i32_0 = arith.constant 0 : i32
    %c0_i32_1 = arith.constant 0 : i32
    return %c0_i32, %c0_i32_0 : i32, i32
  }
  func.func @transform_7(%arg0: i32) -> (i32, i32) {
    %c0_i32 = arith.constant 0 : i32
    %c0_i32_0 = arith.constant 0 : i32
    %c0_i32_1 = arith.constant 0 : i32
    return %c0_i32, %c0_i32_0 : i32, i32
  }
  func.func @transform_8(%arg0: i32) -> (i32, i32) {
    %c0_i32 = arith.constant 0 : i32
    %c0_i32_0 = arith.constant 0 : i32
    %c0_i32_1 = arith.constant 0 : i32
    return %c0_i32, %c0_i32_0 : i32, i32
  }
  func.func @transform_9(%arg0: i32) -> (i32, i32) {
    %c0_i32 = arith.constant 0 : i32
    %c0_i32_0 = arith.constant 0 : i32
    %c0_i32_1 = arith.constant 0 : i32
    return %c0_i32, %c0_i32_0 : i32, i32
  }
  func.func @transform_10(%arg0: i32) -> (i32, i32) {
    %c0_i32 = arith.constant 0 : i32
    %c0_i32_0 = arith.constant 0 : i32
    %c0_i32_1 = arith.constant 0 : i32
    return %c0_i32, %c0_i32_0 : i32, i32
  }
  func.func @transform_11(%arg0: i32) -> (i32, i32, i32) {
    %c0_i32 = arith.constant 0 : i32
    %c0_i32_0 = arith.constant 0 : i32
    %c0_i32_1 = arith.constant 0 : i32
    return %arg0, %c0_i32, %c0_i32_0 : i32, i32, i32
  }
}

</mosaic_0001>

<llo_original>
// kernel: residual_se_block.1
$region0: #{residual_se_block.1}
  #allocation0 [shape = 'u32[]', space=smem, size = 0x4, offset = 0x4, fixed_abs, tag = 'smem constant byte address 0x4 - core index']
  #allocation1 [shape = 'u32[72,128]{1,0:T(1,128)}', space=vmem, size = 0x9000, scoped, tag = 'internal scratch']
  #allocation2 [shape = 'f32[16,258]{1,0:T(8,128)}', space=vmem, size = 0x6000, scoped, tag = 'scratch operand']
  #allocation3 [shape = 'f32[32,258]{1,0:T(8,128)}', space=vmem, size = 0xc000, scoped, tag = 'scratch operand']
  %s0 = inlined_call_operand.vmem [shape: f32[4,16,256], index: 0, kind: input, shape index: {}]
  %s1 = inlined_call_operand.vmem [shape: f32[3,32,16], index: 1, kind: input, shape index: {}]
  %s2 = inlined_call_operand.vmem [shape: f32[32,1], index: 2, kind: input, shape index: {}]
  %s3 = inlined_call_operand.vmem [shape: f32[3,32,32], index: 3, kind: input, shape index: {}]
  %s4 = inlined_call_operand.vmem [shape: f32[32,1], index: 4, kind: input, shape index: {}]
  %s5 = inlined_call_operand.vmem [shape: f32[32,16], index: 5, kind: input, shape index: {}]
  %s6 = inlined_call_operand.vmem [shape: f32[32,1], index: 6, kind: input, shape index: {}]
  %s7 = inlined_call_operand.vmem [shape: f32[32,4], index: 7, kind: input, shape index: {}]
  %s8 = inlined_call_operand.vmem [shape: f32[1,4], index: 8, kind: input, shape index: {}]
  %s9 = inlined_call_operand.vmem [shape: f32[32,4], index: 9, kind: input, shape index: {}]
  %s10 = inlined_call_operand.vmem [shape: f32[32,1], index: 10, kind: input, shape index: {}]
  %s11 = inlined_call_operand.hbm [shape: f32[4,32,128], index: 11, kind: output, shape index: {}]
  %s12 = sld [smem:[#allocation0]]
  $region77: #{residual_se_block.1} parent=0
    _
  %s14 = ssub.s32 1, %s12
  %s15 = scalar_select 0, %s14, %s12
  $region1: #{residual_se_block.1} parent=0
    #allocation4 [shape = 'u8[65536]{0}', space=vmem, size = 0x10000, scoped, tag = 'output window, operand 0']
    #allocation5 [shape = 's32[2]{0}', space=sflag, size = 0x8, scoped, tag = 'scoped memory for residual_se_block.1']
    %16 = vsyncpa [#allocation5], 0
    %s17 = scalar_lea.sflag [#allocation5], 1
    %18 = vsyncpa %s17, 0
    loop: start=0, step=1, limit=4
    $region2: #{residual_se_block.1} parent=1 // loop_pre_header
      _
    $region3: #{residual_se_block.1} parent=1 // loop_header
      %s20 = sphi 0, %s24
      %p21 = scmp.ge.s32.totalorder %s20, 4
      %s30 = sphi 0, %s32
      %s33 = sphi 0, %s30
      %s34 = sphi 0, %s33
      %s50 = sphi 0, %s34
      %s54 = sphi 0, %s54
      %s56 = sphi 0, %s54
      %s57 = sphi 0, %s56
      %s71 = sphi 0, %s57
      %s75 = sphi 0, %s75
      %s77 = sphi 0, %s75
      %s78 = sphi 0, %s77
      %s92 = sphi 0, %s78
      %s96 = sphi 0, %s96
      %s98 = sphi 0, %s96
      %s99 = sphi 0, %s98
      %s113 = sphi 0, %s99
      %s117 = sphi 0, %s117
      %s119 = sphi 0, %s117
      %s120 = sphi 0, %s119
      %s134 = sphi 0, %s120
      %s138 = sphi 0, %s138
      %s140 = sphi 0, %s138
      %s141 = sphi 0, %s140
      %s155 = sphi 0, %s141
      %s159 = sphi 0, %s159
      %s161 = sphi 0, %s159
      %s162 = sphi 0, %s161
      %s176 = sphi 0, %s162
      %s180 = sphi 0, %s180
      %s182 = sphi 0, %s180
      %s183 = sphi 0, %s182
      %s197 = sphi 0, %s183
      %s201 = sphi 0, %s201
      %s203 = sphi 0, %s201
      %s204 = sphi 0, %s203
      %s218 = sphi 0, %s204
      %s222 = sphi 0, %s222
      %s224 = sphi 0, %s222
      %s225 = sphi 0, %s224
      %s239 = sphi 0, %s225
      %s243 = sphi 0, %s243
      %s245 = sphi 0, %s243
      %s246 = sphi 0, %s245
      %s260 = sphi 0, %s246
      %s266 = sphi 0, %s268
      %s269 = sphi 0, %s266
      %s270 = sphi 0, %s269
      %s286 = sphi 0, %s270
    $region4: #{residual_se_block.1} parent=1 // loop_header_branch
      %23 = sbr.rel (%p21) target = $region8
    $region5: #{residual_se_block.1} parent=1 // loop_body
      %s25 = ssub.s32 %s20, 1
      %s26 = ssub.s32 %s20, 2
      %s27 = sadd.s32 %s20, 1
      %s28 = ssub.s32 %s20, %s27
      %p29 = scmp.eq.s32.totalorder %s28, 0
      %s31 = sadd.s32 %s30, 1
      %s32 = scalar_select %p29, %s30, %s31
      %p35 = pneg %p29
      %p36 = scmp.eq.s32.totalorder %s20, 1
      %p37 = por %p35, %p36
      %p38 = scmp.ne.s32.totalorder %s30, %s33
      %p39 = scmp.eq.s32.totalorder %s20, 0
      %p40 = por %p38, %p39
      %p41 = scmp.ne.s32.totalorder %s30, %s33
      %p42 = scmp.eq.s32.totalorder %s25, 1
      %p43 = por %p41, %p42
      %p44 = scmp.ne.s32.totalorder %s33, %s34
      %p45 = scmp.eq.s32.totalorder %s25, 0
      %p46 = por %p44, %p45
      %p47 = scmp.ne.s32.totalorder %s33, %s34
      %p48 = scmp.eq.s32.totalorder %s26, 1
      %p49 = por %p47, %p48
      %p51 = scmp.ne.s32.totalorder %s34, %s50
      %p52 = scmp.eq.s32.totalorder %s26, 0
      %p53 = por %p51, %p52
      %s55 = sadd.s32 %s54, 1
      %p58 = scmp.eq.s32.totalorder %s20, 1
      %p59 = scmp.ne.s32.totalorder %s54, %s56
      %p60 = scmp.eq.s32.totalorder %s20, 0
      %p61 = por %p59, %p60
      %p62 = scmp.ne.s32.totalorder %s54, %s56
      %p63 = scmp.eq.s32.totalorder %s25, 1
      %p64 = por %p62, %p63
      %p65 = scmp.ne.s32.totalorder %s56, %s57
      %p66 = scmp.eq.s32.totalorder %s25, 0
      %p67 = por %p65, %p66
      %p68 = scmp.ne.s32.totalorder %s56, %s57
      %p69 = scmp.eq.s32.totalorder %s26, 1
      %p70 = por %p68, %p69
      %p72 = scmp.ne.s32.totalorder %s57, %s71
      %p73 = scmp.eq.s32.totalorder %s26, 0
      %p74 = por %p72, %p73
      %s76 = sadd.s32 %s75, 1
      %p79 = scmp.eq.s32.totalorder %s20, 1
      %p80 = scmp.ne.s32.totalorder %s75, %s77
      %p81 = scmp.eq.s32.totalorder %s20, 0
      %p82 = por %p80, %p81
      %p83 = scmp.ne.s32.totalorder %s75, %s77
      %p84 = scmp.eq.s32.totalorder %s25, 1
      %p85 = por %p83, %p84
      %p86 = scmp.ne.s32.totalorder %s77, %s78
      %p87 = scmp.eq.s32.totalorder %s25, 0
      %p88 = por %p86, %p87
      %p89 = scmp.ne.s32.totalorder %s77, %s78
      %p90 = scmp.eq.s32.totalorder %s26, 1
      %p91 = por %p89, %p90
      %p93 = scmp.ne.s32.totalorder %s78, %s92
      %p94 = scmp.eq.s32.totalorder %s26, 0
      %p95 = por %p93, %p94
      %s97 = sadd.s32 %s96, 1
      %p100 = scmp.eq.s32.totalorder %s20, 1
      %p101 = scmp.ne.s32.totalorder %s96, %s98
      %p102 = scmp.eq.s32.totalorder %s20, 0
      %p103 = por %p101, %p102
      %p104 = scmp.ne.s32.totalorder %s96, %s98
      %p105 = scmp.eq.s32.totalorder %s25, 1
      %p106 = por %p104, %p105
      %p107 = scmp.ne.s32.totalorder %s98, %s99
      %p108 = scmp.eq.s32.totalorder %s25, 0
      %p109 = por %p107, %p108
      %p110 = scmp.ne.s32.totalorder %s98, %s99
      %p111 = scmp.eq.s32.totalorder %s26, 1
      %p112 = por %p110, %p111
      %p114 = scmp.ne.s32.totalorder %s99, %s113
      %p115 = scmp.eq.s32.totalorder %s26, 0
      %p116 = por %p114, %p115
      %s118 = sadd.s32 %s117, 1
      %p121 = scmp.eq.s32.totalorder %s20, 1
      %p122 = scmp.ne.s32.totalorder %s117, %s119
      %p123 = scmp.eq.s32.totalorder %s20, 0
      %p124 = por %p122, %p123
      %p125 = scmp.ne.s32.totalorder %s117, %s119
      %p126 = scmp.eq.s32.totalorder %s25, 1
      %p127 = por %p125, %p126
      %p128 = scmp.ne.s32.totalorder %s119, %s120
      %p129 = scmp.eq.s32.totalorder %s25, 0
      %p130 = por %p128, %p129
      %p131 = scmp.ne.s32.totalorder %s119, %s120
      %p132 = scmp.eq.s32.totalorder %s26, 1
      %p133 = por %p131, %p132
      %p135 = scmp.ne.s32.totalorder %s120, %s134
      %p136 = scmp.eq.s32.totalorder %s26, 0
      %p137 = por %p135, %p136
      %s139 = sadd.s32 %s138, 1
      %p142 = scmp.eq.s32.totalorder %s20, 1
      %p143 = scmp.ne.s32.totalorder %s138, %s140
      %p144 = scmp.eq.s32.totalorder %s20, 0
      %p145 = por %p143, %p144
      %p146 = scmp.ne.s32.totalorder %s138, %s140
      %p147 = scmp.eq.s32.totalorder %s25, 1
      %p148 = por %p146, %p147
      %p149 = scmp.ne.s32.totalorder %s140, %s141
      %p150 = scmp.eq.s32.totalorder %s25, 0
      %p151 = por %p149, %p150
      %p152 = scmp.ne.s32.totalorder %s140, %s141
      %p153 = scmp.eq.s32.totalorder %s26, 1
      %p154 = por %p152, %p153
      %p156 = scmp.ne.s32.totalorder %s141, %s155
      %p157 = scmp.eq.s32.totalorder %s26, 0
      %p158 = por %p156, %p157
      %s160 = sadd.s32 %s159, 1
      %p163 = scmp.eq.s32.totalorder %s20, 1
      %p164 = scmp.ne.s32.totalorder %s159, %s161
      %p165 = scmp.eq.s32.totalorder %s20, 0
      %p166 = por %p164, %p165
      %p167 = scmp.ne.s32.totalorder %s159, %s161
      %p168 = scmp.eq.s32.totalorder %s25, 1
      %p169 = por %p167, %p168
      %p170 = scmp.ne.s32.totalorder %s161, %s162
      %p171 = scmp.eq.s32.totalorder %s25, 0
      %p172 = por %p170, %p171
      %p173 = scmp.ne.s32.totalorder %s161, %s162
      %p174 = scmp.eq.s32.totalorder %s26, 1
      %p175 = por %p173, %p174
      %p177 = scmp.ne.s32.totalorder %s162, %s176
      %p178 = scmp.eq.s32.totalorder %s26, 0
      %p179 = por %p177, %p178
      %s181 = sadd.s32 %s180, 1
      %p184 = scmp.eq.s32.totalorder %s20, 1
      %p185 = scmp.ne.s32.totalorder %s180, %s182
      %p186 = scmp.eq.s32.totalorder %s20, 0
      %p187 = por %p185, %p186
      %p188 = scmp.ne.s32.totalorder %s180, %s182
      %p189 = scmp.eq.s32.totalorder %s25, 1
      %p190 = por %p188, %p189
      %p191 = scmp.ne.s32.totalorder %s182, %s183
      %p192 = scmp.eq.s32.totalorder %s25, 0
      %p193 = por %p191, %p192
      %p194 = scmp.ne.s32.totalorder %s182, %s183
      %p195 = scmp.eq.s32.totalorder %s26, 1
      %p196 = por %p194, %p195
      %p198 = scmp.ne.s32.totalorder %s183, %s197
      %p199 = scmp.eq.s32.totalorder %s26, 0
      %p200 = por %p198, %p199
      %s202 = sadd.s32 %s201, 1
      %p205 = scmp.eq.s32.totalorder %s20, 1
      %p206 = scmp.ne.s32.totalorder %s201, %s203
      %p207 = scmp.eq.s32.totalorder %s20, 0
      %p208 = por %p206, %p207
      %p209 = scmp.ne.s32.totalorder %s201, %s203
      %p210 = scmp.eq.s32.totalorder %s25, 1
      %p211 = por %p209, %p210
      %p212 = scmp.ne.s32.totalorder %s203, %s204
      %p213 = scmp.eq.s32.totalorder %s25, 0
      %p214 = por %p212, %p213
      %p215 = scmp.ne.s32.totalorder %s203, %s204
      %p216 = scmp.eq.s32.totalorder %s26, 1
      %p217 = por %p215, %p216
      %p219 = scmp.ne.s32.totalorder %s204, %s218
      %p220 = scmp.eq.s32.totalorder %s26, 0
      %p221 = por %p219, %p220
      %s223 = sadd.s32 %s222, 1
      %p226 = scmp.eq.s32.totalorder %s20, 1
      %p227 = scmp.ne.s32.totalorder %s222, %s224
      %p228 = scmp.eq.s32.totalorder %s20, 0
      %p229 = por %p227, %p228
      %p230 = scmp.ne.s32.totalorder %s222, %s224
      %p231 = scmp.eq.s32.totalorder %s25, 1
      %p232 = por %p230, %p231
      %p233 = scmp.ne.s32.totalorder %s224, %s225
      %p234 = scmp.eq.s32.totalorder %s25, 0
      %p235 = por %p233, %p234
      %p236 = scmp.ne.s32.totalorder %s224, %s225
      %p237 = scmp.eq.s32.totalorder %s26, 1
      %p238 = por %p236, %p237
      %p240 = scmp.ne.s32.totalorder %s225, %s239
      %p241 = scmp.eq.s32.totalorder %s26, 0
      %p242 = por %p240, %p241
      %s244 = sadd.s32 %s243, 1
      %p247 = scmp.eq.s32.totalorder %s20, 1
      %p248 = scmp.ne.s32.totalorder %s243, %s245
      %p249 = scmp.eq.s32.totalorder %s20, 0
      %p250 = por %p248, %p249
      %p251 = scmp.ne.s32.totalorder %s243, %s245
      %p252 = scmp.eq.s32.totalorder %s25, 1
      %p253 = por %p251, %p252
      %p254 = scmp.ne.s32.totalorder %s245, %s246
      %p255 = scmp.eq.s32.totalorder %s25, 0
      %p256 = por %p254, %p255
      %p257 = scmp.ne.s32.totalorder %s245, %s246
      %p258 = scmp.eq.s32.totalorder %s26, 1
      %p259 = por %p257, %p258
      %p261 = scmp.ne.s32.totalorder %s246, %s260
      %p262 = scmp.eq.s32.totalorder %s26, 0
      %p263 = por %p261, %p262
      %s264 = ssub.s32 %s20, %s27
      %p265 = scmp.eq.s32.totalorder %s264, 0
      %s267 = sadd.s32 %s266, 1
      %s268 = scalar_select %p265, %s266, %s267
      %p271 = pneg %p265
      %p272 = scmp.eq.s32.totalorder %s20, 1
      %p273 = por %p271, %p272
      %p274 = scmp.ne.s32.totalorder %s266, %s269
      %p275 = scmp.eq.s32.totalorder %s20, 0
      %p276 = por %p274, %p275
      %p277 = scmp.ne.s32.totalorder %s266, %s269
      %p278 = scmp.eq.s32.totalorder %s25, 1
      %p279 = por %p277, %p278
      %p280 = scmp.ne.s32.totalorder %s269, %s270
      %p281 = scmp.eq.s32.totalorder %s25, 0
      %p282 = por %p280, %p281
      %p283 = scmp.ne.s32.totalorder %s269, %s270
      %p284 = scmp.eq.s32.totalorder %s26, 1
      %p285 = por %p283, %p284
      %p287 = scmp.ne.s32.totalorder %s270, %s286
      %p288 = scmp.eq.s32.totalorder %s26, 0
      %p289 = por %p287, %p288
      %p290 = scmp.le.s32.totalorder 1, %s20
      %p291 = scmp.lt.s32.totalorder %s20, 3
      %p292 = pnand %p290, %p291
      %p293 = pneg %p292
      // Predicated region
      $region9: #{residual_se_block.1} parent=5 // pred_check
        _
      $region10: #{residual_se_block.1} parent=5 // pred_check_branch
        %295 = sbr.rel (%p292) target = $region12
      $region11: #{residual_se_block.1} parent=5 // pred_region
        %s296 = ssub.s32 %s20, 1
        // Predicated region
        $region13: #{residual_se_block.1} parent=11 // pred_check
          %p297 = pneg %p67
        $region14: #{residual_se_block.1} parent=11 // pred_check_branch
          %299 = sbr.rel (%p297) target = $region16
        $region15: #{residual_se_block.1} parent=11 // pred_region
          _
        $region16: #{residual_se_block.1} parent=11 // pred_fallthru
          _
        // Predicated region
        $region17: #{residual_se_block.1} parent=11 // pred_check
          %p300 = pneg %p88
        $region18: #{residual_se_block.1} parent=11 // pred_check_branch
          %302 = sbr.rel (%p300) target = $region20
        $region19: #{residual_se_block.1} parent=11 // pred_region
          _
        $region20: #{residual_se_block.1} parent=11 // pred_fallthru
          _
        // Predicated region
        $region21: #{residual_se_block.1} parent=11 // pred_check
          %p303 = pneg %p109
        $region22: #{residual_se_block.1} parent=11 // pred_check_branch
          %305 = sbr.rel (%p303) target = $region24
        $region23: #{residual_se_block.1} parent=11 // pred_region
          _
        $region24: #{residual_se_block.1} parent=11 // pred_fallthru
          _
        // Predicated region
        $region25: #{residual_se_block.1} parent=11 // pred_check
          %p306 = pneg %p130
        $region26: #{residual_se_block.1} parent=11 // pred_check_branch
          %308 = sbr.rel (%p306) target = $region28
        $region27: #{residual_se_block.1} parent=11 // pred_region
          _
        $region28: #{residual_se_block.1} parent=11 // pred_fallthru
          _
        // Predicated region
        $region29: #{residual_se_block.1} parent=11 // pred_check
          %p309 = pneg %p151
        $region30: #{residual_se_block.1} parent=11 // pred_check_branch
          %311 = sbr.rel (%p309) target = $region32
        $region31: #{residual_se_block.1} parent=11 // pred_region
          _
        $region32: #{residual_se_block.1} parent=11 // pred_fallthru
          _
        // Predicated region
        $region33: #{residual_se_block.1} parent=11 // pred_check
          %p312 = pneg %p172
        $region34: #{residual_se_block.1} parent=11 // pred_check_branch
          %314 = sbr.rel (%p312) target = $region36
        $region35: #{residual_se_block.1} parent=11 // pred_region
          _
        $region36: #{residual_se_block.1} parent=11 // pred_fallthru
          _
        // Predicated region
        $region37: #{residual_se_block.1} parent=11 // pred_check
          %p315 = pneg %p193
        $region38: #{residual_se_block.1} parent=11 // pred_check_branch
          %317 = sbr.rel (%p315) target = $region40
        $region39: #{residual_se_block.1} parent=11 // pred_region
          _
        $region40: #{residual_se_block.1} parent=11 // pred_fallthru
          _
        // Predicated region
        $region41: #{residual_se_block.1} parent=11 // pred_check
          %p318 = pneg %p214
        $region42: #{residual_se_block.1} parent=11 // pred_check_branch
          %320 = sbr.rel (%p318) target = $region44
        $region43: #{residual_se_block.1} parent=11 // pred_region
          _
        $region44: #{residual_se_block.1} parent=11 // pred_fallthru
          _
        // Predicated region
        $region45: #{residual_se_block.1} parent=11 // pred_check
          %p321 = pneg %p235
        $region46: #{residual_se_block.1} parent=11 // pred_check_branch
          %323 = sbr.rel (%p321) target = $region48
        $region47: #{residual_se_block.1} parent=11 // pred_region
          _
        $region48: #{residual_se_block.1} parent=11 // pred_fallthru
          _
        // Predicated region
        $region49: #{residual_se_block.1} parent=11 // pred_check
          %p324 = pneg %p256
        $region50: #{residual_se_block.1} parent=11 // pred_check_branch
          %326 = sbr.rel (%p324) target = $region52
        $region51: #{residual_se_block.1} parent=11 // pred_region
          _
        $region52: #{residual_se_block.1} parent=11 // pred_fallthru
          _
      $region12: #{residual_se_block.1} parent=5 // pred_fallthru
        _
      %p327 = scmp.lt.s32.totalorder %s20, 2
      // Predicated region
      $region53: #{residual_se_block.1} parent=5 // pred_check
        %p328 = pneg %p327
      $region54: #{residual_se_block.1} parent=5 // pred_check_branch
        %330 = sbr.rel (%p328) target = $region56
      $region55: #{residual_se_block.1} parent=5 // pred_region
        // Predicated region
        $region57: #{residual_se_block.1} parent=55 // pred_check
          %p331 = pneg %p40
        $region58: #{residual_se_block.1} parent=55 // pred_check_branch
          %333 = sbr.rel (%p331) target = $region60
        $region59: #{residual_se_block.1} parent=55 // pred_region
          %s334 = smul.u32 2, %s20
          %p335 = scmp.lt.s32.totalorder %s334, 3
          %s336 = scalar_select %p335, %s334, 3
          %s337 = smul.addr %s336, 4
          %s338 = smul.addr %s337, 8
          %s339 = scalar_lea.vmem %s0, %s338
          %s340 = smul.u32 2, %s20
        $region60: #{residual_se_block.1} parent=55 // pred_fallthru
          _
      $region56: #{residual_se_block.1} parent=5 // pred_fallthru
        _
      %p341 = scmp.le.s32.totalorder 1, %s20
      %p342 = scmp.lt.s32.totalorder %s20, 3
      %p343 = pnand %p341, %p342
      %p344 = pneg %p343
      // Predicated region
      $region61: #{residual_se_block.1} parent=5 // pred_check
        _
      $region62: #{residual_se_block.1} parent=5 // pred_check_branch
        %346 = sbr.rel (%p343) target = $region64
      $region63: #{residual_se_block.1} parent=5 // pred_region
        %s347 = ssub.s32 %s20, 1
        %s348 = smul.u32 2, %s25
        %p349 = scmp.lt.s32.totalorder %s348, 3
        %s350 = scalar_select %p349, %s348, 3
        %s351 = smul.addr %s350, 4
        %s352 = smul.addr %s351, 8
        %s353 = scalar_lea.vmem %s0, %s352
        %p354 = pneg %p46
        %p355 = pneg %p43
        %p356 = pneg %p67
        %p357 = pneg %p64
        %p358 = pneg %p88
        %p359 = pneg %p85
        %p360 = pneg %p109
        %p361 = pneg %p106
        %p362 = pneg %p130
        %p363 = pneg %p127
        %p364 = pneg %p151
        %p365 = pneg %p148
        %p366 = pneg %p172
        %p367 = pneg %p169
        %p368 = pneg %p193
        %p369 = pneg %p190
        %p370 = pneg %p214
        %p371 = pneg %p211
        %p372 = pneg %p235
        %p373 = pneg %p232
        %p374 = pneg %p256
        %p375 = pneg %p253
        %p376 = pneg %p282
        %p377 = pneg %p279
        %s378 = sand.u32 %s269, 1
        %s379 = scalar_lea.sflag [#allocation5], %s378
        %s380 = sand.u32 %s269, 1
        %s381 = smul.addr %s380, 64
        %s382 = scalar_lea.vmem [#allocation4], %s381
        %s383 = smul.u32 2, %s25
        %p384 = scmp.lt.s32.totalorder %s383, 3
        %s385 = scalar_select %p384, %s383, 3
        %s386 = smul.addr %s385, 4
        %s387 = smul.addr %s386, 8
        %s388 = scalar_lea.vmem %s0, %s387
        %s389 = smul.u32 2, %s25
        %s390 = smul.u32 2, %s25
        %391 = vst [vmem:[#allocation2] sm:$0xff] 0.0
        %392 = vst [vmem:[#allocation2 + $0x8] sm:$0xff] 0.0
        %vm393 = vcmask 15360
        %394 = vst.msk [vmem:[#allocation2 + $0x10] sm:$0xff] %vm393, 0.0
        %395 = vst [vmem:[#allocation2 + $0x18] sm:$0xff] 0.0
        %396 = vst [vmem:[#allocation2 + $0x20] sm:$0xff] 0.0
        %397 = vst.msk [vmem:[#allocation2 + $0x28] sm:$0xff] %vm393, 0.0
        %398 = vst [vmem:[#allocation3] sm:$0xff] 0.0
        %399 = vst [vmem:[#allocation3 + $0x8] sm:$0xff] 0.0
        %400 = vst.msk [vmem:[#allocation3 + $0x10] sm:$0xff] %vm393, 0.0
        %401 = vst [vmem:[#allocation3 + $0x18] sm:$0xff] 0.0
        %402 = vst [vmem:[#allocation3 + $0x20] sm:$0xff] 0.0
        %403 = vst.msk [vmem:[#allocation3 + $0x28] sm:$0xff] %vm393, 0.0
        %404 = vst [vmem:[#allocation3 + $0x30] sm:$0xff] 0.0
        %405 = vst [vmem:[#allocation3 + $0x38] sm:$0xff] 0.0
        %406 = vst.msk [vmem:[#allocation3 + $0x40] sm:$0xff] %vm393, 0.0
        %407 = vst [vmem:[#allocation3 + $0x48] sm:$0xff] 0.0
        %408 = vst [vmem:[#allocation3 + $0x50] sm:$0xff] 0.0
        %409 = vst.msk [vmem:[#allocation3 + $0x58] sm:$0xff] %vm393, 0.0
        %v410 = vlaneseq
        %v411 = vshrl.u32 %v410, 7
        %v412 = vadd.s32 %v411, 8
        %v413 = vadd.s32 %v411, 16
        %v414 = vadd.s32 %v411, 24
        %v415 = vadd.s32 %v411, 32
        %v416 = vadd.s32 %v411, 40
        %v417 = vadd.s32 %v411, 48
        %v418 = vadd.s32 %v411, 56
        %v419 = vadd.s32 %v411, 64
        %v420 = vadd.s32 %v411, 72
        %v421 = vadd.s32 %v411, 80
        %v422 = vadd.s32 %v411, 88
        %v423 = vadd.s32 %v411, 96
        %v424 = vadd.s32 %v411, 104
        %v425 = vadd.s32 %v411, 112
        %v426 = vadd.s32 %v411, 120
        %v427 = vadd.s32 %v411, 128
        %v428 = vadd.s32 %v411, 136
        %v429 = vadd.s32 %v411, 144
        %v430 = vadd.s32 %v411, 152
        %v431 = vadd.s32 %v411, 160
        %v432 = vadd.s32 %v411, 168
        %v433 = vadd.s32 %v411, 176
        %v434 = vadd.s32 %v411, 184
        %v435 = vadd.s32 %v411, 192
        %v436 = vadd.s32 %v411, 200
        %v437 = vadd.s32 %v411, 208
        %v438 = vadd.s32 %v411, 216
        %v439 = vadd.s32 %v411, 224
        %v440 = vadd.s32 %v411, 232
        %v441 = vadd.s32 %v411, 240
        %v442 = vadd.s32 %v411, 248
        %v443 = vlaneseq
        %v444 = vand.u32 %v443, 127
        %v445 = vmul.u32 %v444, 2
        %vm446 = vcmp.eq.s32.totalorder %v411, %v445
        %vm447 = vcmp.eq.s32.totalorder %v412, %v445
        %vm448 = vcmp.eq.s32.totalorder %v413, %v445
        %vm449 = vcmp.eq.s32.totalorder %v414, %v445
        %vm450 = vcmp.eq.s32.totalorder %v415, %v445
        %vm451 = vcmp.eq.s32.totalorder %v416, %v445
        %vm452 = vcmp.eq.s32.totalorder %v417, %v445
        %vm453 = vcmp.eq.s32.totalorder %v418, %v445
        %vm454 = vcmp.eq.s32.totalorder %v419, %v445
        %vm455 = vcmp.eq.s32.totalorder %v420, %v445
        %vm456 = vcmp.eq.s32.totalorder %v421, %v445
        %vm457 = vcmp.eq.s32.totalorder %v422, %v445
        %vm458 = vcmp.eq.s32.totalorder %v423, %v445
        %vm459 = vcmp.eq.s32.totalorder %v424, %v445
        %vm460 = vcmp.eq.s32.totalorder %v425, %v445
        %vm461 = vcmp.eq.s32.totalorder %v426, %v445
        %vm462 = vcmp.eq.s32.totalorder %v427, %v445
        %vm463 = vcmp.eq.s32.totalorder %v428, %v445
        %vm464 = vcmp.eq.s32.totalorder %v429, %v445
        %vm465 = vcmp.eq.s32.totalorder %v430, %v445
        %vm466 = vcmp.eq.s32.totalorder %v431, %v445
        %vm467 = vcmp.eq.s32.totalorder %v432, %v445
        %vm468 = vcmp.eq.s32.totalorder %v433, %v445
        %vm469 = vcmp.eq.s32.totalorder %v434, %v445
        %vm470 = vcmp.eq.s32.totalorder %v435, %v445
        %vm471 = vcmp.eq.s32.totalorder %v436, %v445
        %vm472 = vcmp.eq.s32.totalorder %v437, %v445
        %vm473 = vcmp.eq.s32.totalorder %v438, %v445
        %vm474 = vcmp.eq.s32.totalorder %v439, %v445
        %vm475 = vcmp.eq.s32.totalorder %v440, %v445
        %vm476 = vcmp.eq.s32.totalorder %v441, %v445
        %vm477 = vcmp.eq.s32.totalorder %v442, %v445
        %v478 = vsel %vm446, 1.0, 0.0
        %v479 = vsel %vm447, 1.0, 0.0
        %v480 = vsel %vm448, 1.0, 0.0
        %v481 = vsel %vm449, 1.0, 0.0
        %v482 = vsel %vm450, 1.0, 0.0
        %v483 = vsel %vm451, 1.0, 0.0
        %v484 = vsel %vm452, 1.0, 0.0
        %v485 = vsel %vm453, 1.0, 0.0
        %v486 = vsel %vm454, 1.0, 0.0
        %v487 = vsel %vm455, 1.0, 0.0
        %v488 = vsel %vm456, 1.0, 0.0
        %v489 = vsel %vm457, 1.0, 0.0
        %v490 = vsel %vm458, 1.0, 0.0
        %v491 = vsel %vm459, 1.0, 0.0
        %v492 = vsel %vm460, 1.0, 0.0
        %v493 = vsel %vm461, 1.0, 0.0
        %v494 = vsel %vm462, 1.0, 0.0
        %v495 = vsel %vm463, 1.0, 0.0
        %v496 = vsel %vm464, 1.0, 0.0
        %v497 = vsel %vm465, 1.0, 0.0
        %v498 = vsel %vm466, 1.0, 0.0
        %v499 = vsel %vm467, 1.0, 0.0
        %v500 = vsel %vm468, 1.0, 0.0
        %v501 = vsel %vm469, 1.0, 0.0
        %v502 = vsel %vm470, 1.0, 0.0
        %v503 = vsel %vm471, 1.0, 0.0
        %v504 = vsel %vm472, 1.0, 0.0
        %v505 = vsel %vm473, 1.0, 0.0
        %v506 = vsel %vm474, 1.0, 0.0
        %v507 = vsel %vm475, 1.0, 0.0
        %v508 = vsel %vm476, 1.0, 0.0
        %v509 = vsel %vm477, 1.0, 0.0
        %v510 = vadd.s32 %v445, 1
        %vm511 = vcmp.eq.s32.totalorder %v411, %v510
        %vm512 = vcmp.eq.s32.totalorder %v412, %v510
        %vm513 = vcmp.eq.s32.totalorder %v413, %v510
        %vm514 = vcmp.eq.s32.totalorder %v414, %v510
        %vm515 = vcmp.eq.s32.totalorder %v415, %v510
        %vm516 = vcmp.eq.s32.totalorder %v416, %v510
        %vm517 = vcmp.eq.s32.totalorder %v417, %v510
        %vm518 = vcmp.eq.s32.totalorder %v418, %v510
        %vm519 = vcmp.eq.s32.totalorder %v419, %v510
        %vm520 = vcmp.eq.s32.totalorder %v420, %v510
        %vm521 = vcmp.eq.s32.totalorder %v421, %v510
        %vm522 = vcmp.eq.s32.totalorder %v422, %v510
        %vm523 = vcmp.eq.s32.totalorder %v423, %v510
        %vm524 = vcmp.eq.s32.totalorder %v424, %v510
        %vm525 = vcmp.eq.s32.totalorder %v425, %v510
        %vm526 = vcmp.eq.s32.totalorder %v426, %v510
        %vm527 = vcmp.eq.s32.totalorder %v427, %v510
        %vm528 = vcmp.eq.s32.totalorder %v428, %v510
        %vm529 = vcmp.eq.s32.totalorder %v429, %v510
        %vm530 = vcmp.eq.s32.totalorder %v430, %v510
        %vm531 = vcmp.eq.s32.totalorder %v431, %v510
        %vm532 = vcmp.eq.s32.totalorder %v432, %v510
        %vm533 = vcmp.eq.s32.totalorder %v433, %v510
        %vm534 = vcmp.eq.s32.totalorder %v434, %v510
        %vm535 = vcmp.eq.s32.totalorder %v435, %v510
        %vm536 = vcmp.eq.s32.totalorder %v436, %v510
        %vm537 = vcmp.eq.s32.totalorder %v437, %v510
        %vm538 = vcmp.eq.s32.totalorder %v438, %v510
        %vm539 = vcmp.eq.s32.totalorder %v439, %v510
        %vm540 = vcmp.eq.s32.totalorder %v440, %v510
        %vm541 = vcmp.eq.s32.totalorder %v441, %v510
        %vm542 = vcmp.eq.s32.totalorder %v442, %v510
        %v543 = vsel %vm511, 1.0, 0.0
        %v544 = vsel %vm512, 1.0, 0.0
        %v545 = vsel %vm513, 1.0, 0.0
        %v546 = vsel %vm514, 1.0, 0.0
        %v547 = vsel %vm515, 1.0, 0.0
        %v548 = vsel %vm516, 1.0, 0.0
        %v549 = vsel %vm517, 1.0, 0.0
        %v550 = vsel %vm518, 1.0, 0.0
        %v551 = vsel %vm519, 1.0, 0.0
        %v552 = vsel %vm520, 1.0, 0.0
        %v553 = vsel %vm521, 1.0, 0.0
        %v554 = vsel %vm522, 1.0, 0.0
        %v555 = vsel %vm523, 1.0, 0.0
        %v556 = vsel %vm524, 1.0, 0.0
        %v557 = vsel %vm525, 1.0, 0.0
        %v558 = vsel %vm526, 1.0, 0.0
        %v559 = vsel %vm527, 1.0, 0.0
        %v560 = vsel %vm528, 1.0, 0.0
        %v561 = vsel %vm529, 1.0, 0.0
        %v562 = vsel %vm530, 1.0, 0.0
        %v563 = vsel %vm531, 1.0, 0.0
        %v564 = vsel %vm532, 1.0, 0.0
        %v565 = vsel %vm533, 1.0, 0.0
        %v566 = vsel %vm534, 1.0, 0.0
        %v567 = vsel %vm535, 1.0, 0.0
        %v568 = vsel %vm536, 1.0, 0.0
        %v569 = vsel %vm537, 1.0, 0.0
        %v570 = vsel %vm538, 1.0, 0.0
        %v571 = vsel %vm539, 1.0, 0.0
        %v572 = vsel %vm540, 1.0, 0.0
        %v573 = vsel %vm541, 1.0, 0.0
        %v574 = vsel %vm542, 1.0, 0.0
        %v575 = vld [vmem:[%s1] sm:$0xff]
        %v576 = vld [vmem:[%s1 + $0x8] sm:$0xff]
        %v577 = vld [vmem:[%s1 + $0x10] sm:$0xff]
        %v578 = vld [vmem:[%s1 + $0x18] sm:$0xff]
        %v579 = vld [vmem:[%s1 + $0x20] sm:$0xff]
        %v580 = vld [vmem:[%s1 + $0x28] sm:$0xff]
        %v581 = vld [vmem:[%s1 + $0x30] sm:$0xff]
        %v582 = vld [vmem:[%s1 + $0x38] sm:$0xff]
        %v583 = vld [vmem:[%s1 + $0x40] sm:$0xff]
        %v584 = vld [vmem:[%s1 + $0x48] sm:$0xff]
        %v585 = vld [vmem:[%s1 + $0x50] sm:$0xff]
        %v586 = vld [vmem:[%s1 + $0x58] sm:$0xff]
        %v587 = vld [vmem:[%s2] sm:$0xff]
        %v588 = vld [vmem:[%s2 + $0x8] sm:$0xff]
        %v589 = vld [vmem:[%s2 + $0x10] sm:$0xff]
        %v590 = vld [vmem:[%s2 + $0x18] sm:$0xff]
        %v591 = vld [vmem:[%s3] sm:$0xff]
        %v592 = vld [vmem:[%s3 + $0x8] sm:$0xff]
        %v593 = vld [vmem:[%s3 + $0x10] sm:$0xff]
        %v594 = vld [vmem:[%s3 + $0x18] sm:$0xff]
        %v595 = vld [vmem:[%s3 + $0x20] sm:$0xff]
        %v596 = vld [vmem:[%s3 + $0x28] sm:$0xff]
        %v597 = vld [vmem:[%s3 + $0x30] sm:$0xff]
        %v598 = vld [vmem:[%s3 + $0x38] sm:$0xff]
        %v599 = vld [vmem:[%s3 + $0x40] sm:$0xff]
        %v600 = vld [vmem:[%s3 + $0x48] sm:$0xff]
        %v601 = vld [vmem:[%s3 + $0x50] sm:$0xff]
        %v602 = vld [vmem:[%s3 + $0x58] sm:$0xff]
        %v603 = vld [vmem:[%s4] sm:$0xff]
        %v604 = vld [vmem:[%s4 + $0x8] sm:$0xff]
        %v605 = vld [vmem:[%s4 + $0x10] sm:$0xff]
        %v606 = vld [vmem:[%s4 + $0x18] sm:$0xff]
        %v607 = vld [vmem:[%s5] sm:$0xff]
        %v608 = vld [vmem:[%s5 + $0x8] sm:$0xff]
        %v609 = vld [vmem:[%s5 + $0x10] sm:$0xff]
        %v610 = vld [vmem:[%s5 + $0x18] sm:$0xff]
        %v611 = vld [vmem:[%s6] sm:$0xff]
        %v612 = vld [vmem:[%s6 + $0x8] sm:$0xff]
        %v613 = vld [vmem:[%s6 + $0x10] sm:$0xff]
        %v614 = vld [vmem:[%s6 + $0x18] sm:$0xff]
        %v615 = vld [vmem:[%s7] sm:$0xff]
        %v616 = vld [vmem:[%s7 + $0x8] sm:$0xff]
        %v617 = vld [vmem:[%s7 + $0x10] sm:$0xff]
        %v618 = vld [vmem:[%s7 + $0x18] sm:$0xff]
        %v619 = vld [vmem:[%s8] sm:$0x1]
        %v620 = vld [vmem:[%s9] sm:$0xff]
        %v621 = vld [vmem:[%s9 + $0x8] sm:$0xff]
        %v622 = vld [vmem:[%s9 + $0x10] sm:$0xff]
        %v623 = vld [vmem:[%s9 + $0x18] sm:$0xff]
        %v624 = vld [vmem:[%s10] sm:$0xff]
        %v625 = vld [vmem:[%s10 + $0x8] sm:$0xff]
        %v626 = vld [vmem:[%s10 + $0x10] sm:$0xff]
        %v627 = vld [vmem:[%s10 + $0x18] sm:$0xff]
        %v628 = vld [vmem:[%s388] sm:$0xff]
        %v629 = vld [vmem:[%s388 + $0x8] sm:$0xff]
        %v630 = vld [vmem:[%s388 + $0x10] sm:$0xff]
        %v631 = vld [vmem:[%s388 + $0x18] sm:$0xff]
        %633 = vset.pattern.permute.xlu0 0
        %634 = vperm.xlu0 %633, %v611
        %v635 = vpop.permute.xlu0 %634
        %638 = vset.pattern.permute.xlu0 0
        %639 = vperm.xlu0 %638, %v612
        %v640 = vpop.permute.xlu0 %639
        %643 = vset.pattern.permute.xlu0 0
        %644 = vperm.xlu0 %643, %v613
        %v645 = vpop.permute.xlu0 %644
        %648 = vset.pattern.permute.xlu0 0
        %649 = vperm.xlu0 %648, %v614
        %v650 = vpop.permute.xlu0 %649
        %vm652 = vcmask 130048
        %v654 = vsel %vm652, %v607, 0
        %v657 = vsel %vm652, %v608, 0
        %v660 = vsel %vm652, %v609, 0
        %v663 = vsel %vm652, %v610, 0
        %665 = vmatpush.msra.mxu0 0.0
        %666 = vmatpush.msra.mxu0 0.0
        %667 = vmatpush.msra.mxu0 0.0
        %668 = vmatpush.msra.mxu0 0.0
        %669 = vmatpush.msra.mxu0 0.0
        %670 = vmatpush.msra.mxu0 0.0
        %671 = vmatpush.msra.mxu0 0.0
        %672 = vmatpush.msra.mxu0 0.0
        %673 = vmatpush.msra.mxu0 0.0
        %674 = vmatpush.msra.mxu0 0.0
        %675 = vmatpush.msra.mxu0 0.0
        %676 = vmatpush.msra.mxu0 0.0
        %677 = vmatpush.msra.mxu0 0.0
        %678 = vmatpush.msra.mxu0 0.0
        %679 = vmatpush.msra.mxu0 %v630
        %680 = vmatpush.msra.mxu0 %v628
        %681 = vmatmul.f32.gmra.mxu0 %v654
        %v682 = vpop.f32.mrf.mxu0
        %v683 = vadd.f32 %v635, %v682
        %684 = vmatmul.f32.gmra.mxu0 %v657
        %v685 = vpop.f32.mrf.mxu0
        %v686 = vadd.f32 %v640, %v685
        %687 = vmatmul.f32.gmra.mxu0 %v660
        %v688 = vpop.f32.mrf.mxu0
        %v689 = vadd.f32 %v645, %v688
        %690 = vmatmul.f32.gmra.mxu0 %v663
        %v691 = vpop.f32.mrf.mxu0
        %v692 = vadd.f32 %v650, %v691
        %693 = vdwg.mxu0
        %694 = vmatpush.msra.mxu0 0.0
        %695 = vmatpush.msra.mxu0 0.0
        %696 = vmatpush.msra.mxu0 0.0
        %697 = vmatpush.msra.mxu0 0.0
        %698 = vmatpush.msra.mxu0 0.0
        %699 = vmatpush.msra.mxu0 0.0
        %700 = vmatpush.msra.mxu0 0.0
        %701 = vmatpush.msra.mxu0 0.0
        %702 = vmatpush.msra.mxu0 0.0
        %703 = vmatpush.msra.mxu0 0.0
        %704 = vmatpush.msra.mxu0 0.0
        %705 = vmatpush.msra.mxu0 0.0
        %706 = vmatpush.msra.mxu0 0.0
        %707 = vmatpush.msra.mxu0 0.0
        %708 = vmatpush.msra.mxu0 %v631
        %709 = vmatpush.msra.mxu0 %v629
        %710 = vmatmul.f32.gmra.mxu0 %v654
        %v711 = vpop.f32.mrf.mxu0
        %v712 = vadd.f32 %v635, %v711
        %713 = vmatmul.f32.gmra.mxu0 %v657
        %v714 = vpop.f32.mrf.mxu0
        %v715 = vadd.f32 %v640, %v714
        %716 = vmatmul.f32.gmra.mxu0 %v660
        %v717 = vpop.f32.mrf.mxu0
        %v718 = vadd.f32 %v645, %v717
        %719 = vmatmul.f32.gmra.mxu0 %v663
        %v720 = vpop.f32.mrf.mxu0
        %v721 = vadd.f32 %v650, %v720
        %722 = vdwg.mxu0
        %727 = vrot.lane.b32.xlu0 %v628, 1
        %v728 = vpop.permute.xlu0 %727
        %729 = vrot.lane.b32.xlu0 %v629, 1
        %v730 = vpop.permute.xlu0 %729
        %731 = vrot.lane.b32.xlu0 %v630, 1
        %v732 = vpop.permute.xlu0 %731
        %733 = vrot.lane.b32.xlu0 %v631, 1
        %v734 = vpop.permute.xlu0 %733
        %vm735 = vcmask 7168
        %v736 = vsel %vm735, %v728, %v730
        %v737 = vsel %vm735, %v732, %v734
        %vm744 = vcmask 1047560
        %745 = vst.msk [vmem:[#allocation2] sm:$0xff] %vm744, %v728
        %746 = vst [vmem:[#allocation2 + $0x8] sm:$0xff] %v736
        %747 = vst.msk [vmem:[#allocation2 + $0x10] sm:$0xff] %vm735, %v730
        %748 = vst.msk [vmem:[#allocation2 + $0x18] sm:$0xff] %vm744, %v732
        %749 = vst [vmem:[#allocation2 + $0x20] sm:$0xff] %v737
        %750 = vst.msk [vmem:[#allocation2 + $0x28] sm:$0xff] %vm735, %v734
        %v751 = vld [vmem:[#allocation2] sm:$0xff]
        %v752 = vld [vmem:[#allocation2 + $0x8] sm:$0xff]
        %v753 = vld [vmem:[#allocation2 + $0x18] sm:$0xff]
        %v754 = vld [vmem:[#allocation2 + $0x20] sm:$0xff]
        %v756 = vsel %vm652, %v575, 0
        %v759 = vsel %vm652, %v576, 0
        %v762 = vsel %vm652, %v577, 0
        %v765 = vsel %vm652, %v578, 0
        %767 = vmatpush.msra.mxu0 0.0
        %768 = vmatpush.msra.mxu0 0.0
        %769 = vmatpush.msra.mxu0 0.0
        %770 = vmatpush.msra.mxu0 0.0
        %771 = vmatpush.msra.mxu0 0.0
        %772 = vmatpush.msra.mxu0 0.0
        %773 = vmatpush.msra.mxu0 0.0
        %774 = vmatpush.msra.mxu0 0.0
        %775 = vmatpush.msra.mxu0 0.0
        %776 = vmatpush.msra.mxu0 0.0
        %777 = vmatpush.msra.mxu0 0.0
        %778 = vmatpush.msra.mxu0 0.0
        %779 = vmatpush.msra.mxu0 0.0
        %780 = vmatpush.msra.mxu0 0.0
        %781 = vmatpush.msra.mxu0 %v753
        %782 = vmatpush.msra.mxu0 %v751
        %783 = vmatmul.f32.gmra.mxu0 %v756
        %v784 = vpop.f32.mrf.mxu0
        %v785 = vadd.f32 0.0, %v784
        %786 = vmatmul.f32.gmra.mxu0 %v759
        %v787 = vpop.f32.mrf.mxu0
        %v788 = vadd.f32 0.0, %v787
        %789 = vmatmul.f32.gmra.mxu0 %v762
        %v790 = vpop.f32.mrf.mxu0
        %v791 = vadd.f32 0.0, %v790
        %792 = vmatmul.f32.gmra.mxu0 %v765
        %v793 = vpop.f32.mrf.mxu0
        %v794 = vadd.f32 0.0, %v793
        %795 = vdwg.mxu0
        %796 = vmatpush.msra.mxu0 0.0
        %797 = vmatpush.msra.mxu0 0.0
        %798 = vmatpush.msra.mxu0 0.0
        %799 = vmatpush.msra.mxu0 0.0
        %800 = vmatpush.msra.mxu0 0.0
        %801 = vmatpush.msra.mxu0 0.0
        %802 = vmatpush.msra.mxu0 0.0
        %803 = vmatpush.msra.mxu0 0.0
        %804 = vmatpush.msra.mxu0 0.0
        %805 = vmatpush.msra.mxu0 0.0
        %806 = vmatpush.msra.mxu0 0.0
        %807 = vmatpush.msra.mxu0 0.0
        %808 = vmatpush.msra.mxu0 0.0
        %809 = vmatpush.msra.mxu0 0.0
        %810 = vmatpush.msra.mxu0 %v754
        %811 = vmatpush.msra.mxu0 %v752
        %812 = vmatmul.f32.gmra.mxu0 %v756
        %v813 = vpop.f32.mrf.mxu0
        %v814 = vadd.f32 0.0, %v813
        %815 = vmatmul.f32.gmra.mxu0 %v759
        %v816 = vpop.f32.mrf.mxu0
        %v817 = vadd.f32 0.0, %v816
        %818 = vmatmul.f32.gmra.mxu0 %v762
        %v819 = vpop.f32.mrf.mxu0
        %v820 = vadd.f32 0.0, %v819
        %821 = vmatmul.f32.gmra.mxu0 %v765
        %v822 = vpop.f32.mrf.mxu0
        %v823 = vadd.f32 0.0, %v822
        %824 = vdwg.mxu0
        %v826 = vsel %vm652, %v579, 0
        %v829 = vsel %vm652, %v580, 0
        %v832 = vsel %vm652, %v581, 0
        %v835 = vsel %vm652, %v582, 0
        %837 = vmatpush.msra.mxu0 0.0
        %838 = vmatpush.msra.mxu0 0.0
        %839 = vmatpush.msra.mxu0 0.0
        %840 = vmatpush.msra.mxu0 0.0
        %841 = vmatpush.msra.mxu0 0.0
        %842 = vmatpush.msra.mxu0 0.0
        %843 = vmatpush.msra.mxu0 0.0
        %844 = vmatpush.msra.mxu0 0.0
        %845 = vmatpush.msra.mxu0 0.0
        %846 = vmatpush.msra.mxu0 0.0
        %847 = vmatpush.msra.mxu0 0.0
        %848 = vmatpush.msra.mxu0 0.0
        %849 = vmatpush.msra.mxu0 0.0
        %850 = vmatpush.msra.mxu0 0.0
        %851 = vmatpush.msra.mxu0 %v630
        %852 = vmatpush.msra.mxu0 %v628
        %853 = vmatmul.f32.gmra.mxu0 %v826
        %v854 = vpop.f32.mrf.mxu0
        %v855 = vadd.f32 %v785, %v854
        %856 = vmatmul.f32.gmra.mxu0 %v829
        %v857 = vpop.f32.mrf.mxu0
        %v858 = vadd.f32 %v788, %v857
        %859 = vmatmul.f32.gmra.mxu0 %v832
        %v860 = vpop.f32.mrf.mxu0
        %v861 = vadd.f32 %v791, %v860
        %862 = vmatmul.f32.gmra.mxu0 %v835
        %v863 = vpop.f32.mrf.mxu0
        %v864 = vadd.f32 %v794, %v863
        %865 = vdwg.mxu0
        %866 = vmatpush.msra.mxu0 0.0
        %867 = vmatpush.msra.mxu0 0.0
        %868 = vmatpush.msra.mxu0 0.0
        %869 = vmatpush.msra.mxu0 0.0
        %870 = vmatpush.msra.mxu0 0.0
        %871 = vmatpush.msra.mxu0 0.0
        %872 = vmatpush.msra.mxu0 0.0
        %873 = vmatpush.msra.mxu0 0.0
        %874 = vmatpush.msra.mxu0 0.0
        %875 = vmatpush.msra.mxu0 0.0
        %876 = vmatpush.msra.mxu0 0.0
        %877 = vmatpush.msra.mxu0 0.0
        %878 = vmatpush.msra.mxu0 0.0
        %879 = vmatpush.msra.mxu0 0.0
        %880 = vmatpush.msra.mxu0 %v631
        %881 = vmatpush.msra.mxu0 %v629
        %882 = vmatmul.f32.gmra.mxu0 %v826
        %v883 = vpop.f32.mrf.mxu0
        %v884 = vadd.f32 %v814, %v883
        %885 = vmatmul.f32.gmra.mxu0 %v829
        %v886 = vpop.f32.mrf.mxu0
        %v887 = vadd.f32 %v817, %v886
        %888 = vmatmul.f32.gmra.mxu0 %v832
        %v889 = vpop.f32.mrf.mxu0
        %v890 = vadd.f32 %v820, %v889
        %891 = vmatmul.f32.gmra.mxu0 %v835
        %v892 = vpop.f32.mrf.mxu0
        %v893 = vadd.f32 %v823, %v892
        %894 = vdwg.mxu0
        %v895 = vld [vmem:[#allocation2] sm:$0xff]
        %v896 = vld [vmem:[#allocation2 + $0x8] sm:$0xff]
        %v897 = vld [vmem:[#allocation2 + $0x10] sm:$0xff]
        %v898 = vld [vmem:[#allocation2 + $0x18] sm:$0xff]
        %v899 = vld [vmem:[#allocation2 + $0x20] sm:$0xff]
        %v900 = vld [vmem:[#allocation2 + $0x28] sm:$0xff]
        %907 = vrot.lane.b32.xlu0 %v895, 126
        %v908 = vpop.permute.xlu0 %907
        %909 = vrot.lane.b32.xlu0 %v896, 126
        %v910 = vpop.permute.xlu0 %909
        %911 = vrot.lane.b32.xlu0 %v897, 126
        %v912 = vpop.permute.xlu0 %911
        %913 = vrot.lane.b32.xlu0 %v898, 126
        %v914 = vpop.permute.xlu0 %913
        %915 = vrot.lane.b32.xlu0 %v899, 126
        %v916 = vpop.permute.xlu0 %915
        %917 = vrot.lane.b32.xlu0 %v900, 126
        %v918 = vpop.permute.xlu0 %917
        %vm919 = vcmask 1031168
        %v920 = vsel %vm919, %v908, %v910
        %v921 = vsel %vm919, %v910, %v912
        %v922 = vsel %vm919, %v914, %v916
        %v923 = vsel %vm919, %v916, %v918
        %v929 = vsel %vm652, %v583, 0
        %v932 = vsel %vm652, %v584, 0
        %v935 = vsel %vm652, %v585, 0
        %v938 = vsel %vm652, %v586, 0
        %940 = vmatpush.msra.mxu0 0.0
        %941 = vmatpush.msra.mxu0 0.0
        %942 = vmatpush.msra.mxu0 0.0
        %943 = vmatpush.msra.mxu0 0.0
        %944 = vmatpush.msra.mxu0 0.0
        %945 = vmatpush.msra.mxu0 0.0
        %946 = vmatpush.msra.mxu0 0.0
        %947 = vmatpush.msra.mxu0 0.0
        %948 = vmatpush.msra.mxu0 0.0
        %949 = vmatpush.msra.mxu0 0.0
        %950 = vmatpush.msra.mxu0 0.0
        %951 = vmatpush.msra.mxu0 0.0
        %952 = vmatpush.msra.mxu0 0.0
        %953 = vmatpush.msra.mxu0 0.0
        %954 = vmatpush.msra.mxu0 %v922
        %955 = vmatpush.msra.mxu0 %v920
        %956 = vmatmul.f32.gmra.mxu0 %v929
        %v957 = vpop.f32.mrf.mxu0
        %v958 = vadd.f32 0.0, %v957
        %959 = vmatmul.f32.gmra.mxu0 %v932
        %v960 = vpop.f32.mrf.mxu0
        %v961 = vadd.f32 0.0, %v960
        %962 = vmatmul.f32.gmra.mxu0 %v935
        %v963 = vpop.f32.mrf.mxu0
        %v964 = vadd.f32 0.0, %v963
        %965 = vmatmul.f32.gmra.mxu0 %v938
        %v966 = vpop.f32.mrf.mxu0
        %v967 = vadd.f32 0.0, %v966
        %968 = vdwg.mxu0
        %969 = vmatpush.msra.mxu0 0.0
        %970 = vmatpush.msra.mxu0 0.0
        %971 = vmatpush.msra.mxu0 0.0
        %972 = vmatpush.msra.mxu0 0.0
        %973 = vmatpush.msra.mxu0 0.0
        %974 = vmatpush.msra.mxu0 0.0
        %975 = vmatpush.msra.mxu0 0.0
        %976 = vmatpush.msra.mxu0 0.0
        %977 = vmatpush.msra.mxu0 0.0
        %978 = vmatpush.msra.mxu0 0.0
        %979 = vmatpush.msra.mxu0 0.0
        %980 = vmatpush.msra.mxu0 0.0
        %981 = vmatpush.msra.mxu0 0.0
        %982 = vmatpush.msra.mxu0 0.0
        %983 = vmatpush.msra.mxu0 %v923
        %984 = vmatpush.msra.mxu0 %v921
        %985 = vmatmul.f32.gmra.mxu0 %v929
        %v986 = vpop.f32.mrf.mxu0
        %v987 = vadd.f32 0.0, %v986
        %988 = vmatmul.f32.gmra.mxu0 %v932
        %v989 = vpop.f32.mrf.mxu0
        %v990 = vadd.f32 0.0, %v989
        %991 = vmatmul.f32.gmra.mxu0 %v935
        %v992 = vpop.f32.mrf.mxu0
        %v993 = vadd.f32 0.0, %v992
        %994 = vmatmul.f32.gmra.mxu0 %v938
        %v995 = vpop.f32.mrf.mxu0
        %v996 = vadd.f32 0.0, %v995
        %997 = vdwg.mxu0
        %v998 = vadd.f32 %v855, %v958
        %v999 = vadd.f32 %v884, %v987
        %v1000 = vadd.f32 %v858, %v961
        %v1001 = vadd.f32 %v887, %v990
        %v1002 = vadd.f32 %v861, %v964
        %v1003 = vadd.f32 %v890, %v993
        %v1004 = vadd.f32 %v864, %v967
        %v1005 = vadd.f32 %v893, %v996
        %1007 = vset.pattern.permute.xlu0 0
        %1008 = vperm.xlu0 %1007, %v587
        %v1009 = vpop.permute.xlu0 %1008
        %1012 = vset.pattern.permute.xlu0 0
        %1013 = vperm.xlu0 %1012, %v588
        %v1014 = vpop.permute.xlu0 %1013
        %1017 = vset.pattern.permute.xlu0 0
        %1018 = vperm.xlu0 %1017, %v589
        %v1019 = vpop.permute.xlu0 %1018
        %1022 = vset.pattern.permute.xlu0 0
        %1023 = vperm.xlu0 %1022, %v590
        %v1024 = vpop.permute.xlu0 %1023
        %v1026 = vadd.f32 %v998, %v1009
        %v1027 = vadd.f32 %v999, %v1009
        %v1028 = vadd.f32 %v1000, %v1014
        %v1029 = vadd.f32 %v1001, %v1014
        %v1030 = vadd.f32 %v1002, %v1019
        %v1031 = vadd.f32 %v1003, %v1019
        %v1032 = vadd.f32 %v1004, %v1024
        %v1033 = vadd.f32 %v1005, %v1024
        %v1034 = vmax.f32 %v1026, 0.0
        %v1035 = vmax.f32 %v1027, 0.0
        %v1036 = vmax.f32 %v1028, 0.0
        %v1037 = vmax.f32 %v1029, 0.0
        %v1038 = vmax.f32 %v1030, 0.0
        %v1039 = vmax.f32 %v1031, 0.0
        %v1040 = vmax.f32 %v1032, 0.0
        %v1041 = vmax.f32 %v1033, 0.0
        %1050 = vrot.lane.b32.xlu0 %v1034, 1
        %v1051 = vpop.permute.xlu0 %1050
        %1052 = vrot.lane.b32.xlu0 %v1035, 1
        %v1053 = vpop.permute.xlu0 %1052
        %1054 = vrot.lane.b32.xlu0 %v1036, 1
        %v1055 = vpop.permute.xlu0 %1054
        %1056 = vrot.lane.b32.xlu0 %v1037, 1
        %v1057 = vpop.permute.xlu0 %1056
        %1058 = vrot.lane.b32.xlu0 %v1038, 1
        %v1059 = vpop.permute.xlu0 %1058
        %1060 = vrot.lane.b32.xlu0 %v1039, 1
        %v1061 = vpop.permute.xlu0 %1060
        %1062 = vrot.lane.b32.xlu0 %v1040, 1
        %v1063 = vpop.permute.xlu0 %1062
        %1064 = vrot.lane.b32.xlu0 %v1041, 1
        %v1065 = vpop.permute.xlu0 %1064
        %v1066 = vsel %vm735, %v1051, %v1053
        %v1067 = vsel %vm735, %v1055, %v1057
        %v1068 = vsel %vm735, %v1059, %v1061
        %v1069 = vsel %vm735, %v1063, %v1065
        %1082 = vst.msk [vmem:[#allocation3] sm:$0xff] %vm744, %v1051
        %1083 = vst [vmem:[#allocation3 + $0x8] sm:$0xff] %v1066
        %1084 = vst.msk [vmem:[#allocation3 + $0x10] sm:$0xff] %vm735, %v1053
        %1085 = vst.msk [vmem:[#allocation3 + $0x18] sm:$0xff] %vm744, %v1055
        %1086 = vst [vmem:[#allocation3 + $0x20] sm:$0xff] %v1067
        %1087 = vst.msk [vmem:[#allocation3 + $0x28] sm:$0xff] %vm735, %v1057
        %1088 = vst.msk [vmem:[#allocation3 + $0x30] sm:$0xff] %vm744, %v1059
        %1089 = vst [vmem:[#allocation3 + $0x38] sm:$0xff] %v1068
        %1090 = vst.msk [vmem:[#allocation3 + $0x40] sm:$0xff] %vm735, %v1061
        %1091 = vst.msk [vmem:[#allocation3 + $0x48] sm:$0xff] %vm744, %v1063
        %1092 = vst [vmem:[#allocation3 + $0x50] sm:$0xff] %v1069
        %1093 = vst.msk [vmem:[#allocation3 + $0x58] sm:$0xff] %vm735, %v1065
        %v1094 = vld [vmem:[#allocation3] sm:$0xff]
        %v1095 = vld [vmem:[#allocation3 + $0x8] sm:$0xff]
        %v1096 = vld [vmem:[#allocation3 + $0x18] sm:$0xff]
        %v1097 = vld [vmem:[#allocation3 + $0x20] sm:$0xff]
        %v1098 = vld [vmem:[#allocation3 + $0x30] sm:$0xff]
        %v1099 = vld [vmem:[#allocation3 + $0x38] sm:$0xff]
        %v1100 = vld [vmem:[#allocation3 + $0x48] sm:$0xff]
        %v1101 = vld [vmem:[#allocation3 + $0x50] sm:$0xff]
        %vm1102 = vcmask 261120
        %v1104 = vsel %vm1102, %v591, 0
        %v1107 = vsel %vm1102, %v592, 0
        %v1110 = vsel %vm1102, %v593, 0
        %v1113 = vsel %vm1102, %v594, 0
        %1115 = vmatpush.msra.mxu0 0.0
        %1116 = vmatpush.msra.mxu0 0.0
        %1117 = vmatpush.msra.mxu0 0.0
        %1118 = vmatpush.msra.mxu0 0.0
        %1119 = vmatpush.msra.mxu0 0.0
        %1120 = vmatpush.msra.mxu0 0.0
        %1121 = vmatpush.msra.mxu0 0.0
        %1122 = vmatpush.msra.mxu0 0.0
        %1123 = vmatpush.msra.mxu0 0.0
        %1124 = vmatpush.msra.mxu0 0.0
        %1125 = vmatpush.msra.mxu0 0.0
        %1126 = vmatpush.msra.mxu0 0.0
        %1127 = vmatpush.msra.mxu0 %v1100
        %1128 = vmatpush.msra.mxu0 %v1098
        %1129 = vmatpush.msra.mxu0 %v1096
        %1130 = vmatpush.msra.mxu0 %v1094
        %1131 = vmatmul.f32.gmra.mxu0 %v1104
        %v1132 = vpop.f32.mrf.mxu0
        %v1133 = vadd.f32 0.0, %v1132
        %1134 = vmatmul.f32.gmra.mxu0 %v1107
        %v1135 = vpop.f32.mrf.mxu0
        %v1136 = vadd.f32 0.0, %v1135
        %1137 = vmatmul.f32.gmra.mxu0 %v1110
        %v1138 = vpop.f32.mrf.mxu0
        %v1139 = vadd.f32 0.0, %v1138
        %1140 = vmatmul.f32.gmra.mxu0 %v1113
        %v1141 = vpop.f32.mrf.mxu0
        %v1142 = vadd.f32 0.0, %v1141
        %1143 = vdwg.mxu0
        %1144 = vmatpush.msra.mxu0 0.0
        %1145 = vmatpush.msra.mxu0 0.0
        %1146 = vmatpush.msra.mxu0 0.0
        %1147 = vmatpush.msra.mxu0 0.0
        %1148 = vmatpush.msra.mxu0 0.0
        %1149 = vmatpush.msra.mxu0 0.0
        %1150 = vmatpush.msra.mxu0 0.0
        %1151 = vmatpush.msra.mxu0 0.0
        %1152 = vmatpush.msra.mxu0 0.0
        %1153 = vmatpush.msra.mxu0 0.0
        %1154 = vmatpush.msra.mxu0 0.0
        %1155 = vmatpush.msra.mxu0 0.0
        %1156 = vmatpush.msra.mxu0 %v1101
        %1157 = vmatpush.msra.mxu0 %v1099
        %1158 = vmatpush.msra.mxu0 %v1097
        %1159 = vmatpush.msra.mxu0 %v1095
        %1160 = vmatmul.f32.gmra.mxu0 %v1104
        %v1161 = vpop.f32.mrf.mxu0
        %v1162 = vadd.f32 0.0, %v1161
        %1163 = vmatmul.f32.gmra.mxu0 %v1107
        %v1164 = vpop.f32.mrf.mxu0
        %v1165 = vadd.f32 0.0, %v1164
        %1166 = vmatmul.f32.gmra.mxu0 %v1110
        %v1167 = vpop.f32.mrf.mxu0
        %v1168 = vadd.f32 0.0, %v1167
        %1169 = vmatmul.f32.gmra.mxu0 %v1113
        %v1170 = vpop.f32.mrf.mxu0
        %v1171 = vadd.f32 0.0, %v1170
        %1172 = vdwg.mxu0
        %v1174 = vsel %vm1102, %v595, 0
        %v1177 = vsel %vm1102, %v596, 0
        %v1180 = vsel %vm1102, %v597, 0
        %v1183 = vsel %vm1102, %v598, 0
        %1185 = vmatpush.msra.mxu0 0.0
        %1186 = vmatpush.msra.mxu0 0.0
        %1187 = vmatpush.msra.mxu0 0.0
        %1188 = vmatpush.msra.mxu0 0.0
        %1189 = vmatpush.msra.mxu0 0.0
        %1190 = vmatpush.msra.mxu0 0.0
        %1191 = vmatpush.msra.mxu0 0.0
        %1192 = vmatpush.msra.mxu0 0.0
        %1193 = vmatpush.msra.mxu0 0.0
        %1194 = vmatpush.msra.mxu0 0.0
        %1195 = vmatpush.msra.mxu0 0.0
        %1196 = vmatpush.msra.mxu0 0.0
        %1197 = vmatpush.msra.mxu0 %v1040
        %1198 = vmatpush.msra.mxu0 %v1038
        %1199 = vmatpush.msra.mxu0 %v1036
        %1200 = vmatpush.msra.mxu0 %v1034
        %1201 = vmatmul.f32.gmra.mxu0 %v1174
        %v1202 = vpop.f32.mrf.mxu0
        %v1203 = vadd.f32 %v1133, %v1202
        %1204 = vmatmul.f32.gmra.mxu0 %v1177
        %v1205 = vpop.f32.mrf.mxu0
        %v1206 = vadd.f32 %v1136, %v1205
        %1207 = vmatmul.f32.gmra.mxu0 %v1180
        %v1208 = vpop.f32.mrf.mxu0
        %v1209 = vadd.f32 %v1139, %v1208
        %1210 = vmatmul.f32.gmra.mxu0 %v1183
        %v1211 = vpop.f32.mrf.mxu0
        %v1212 = vadd.f32 %v1142, %v1211
        %1213 = vdwg.mxu0
        %1214 = vmatpush.msra.mxu0 0.0
        %1215 = vmatpush.msra.mxu0 0.0
        %1216 = vmatpush.msra.mxu0 0.0
        %1217 = vmatpush.msra.mxu0 0.0
        %1218 = vmatpush.msra.mxu0 0.0
        %1219 = vmatpush.msra.mxu0 0.0
        %1220 = vmatpush.msra.mxu0 0.0
        %1221 = vmatpush.msra.mxu0 0.0
        %1222 = vmatpush.msra.mxu0 0.0
        %1223 = vmatpush.msra.mxu0 0.0
        %1224 = vmatpush.msra.mxu0 0.0
        %1225 = vmatpush.msra.mxu0 0.0
        %1226 = vmatpush.msra.mxu0 %v1041
        %1227 = vmatpush.msra.mxu0 %v1039
        %1228 = vmatpush.msra.mxu0 %v1037
        %1229 = vmatpush.msra.mxu0 %v1035
        %1230 = vmatmul.f32.gmra.mxu0 %v1174
        %v1231 = vpop.f32.mrf.mxu0
        %v1232 = vadd.f32 %v1162, %v1231
        %1233 = vmatmul.f32.gmra.mxu0 %v1177
        %v1234 = vpop.f32.mrf.mxu0
        %v1235 = vadd.f32 %v1165, %v1234
        %1236 = vmatmul.f32.gmra.mxu0 %v1180
        %v1237 = vpop.f32.mrf.mxu0
        %v1238 = vadd.f32 %v1168, %v1237
        %1239 = vmatmul.f32.gmra.mxu0 %v1183
        %v1240 = vpop.f32.mrf.mxu0
        %v1241 = vadd.f32 %v1171, %v1240
        %1242 = vdwg.mxu0
        %v1243 = vld [vmem:[#allocation3] sm:$0xff]
        %v1244 = vld [vmem:[#allocation3 + $0x8] sm:$0xff]
        %v1245 = vld [vmem:[#allocation3 + $0x10] sm:$0xff]
        %v1246 = vld [vmem:[#allocation3 + $0x18] sm:$0xff]
        %v1247 = vld [vmem:[#allocation3 + $0x20] sm:$0xff]
        %v1248 = vld [vmem:[#allocation3 + $0x28] sm:$0xff]
        %v1249 = vld [vmem:[#allocation3 + $0x30] sm:$0xff]
        %v1250 = vld [vmem:[#allocation3 + $0x38] sm:$0xff]
        %v1251 = vld [vmem:[#allocation3 + $0x40] sm:$0xff]
        %v1252 = vld [vmem:[#allocation3 + $0x48] sm:$0xff]
        %v1253 = vld [vmem:[#allocation3 + $0x50] sm:$0xff]
        %v1254 = vld [vmem:[#allocation3 + $0x58] sm:$0xff]
        %1267 = vrot.lane.b32.xlu0 %v1243, 126
        %v1268 = vpop.permute.xlu0 %1267
        %1269 = vrot.lane.b32.xlu0 %v1244, 126
        %v1270 = vpop.permute.xlu0 %1269
        %1271 = vrot.lane.b32.xlu0 %v1245, 126
        %v1272 = vpop.permute.xlu0 %1271
        %1273 = vrot.lane.b32.xlu0 %v1246, 126
        %v1274 = vpop.permute.xlu0 %1273
        %1275 = vrot.lane.b32.xlu0 %v1247, 126
        %v1276 = vpop.permute.xlu0 %1275
        %1277 = vrot.lane.b32.xlu0 %v1248, 126
        %v1278 = vpop.permute.xlu0 %1277
        %1279 = vrot.lane.b32.xlu0 %v1249, 126
        %v1280 = vpop.permute.xlu0 %1279
        %1281 = vrot.lane.b32.xlu0 %v1250, 126
        %v1282 = vpop.permute.xlu0 %1281
        %1283 = vrot.lane.b32.xlu0 %v1251, 126
        %v1284 = vpop.permute.xlu0 %1283
        %1285 = vrot.lane.b32.xlu0 %v1252, 126
        %v1286 = vpop.permute.xlu0 %1285
        %1287 = vrot.lane.b32.xlu0 %v1253, 126
        %v1288 = vpop.permute.xlu0 %1287
        %1289 = vrot.lane.b32.xlu0 %v1254, 126
        %v1290 = vpop.permute.xlu0 %1289
        %v1291 = vsel %vm919, %v1268, %v1270
        %v1292 = vsel %vm919, %v1270, %v1272
        %v1293 = vsel %vm919, %v1274, %v1276
        %v1294 = vsel %vm919, %v1276, %v1278
        %v1295 = vsel %vm919, %v1280, %v1282
        %v1296 = vsel %vm919, %v1282, %v1284
        %v1297 = vsel %vm919, %v1286, %v1288
        %v1298 = vsel %vm919, %v1288, %v1290
        %v1308 = vsel %vm1102, %v599, 0
        %v1311 = vsel %vm1102, %v600, 0
        %v1314 = vsel %vm1102, %v601, 0
        %v1317 = vsel %vm1102, %v602, 0
        %1319 = vmatpush.msra.mxu0 0.0
        %1320 = vmatpush.msra.mxu0 0.0
        %1321 = vmatpush.msra.mxu0 0.0
        %1322 = vmatpush.msra.mxu0 0.0
        %1323 = vmatpush.msra.mxu0 0.0
        %1324 = vmatpush.msra.mxu0 0.0
        %1325 = vmatpush.msra.mxu0 0.0
        %1326 = vmatpush.msra.mxu0 0.0
        %1327 = vmatpush.msra.mxu0 0.0
        %1328 = vmatpush.msra.mxu0 0.0
        %1329 = vmatpush.msra.mxu0 0.0
        %1330 = vmatpush.msra.mxu0 0.0
        %1331 = vmatpush.msra.mxu0 %v1297
        %1332 = vmatpush.msra.mxu0 %v1295
        %1333 = vmatpush.msra.mxu0 %v1293
        %1334 = vmatpush.msra.mxu0 %v1291
        %1335 = vmatmul.f32.gmra.mxu0 %v1308
        %v1336 = vpop.f32.mrf.mxu0
        %v1337 = vadd.f32 0.0, %v1336
        %1338 = vmatmul.f32.gmra.mxu0 %v1311
        %v1339 = vpop.f32.mrf.mxu0
        %v1340 = vadd.f32 0.0, %v1339
        %1341 = vmatmul.f32.gmra.mxu0 %v1314
        %v1342 = vpop.f32.mrf.mxu0
        %v1343 = vadd.f32 0.0, %v1342
        %1344 = vmatmul.f32.gmra.mxu0 %v1317
        %v1345 = vpop.f32.mrf.mxu0
        %v1346 = vadd.f32 0.0, %v1345
        %1347 = vdwg.mxu0
        %1348 = vmatpush.msra.mxu0 0.0
        %1349 = vmatpush.msra.mxu0 0.0
        %1350 = vmatpush.msra.mxu0 0.0
        %1351 = vmatpush.msra.mxu0 0.0
        %1352 = vmatpush.msra.mxu0 0.0
        %1353 = vmatpush.msra.mxu0 0.0
        %1354 = vmatpush.msra.mxu0 0.0
        %1355 = vmatpush.msra.mxu0 0.0
        %1356 = vmatpush.msra.mxu0 0.0
        %1357 = vmatpush.msra.mxu0 0.0
        %1358 = vmatpush.msra.mxu0 0.0
        %1359 = vmatpush.msra.mxu0 0.0
        %1360 = vmatpush.msra.mxu0 %v1298
        %1361 = vmatpush.msra.mxu0 %v1296
        %1362 = vmatpush.msra.mxu0 %v1294
        %1363 = vmatpush.msra.mxu0 %v1292
        %1364 = vmatmul.f32.gmra.mxu0 %v1308
        %v1365 = vpop.f32.mrf.mxu0
        %v1366 = vadd.f32 0.0, %v1365
        %1367 = vmatmul.f32.gmra.mxu0 %v1311
        %v1368 = vpop.f32.mrf.mxu0
        %v1369 = vadd.f32 0.0, %v1368
        %1370 = vmatmul.f32.gmra.mxu0 %v1314
        %v1371 = vpop.f32.mrf.mxu0
        %v1372 = vadd.f32 0.0, %v1371
        %1373 = vmatmul.f32.gmra.mxu0 %v1317
        %v1374 = vpop.f32.mrf.mxu0
        %v1375 = vadd.f32 0.0, %v1374
        %1376 = vdwg.mxu0
        %v1377 = vadd.f32 %v1203, %v1337
        %v1378 = vadd.f32 %v1232, %v1366
        %v1379 = vadd.f32 %v1206, %v1340
        %v1380 = vadd.f32 %v1235, %v1369
        %v1381 = vadd.f32 %v1209, %v1343
        %v1382 = vadd.f32 %v1238, %v1372
        %v1383 = vadd.f32 %v1212, %v1346
        %v1384 = vadd.f32 %v1241, %v1375
        %1386 = vset.pattern.permute.xlu0 0
        %1387 = vperm.xlu0 %1386, %v603
        %v1388 = vpop.permute.xlu0 %1387
        %1391 = vset.pattern.permute.xlu0 0
        %1392 = vperm.xlu0 %1391, %v604
        %v1393 = vpop.permute.xlu0 %1392
        %1396 = vset.pattern.permute.xlu0 0
        %1397 = vperm.xlu0 %1396, %v605
        %v1398 = vpop.permute.xlu0 %1397
        %1401 = vset.pattern.permute.xlu0 0
        %1402 = vperm.xlu0 %1401, %v606
        %v1403 = vpop.permute.xlu0 %1402
        %v1405 = vadd.f32 %v1377, %v1388
        %v1406 = vadd.f32 %v1378, %v1388
        %v1407 = vadd.f32 %v1379, %v1393
        %v1408 = vadd.f32 %v1380, %v1393
        %v1409 = vadd.f32 %v1381, %v1398
        %v1410 = vadd.f32 %v1382, %v1398
        %v1411 = vadd.f32 %v1383, %v1403
        %v1412 = vadd.f32 %v1384, %v1403
        %v1413 = vmax.f32 %v1405, 0.0
        %v1414 = vmax.f32 %v1406, 0.0
        %v1415 = vmax.f32 %v1407, 0.0
        %v1416 = vmax.f32 %v1408, 0.0
        %v1417 = vmax.f32 %v1409, 0.0
        %v1418 = vmax.f32 %v1410, 0.0
        %v1419 = vmax.f32 %v1411, 0.0
        %v1420 = vmax.f32 %v1412, 0.0
        %v1421 = vadd.f32 %v1413, %v1414
        %1422 = vadd.xlane.f32.xlu0 %v1421
        %v1423 = vpop.xlane.xlu0 %1422
        %v1424 = vadd.f32 %v1415, %v1416
        %1425 = vadd.xlane.f32.xlu0 %v1424
        %v1426 = vpop.xlane.xlu0 %1425
        %v1427 = vadd.f32 %v1417, %v1418
        %1428 = vadd.xlane.f32.xlu0 %v1427
        %v1429 = vpop.xlane.xlu0 %1428
        %v1430 = vadd.f32 %v1419, %v1420
        %1431 = vadd.xlane.f32.xlu0 %v1430
        %v1432 = vpop.xlane.xlu0 %1431
        %v1433 = vrcp.pop 256.0
        %v1434 = vmul.f32 256.0, %v1433
        %v1435 = vsub.f32 1.0, %v1434
        %v1436 = vmul.f32 %v1433, %v1435
        %v1437 = vadd.f32 %v1433, %v1436
        %vm1438 = vweird.f32 %v1433
        %v1439 = vsel %vm1438, %v1433, %v1437
        %v1440 = vmul.f32 %v1423, %v1439
        %v1441 = vmul.f32 %v1426, %v1439
        %v1442 = vmul.f32 %v1429, %v1439
        %v1443 = vmul.f32 %v1432, %v1439
        %v1444 = vmul.f32 %v615, %v1440
        %v1445 = vmul.f32 %v616, %v1441
        %v1446 = vmul.f32 %v617, %v1442
        %v1447 = vmul.f32 %v618, %v1443
        %vm1448 = vcmask 31744
        %v1449 = vsel %vm1448, %v1444, 0.0
        %v1450 = vsel %vm1448, %v1445, 0.0
        %v1451 = vadd.f32 %v1449, %v1450
        %v1452 = vsel %vm1448, %v1446, 0.0
        %v1453 = vadd.f32 %v1451, %v1452
        %v1454 = vsel %vm1448, %v1447, 0.0
        %v1455 = vadd.f32 %v1453, %v1454
        %v1456 = vrot.slane %v1455, 4
        %v1457 = vadd.f32 %v1455, %v1456
        %v1458 = vrot.slane %v1457, 2
        %v1459 = vadd.f32 %v1457, %v1458
        %v1460 = vrot.slane %v1459, 1
        %v1461 = vadd.f32 %v1459, %v1460
        %v1462 = vadd.f32 %v1461, %v619
        %v1463 = vmax.f32 %v1462, 0.0
        %v1464 = vperm.slane %v1463, 0
        %v1465 = vmul.f32 %v620, %v1464
        %v1466 = vmul.f32 %v621, %v1464
        %v1467 = vmul.f32 %v622, %v1464
        %v1468 = vmul.f32 %v623, %v1464
        %v1469 = vsel %vm1448, %v1465, 0.0
        %1470 = vadd.xlane.f32.xlu0 %v1469
        %v1471 = vpop.xlane.xlu0 %1470
        %v1472 = vsel %vm1448, %v1466, 0.0
        %1473 = vadd.xlane.f32.xlu0 %v1472
        %v1474 = vpop.xlane.xlu0 %1473
        %v1475 = vsel %vm1448, %v1467, 0.0
        %1476 = vadd.xlane.f32.xlu0 %v1475
        %v1477 = vpop.xlane.xlu0 %1476
        %v1478 = vsel %vm1448, %v1468, 0.0
        %1479 = vadd.xlane.f32.xlu0 %v1478
        %v1480 = vpop.xlane.xlu0 %1479
        %v1481 = vadd.f32 %v1471, %v624
        %v1482 = vadd.f32 %v1474, %v625
        %v1483 = vadd.f32 %v1477, %v626
        %v1484 = vadd.f32 %v1480, %v627
        %v1485 = vxor.u32 %v1481, 2147483648
        %v1486 = vxor.u32 %v1482, 2147483648
        %v1487 = vxor.u32 %v1483, 2147483648
        %v1488 = vxor.u32 %v1484, 2147483648
        %v1489 = vmul.f32 %v1485, 1.442695
        %v1490 = vpow.pop %v1489
        %v1491 = vmul.f32 %v1486, 1.442695
        %v1492 = vpow.pop %v1491
        %v1493 = vmul.f32 %v1487, 1.442695
        %v1494 = vpow.pop %v1493
        %v1495 = vmul.f32 %v1488, 1.442695
        %v1496 = vpow.pop %v1495
        %v1497 = vadd.f32 %v1490, 1.0
        %v1498 = vadd.f32 %v1492, 1.0
        %v1499 = vadd.f32 %v1494, 1.0
        %v1500 = vadd.f32 %v1496, 1.0
        %v1501 = vrcp.pop %v1497
        %v1502 = vmul.f32 %v1497, %v1501
        %v1503 = vsub.f32 1.0, %v1502
        %v1504 = vmul.f32 %v1501, %v1503
        %v1505 = vadd.f32 %v1501, %v1504
        %vm1506 = vweird.f32 %v1497
        %vm1507 = vweird.f32 %v1501
        %vm1508 = vmor %vm1506, %vm1507
        %v1509 = vsel %vm1508, %v1501, %v1505
        %v1510 = vand.u32 2147483647, %v1497
        %vm1511 = vcmp.eq.f32.partialorder %v1510, 8.507059e+37
        %v1512 = vand.u32 %v1497, 2147483648
        %v1513 = vor.u32 1.1754944e-38, %v1512
        %v1514 = vsel %vm1511, %v1513, %v1509
        %v1515 = vmul.f32 1.0, %v1514
        %v1516 = vrcp.pop %v1498
        %v1517 = vmul.f32 %v1498, %v1516
        %v1518 = vsub.f32 1.0, %v1517
        %v1519 = vmul.f32 %v1516, %v1518
        %v1520 = vadd.f32 %v1516, %v1519
        %vm1521 = vweird.f32 %v1498
        %vm1522 = vweird.f32 %v1516
        %vm1523 = vmor %vm1521, %vm1522
        %v1524 = vsel %vm1523, %v1516, %v1520
        %v1525 = vand.u32 2147483647, %v1498
        %vm1526 = vcmp.eq.f32.partialorder %v1525, 8.507059e+37
        %v1527 = vand.u32 %v1498, 2147483648
        %v1528 = vor.u32 1.1754944e-38, %v1527
        %v1529 = vsel %vm1526, %v1528, %v1524
        %v1530 = vmul.f32 1.0, %v1529
        %v1531 = vrcp.pop %v1499
        %v1532 = vmul.f32 %v1499, %v1531
        %v1533 = vsub.f32 1.0, %v1532
        %v1534 = vmul.f32 %v1531, %v1533
        %v1535 = vadd.f32 %v1531, %v1534
        %vm1536 = vweird.f32 %v1499
        %vm1537 = vweird.f32 %v1531
        %vm1538 = vmor %vm1536, %vm1537
        %v1539 = vsel %vm1538, %v1531, %v1535
        %v1540 = vand.u32 2147483647, %v1499
        %vm1541 = vcmp.eq.f32.partialorder %v1540, 8.507059e+37
        %v1542 = vand.u32 %v1499, 2147483648
        %v1543 = vor.u32 1.1754944e-38, %v1542
        %v1544 = vsel %vm1541, %v1543, %v1539
        %v1545 = vmul.f32 1.0, %v1544
        %v1546 = vrcp.pop %v1500
        %v1547 = vmul.f32 %v1500, %v1546
        %v1548 = vsub.f32 1.0, %v1547
        %v1549 = vmul.f32 %v1546, %v1548
        %v1550 = vadd.f32 %v1546, %v1549
        %vm1551 = vweird.f32 %v1500
        %vm1552 = vweird.f32 %v1546
        %vm1553 = vmor %vm1551, %vm1552
        %v1554 = vsel %vm1553, %v1546, %v1550
        %v1555 = vand.u32 2147483647, %v1500
        %vm1556 = vcmp.eq.f32.partialorder %v1555, 8.507059e+37
        %v1557 = vand.u32 %v1500, 2147483648
        %v1558 = vor.u32 1.1754944e-38, %v1557
        %v1559 = vsel %vm1556, %v1558, %v1554
        %v1560 = vmul.f32 1.0, %v1559
        %1562 = vset.pattern.permute.xlu0 0
        %1563 = vperm.xlu0 %1562, %v1515
        %v1564 = vpop.permute.xlu0 %1563
        %1567 = vset.pattern.permute.xlu0 0
        %1568 = vperm.xlu0 %1567, %v1530
        %v1569 = vpop.permute.xlu0 %1568
        %1572 = vset.pattern.permute.xlu0 0
        %1573 = vperm.xlu0 %1572, %v1545
        %v1574 = vpop.permute.xlu0 %1573
        %1577 = vset.pattern.permute.xlu0 0
        %1578 = vperm.xlu0 %1577, %v1560
        %v1579 = vpop.permute.xlu0 %1578
        %v1581 = vmul.f32 %v1413, %v1564
        %v1582 = vmul.f32 %v1414, %v1564
        %v1583 = vmul.f32 %v1415, %v1569
        %v1584 = vmul.f32 %v1416, %v1569
        %v1585 = vmul.f32 %v1417, %v1574
        %v1586 = vmul.f32 %v1418, %v1574
        %v1587 = vmul.f32 %v1419, %v1579
        %v1588 = vmul.f32 %v1420, %v1579
        %v1589 = vadd.f32 %v1581, %v683
        %v1590 = vadd.f32 %v1582, %v712
        %v1591 = vadd.f32 %v1583, %v686
        %v1592 = vadd.f32 %v1584, %v715
        %v1593 = vadd.f32 %v1585, %v689
        %v1594 = vadd.f32 %v1586, %v718
        %v1595 = vadd.f32 %v1587, %v692
        %v1596 = vadd.f32 %v1588, %v721
        %v1597 = vmax.f32 %v1589, 0.0
        %v1598 = vmax.f32 %v1590, 0.0
        %v1599 = vmax.f32 %v1591, 0.0
        %v1600 = vmax.f32 %v1592, 0.0
        %v1601 = vmax.f32 %v1593, 0.0
        %v1602 = vmax.f32 %v1594, 0.0
        %v1603 = vmax.f32 %v1595, 0.0
        %v1604 = vmax.f32 %v1596, 0.0
        %1605 = vmatpush.msra.mxu0 %v493
        %1606 = vmatpush.msra.mxu0 %v492
        %1607 = vmatpush.msra.mxu0 %v491
        %1608 = vmatpush.msra.mxu0 %v490
        %1609 = vmatpush.msra.mxu0 %v489
        %1610 = vmatpush.msra.mxu0 %v488
        %1611 = vmatpush.msra.mxu0 %v487
        %1612 = vmatpush.msra.mxu0 %v486
        %1613 = vmatpush.msra.mxu0 %v485
        %1614 = vmatpush.msra.mxu0 %v484
        %1615 = vmatpush.msra.mxu0 %v483
        %1616 = vmatpush.msra.mxu0 %v482
        %1617 = vmatpush.msra.mxu0 %v481
        %1618 = vmatpush.msra.mxu0 %v480
        %1619 = vmatpush.msra.mxu0 %v479
        %1620 = vmatpush.msra.mxu0 %v478
        %1621 = vmatmul.f32.gmra.mxu0 %v1597
        %v1622 = vpop.f32.mrf.mxu0
        %v1623 = vadd.f32 0.0, %v1622
        %1624 = vmatmul.f32.gmra.mxu0 %v1599
        %v1625 = vpop.f32.mrf.mxu0
        %v1626 = vadd.f32 0.0, %v1625
        %1627 = vmatmul.f32.gmra.mxu0 %v1601
        %v1628 = vpop.f32.mrf.mxu0
        %v1629 = vadd.f32 0.0, %v1628
        %1630 = vmatmul.f32.gmra.mxu0 %v1603
        %v1631 = vpop.f32.mrf.mxu0
        %v1632 = vadd.f32 0.0, %v1631
        %1633 = vdwg.mxu0
        %1634 = vmatpush.msra.mxu0 %v509
        %1635 = vmatpush.msra.mxu0 %v508
        %1636 = vmatpush.msra.mxu0 %v507
        %1637 = vmatpush.msra.mxu0 %v506
        %1638 = vmatpush.msra.mxu0 %v505
        %1639 = vmatpush.msra.mxu0 %v504
        %1640 = vmatpush.msra.mxu0 %v503
        %1641 = vmatpush.msra.mxu0 %v502
        %1642 = vmatpush.msra.mxu0 %v501
        %1643 = vmatpush.msra.mxu0 %v500
        %1644 = vmatpush.msra.mxu0 %v499
        %1645 = vmatpush.msra.mxu0 %v498
        %1646 = vmatpush.msra.mxu0 %v497
        %1647 = vmatpush.msra.mxu0 %v496
        %1648 = vmatpush.msra.mxu0 %v495
        %1649 = vmatpush.msra.mxu0 %v494
        %1650 = vmatmul.f32.gmra.mxu0 %v1598
        %v1651 = vpop.f32.mrf.mxu0
        %v1652 = vadd.f32 %v1623, %v1651
        %1653 = vmatmul.f32.gmra.mxu0 %v1600
        %v1654 = vpop.f32.mrf.mxu0
        %v1655 = vadd.f32 %v1626, %v1654
        %1656 = vmatmul.f32.gmra.mxu0 %v1602
        %v1657 = vpop.f32.mrf.mxu0
        %v1658 = vadd.f32 %v1629, %v1657
        %1659 = vmatmul.f32.gmra.mxu0 %v1604
        %v1660 = vpop.f32.mrf.mxu0
        %v1661 = vadd.f32 %v1632, %v1660
        %1662 = vdwg.mxu0
        %1663 = vmatpush.msra.mxu0 %v558
        %1664 = vmatpush.msra.mxu0 %v557
        %1665 = vmatpush.msra.mxu0 %v556
        %1666 = vmatpush.msra.mxu0 %v555
        %1667 = vmatpush.msra.mxu0 %v554
        %1668 = vmatpush.msra.mxu0 %v553
        %1669 = vmatpush.msra.mxu0 %v552
        %1670 = vmatpush.msra.mxu0 %v551
        %1671 = vmatpush.msra.mxu0 %v550
        %1672 = vmatpush.msra.mxu0 %v549
        %1673 = vmatpush.msra.mxu0 %v548
        %1674 = vmatpush.msra.mxu0 %v547
        %1675 = vmatpush.msra.mxu0 %v546
        %1676 = vmatpush.msra.mxu0 %v545
        %1677 = vmatpush.msra.mxu0 %v544
        %1678 = vmatpush.msra.mxu0 %v543
        %1679 = vmatmul.f32.gmra.mxu0 %v1597
        %v1680 = vpop.f32.mrf.mxu0
        %v1681 = vadd.f32 0.0, %v1680
        %1682 = vmatmul.f32.gmra.mxu0 %v1599
        %v1683 = vpop.f32.mrf.mxu0
        %v1684 = vadd.f32 0.0, %v1683
        %1685 = vmatmul.f32.gmra.mxu0 %v1601
        %v1686 = vpop.f32.mrf.mxu0
        %v1687 = vadd.f32 0.0, %v1686
        %1688 = vmatmul.f32.gmra.mxu0 %v1603
        %v1689 = vpop.f32.mrf.mxu0
        %v1690 = vadd.f32 0.0, %v1689
        %1691 = vdwg.mxu0
        %1692 = vmatpush.msra.mxu0 %v574
        %1693 = vmatpush.msra.mxu0 %v573
        %1694 = vmatpush.msra.mxu0 %v572
        %1695 = vmatpush.msra.mxu0 %v571
        %1696 = vmatpush.msra.mxu0 %v570
        %1697 = vmatpush.msra.mxu0 %v569
        %1698 = vmatpush.msra.mxu0 %v568
        %1699 = vmatpush.msra.mxu0 %v567
        %1700 = vmatpush.msra.mxu0 %v566
        %1701 = vmatpush.msra.mxu0 %v565
        %1702 = vmatpush.msra.mxu0 %v564
        %1703 = vmatpush.msra.mxu0 %v563
        %1704 = vmatpush.msra.mxu0 %v562
        %1705 = vmatpush.msra.mxu0 %v561
        %1706 = vmatpush.msra.mxu0 %v560
        %1707 = vmatpush.msra.mxu0 %v559
        %1708 = vmatmul.f32.gmra.mxu0 %v1598
        %v1709 = vpop.f32.mrf.mxu0
        %v1710 = vadd.f32 %v1681, %v1709
        %1711 = vmatmul.f32.gmra.mxu0 %v1600
        %v1712 = vpop.f32.mrf.mxu0
        %v1713 = vadd.f32 %v1684, %v1712
        %1714 = vmatmul.f32.gmra.mxu0 %v1602
        %v1715 = vpop.f32.mrf.mxu0
        %v1716 = vadd.f32 %v1687, %v1715
        %1717 = vmatmul.f32.gmra.mxu0 %v1604
        %v1718 = vpop.f32.mrf.mxu0
        %v1719 = vadd.f32 %v1690, %v1718
        %1720 = vdwg.mxu0
        %v1721 = vmax.f32 %v1652, %v1710
        %v1722 = vmax.f32 %v1655, %v1713
        %v1723 = vmax.f32 %v1658, %v1716
        %v1724 = vmax.f32 %v1661, %v1719
        %1725 = vst [vmem:[%s382] sm:$0xff] %v1721
        %1726 = vst [vmem:[%s382 + $0x8] sm:$0xff] %v1722
        %1727 = vst [vmem:[%s382 + $0x10] sm:$0xff] %v1723
        %1728 = vst [vmem:[%s382 + $0x18] sm:$0xff] %v1724
        %s1729 = scalar_lea.vmem %s388, 32
        %v1730 = vld [vmem:[%s1729] sm:$0xff]
        %v1731 = vld [vmem:[%s1729 + $0x8] sm:$0xff]
        %v1732 = vld [vmem:[%s1729 + $0x10] sm:$0xff]
        %v1733 = vld [vmem:[%s1729 + $0x18] sm:$0xff]
        %1734 = vmatpush.msra.mxu0 0.0
        %1735 = vmatpush.msra.mxu0 0.0
        %1736 = vmatpush.msra.mxu0 0.0
        %1737 = vmatpush.msra.mxu0 0.0
        %1738 = vmatpush.msra.mxu0 0.0
        %1739 = vmatpush.msra.mxu0 0.0
        %1740 = vmatpush.msra.mxu0 0.0
        %1741 = vmatpush.msra.mxu0 0.0
        %1742 = vmatpush.msra.mxu0 0.0
        %1743 = vmatpush.msra.mxu0 0.0
        %1744 = vmatpush.msra.mxu0 0.0
        %1745 = vmatpush.msra.mxu0 0.0
        %1746 = vmatpush.msra.mxu0 0.0
        %1747 = vmatpush.msra.mxu0 0.0
        %1748 = vmatpush.msra.mxu0 %v1732
        %1749 = vmatpush.msra.mxu0 %v1730
        %1750 = vmatmul.f32.gmra.mxu0 %v654
        %v1751 = vpop.f32.mrf.mxu0
        %v1752 = vadd.f32 %v635, %v1751
        %1753 = vmatmul.f32.gmra.mxu0 %v657
        %v1754 = vpop.f32.mrf.mxu0
        %v1755 = vadd.f32 %v640, %v1754
        %1756 = vmatmul.f32.gmra.mxu0 %v660
        %v1757 = vpop.f32.mrf.mxu0
        %v1758 = vadd.f32 %v645, %v1757
        %1759 = vmatmul.f32.gmra.mxu0 %v663
        %v1760 = vpop.f32.mrf.mxu0
        %v1761 = vadd.f32 %v650, %v1760
        %1762 = vdwg.mxu0
        %1763 = vmatpush.msra.mxu0 0.0
        %1764 = vmatpush.msra.mxu0 0.0
        %1765 = vmatpush.msra.mxu0 0.0
        %1766 = vmatpush.msra.mxu0 0.0
        %1767 = vmatpush.msra.mxu0 0.0
        %1768 = vmatpush.msra.mxu0 0.0
        %1769 = vmatpush.msra.mxu0 0.0
        %1770 = vmatpush.msra.mxu0 0.0
        %1771 = vmatpush.msra.mxu0 0.0
        %1772 = vmatpush.msra.mxu0 0.0
        %1773 = vmatpush.msra.mxu0 0.0
        %1774 = vmatpush.msra.mxu0 0.0
        %1775 = vmatpush.msra.mxu0 0.0
        %1776 = vmatpush.msra.mxu0 0.0
        %1777 = vmatpush.msra.mxu0 %v1733
        %1778 = vmatpush.msra.mxu0 %v1731
        %1779 = vmatmul.f32.gmra.mxu0 %v654
        %v1780 = vpop.f32.mrf.mxu0
        %v1781 = vadd.f32 %v635, %v1780
        %1782 = vmatmul.f32.gmra.mxu0 %v657
        %v1783 = vpop.f32.mrf.mxu0
        %v1784 = vadd.f32 %v640, %v1783
        %1785 = vmatmul.f32.gmra.mxu0 %v660
        %v1786 = vpop.f32.mrf.mxu0
        %v1787 = vadd.f32 %v645, %v1786
        %1788 = vmatmul.f32.gmra.mxu0 %v663
        %v1789 = vpop.f32.mrf.mxu0
        %v1790 = vadd.f32 %v650, %v1789
        %1791 = vdwg.mxu0
        %1796 = vrot.lane.b32.xlu0 %v1730, 1
        %v1797 = vpop.permute.xlu0 %1796
        %1798 = vrot.lane.b32.xlu0 %v1731, 1
        %v1799 = vpop.permute.xlu0 %1798
        %1800 = vrot.lane.b32.xlu0 %v1732, 1
        %v1801 = vpop.permute.xlu0 %1800
        %1802 = vrot.lane.b32.xlu0 %v1733, 1
        %v1803 = vpop.permute.xlu0 %1802
        %v1804 = vsel %vm735, %v1797, %v1799
        %v1805 = vsel %vm735, %v1801, %v1803
        %1812 = vst.msk [vmem:[#allocation2] sm:$0xff] %vm744, %v1797
        %1813 = vst [vmem:[#allocation2 + $0x8] sm:$0xff] %v1804
        %1814 = vst.msk [vmem:[#allocation2 + $0x10] sm:$0xff] %vm735, %v1799
        %1815 = vst.msk [vmem:[#allocation2 + $0x18] sm:$0xff] %vm744, %v1801
        %1816 = vst [vmem:[#allocation2 + $0x20] sm:$0xff] %v1805
        %1817 = vst.msk [vmem:[#allocation2 + $0x28] sm:$0xff] %vm735, %v1803
        %v1818 = vld [vmem:[#allocation2] sm:$0xff]
        %v1819 = vld [vmem:[#allocation2 + $0x8] sm:$0xff]
        %v1820 = vld [vmem:[#allocation2 + $0x18] sm:$0xff]
        %v1821 = vld [vmem:[#allocation2 + $0x20] sm:$0xff]
        %1822 = vmatpush.msra.mxu0 0.0
        %1823 = vmatpush.msra.mxu0 0.0
        %1824 = vmatpush.msra.mxu0 0.0
        %1825 = vmatpush.msra.mxu0 0.0
        %1826 = vmatpush.msra.mxu0 0.0
        %1827 = vmatpush.msra.mxu0 0.0
        %1828 = vmatpush.msra.mxu0 0.0
        %1829 = vmatpush.msra.mxu0 0.0
        %1830 = vmatpush.msra.mxu0 0.0
        %1831 = vmatpush.msra.mxu0 0.0
        %1832 = vmatpush.msra.mxu0 0.0
        %1833 = vmatpush.msra.mxu0 0.0
        %1834 = vmatpush.msra.mxu0 0.0
        %1835 = vmatpush.msra.mxu0 0.0
        %1836 = vmatpush.msra.mxu0 %v1820
        %1837 = vmatpush.msra.mxu0 %v1818
        %1838 = vmatmul.f32.gmra.mxu0 %v756
        %v1839 = vpop.f32.mrf.mxu0
        %v1840 = vadd.f32 0.0, %v1839
        %1841 = vmatmul.f32.gmra.mxu0 %v759
        %v1842 = vpop.f32.mrf.mxu0
        %v1843 = vadd.f32 0.0, %v1842
        %1844 = vmatmul.f32.gmra.mxu0 %v762
        %v1845 = vpop.f32.mrf.mxu0
        %v1846 = vadd.f32 0.0, %v1845
        %1847 = vmatmul.f32.gmra.mxu0 %v765
        %v1848 = vpop.f32.mrf.mxu0
        %v1849 = vadd.f32 0.0, %v1848
        %1850 = vdwg.mxu0
        %1851 = vmatpush.msra.mxu0 0.0
        %1852 = vmatpush.msra.mxu0 0.0
        %1853 = vmatpush.msra.mxu0 0.0
        %1854 = vmatpush.msra.mxu0 0.0
        %1855 = vmatpush.msra.mxu0 0.0
        %1856 = vmatpush.msra.mxu0 0.0
        %1857 = vmatpush.msra.mxu0 0.0
        %1858 = vmatpush.msra.mxu0 0.0
        %1859 = vmatpush.msra.mxu0 0.0
        %1860 = vmatpush.msra.mxu0 0.0
        %1861 = vmatpush.msra.mxu0 0.0
        %1862 = vmatpush.msra.mxu0 0.0
        %1863 = vmatpush.msra.mxu0 0.0
        %1864 = vmatpush.msra.mxu0 0.0
        %1865 = vmatpush.msra.mxu0 %v1821
        %1866 = vmatpush.msra.mxu0 %v1819
        %1867 = vmatmul.f32.gmra.mxu0 %v756
        %v1868 = vpop.f32.mrf.mxu0
        %v1869 = vadd.f32 0.0, %v1868
        %1870 = vmatmul.f32.gmra.mxu0 %v759
        %v1871 = vpop.f32.mrf.mxu0
        %v1872 = vadd.f32 0.0, %v1871
        %1873 = vmatmul.f32.gmra.mxu0 %v762
        %v1874 = vpop.f32.mrf.mxu0
        %v1875 = vadd.f32 0.0, %v1874
        %1876 = vmatmul.f32.gmra.mxu0 %v765
        %v1877 = vpop.f32.mrf.mxu0
        %v1878 = vadd.f32 0.0, %v1877
        %1879 = vdwg.mxu0
        %1880 = vmatpush.msra.mxu0 0.0
        %1881 = vmatpush.msra.mxu0 0.0
        %1882 = vmatpush.msra.mxu0 0.0
        %1883 = vmatpush.msra.mxu0 0.0
        %1884 = vmatpush.msra.mxu0 0.0
        %1885 = vmatpush.msra.mxu0 0.0
        %1886 = vmatpush.msra.mxu0 0.0
        %1887 = vmatpush.msra.mxu0 0.0
        %1888 = vmatpush.msra.mxu0 0.0
        %1889 = vmatpush.msra.mxu0 0.0
        %1890 = vmatpush.msra.mxu0 0.0
        %1891 = vmatpush.msra.mxu0 0.0
        %1892 = vmatpush.msra.mxu0 0.0
        %1893 = vmatpush.msra.mxu0 0.0
        %1894 = vmatpush.msra.mxu0 %v1732
        %1895 = vmatpush.msra.mxu0 %v1730
        %1896 = vmatmul.f32.gmra.mxu0 %v826
        %v1897 = vpop.f32.mrf.mxu0
        %v1898 = vadd.f32 %v1840, %v1897
        %1899 = vmatmul.f32.gmra.mxu0 %v829
        %v1900 = vpop.f32.mrf.mxu0
        %v1901 = vadd.f32 %v1843, %v1900
        %1902 = vmatmul.f32.gmra.mxu0 %v832
        %v1903 = vpop.f32.mrf.mxu0
        %v1904 = vadd.f32 %v1846, %v1903
        %1905 = vmatmul.f32.gmra.mxu0 %v835
        %v1906 = vpop.f32.mrf.mxu0
        %v1907 = vadd.f32 %v1849, %v1906
        %1908 = vdwg.mxu0
        %1909 = vmatpush.msra.mxu0 0.0
        %1910 = vmatpush.msra.mxu0 0.0
        %1911 = vmatpush.msra.mxu0 0.0
        %1912 = vmatpush.msra.mxu0 0.0
        %1913 = vmatpush.msra.mxu0 0.0
        %1914 = vmatpush.msra.mxu0 0.0
        %1915 = vmatpush.msra.mxu0 0.0
        %1916 = vmatpush.msra.mxu0 0.0
        %1917 = vmatpush.msra.mxu0 0.0
        %1918 = vmatpush.msra.mxu0 0.0
        %1919 = vmatpush.msra.mxu0 0.0
        %1920 = vmatpush.msra.mxu0 0.0
        %1921 = vmatpush.msra.mxu0 0.0
        %1922 = vmatpush.msra.mxu0 0.0
        %1923 = vmatpush.msra.mxu0 %v1733
        %1924 = vmatpush.msra.mxu0 %v1731
        %1925 = vmatmul.f32.gmra.mxu0 %v826
        %v1926 = vpop.f32.mrf.mxu0
        %v1927 = vadd.f32 %v1869, %v1926
        %1928 = vmatmul.f32.gmra.mxu0 %v829
        %v1929 = vpop.f32.mrf.mxu0
        %v1930 = vadd.f32 %v1872, %v1929
        %1931 = vmatmul.f32.gmra.mxu0 %v832
        %v1932 = vpop.f32.mrf.mxu0
        %v1933 = vadd.f32 %v1875, %v1932
        %1934 = vmatmul.f32.gmra.mxu0 %v835
        %v1935 = vpop.f32.mrf.mxu0
        %v1936 = vadd.f32 %v1878, %v1935
        %1937 = vdwg.mxu0
        %v1938 = vld [vmem:[#allocation2] sm:$0xff]
        %v1939 = vld [vmem:[#allocation2 + $0x8] sm:$0xff]
        %v1940 = vld [vmem:[#allocation2 + $0x10] sm:$0xff]
        %v1941 = vld [vmem:[#allocation2 + $0x18] sm:$0xff]
        %v1942 = vld [vmem:[#allocation2 + $0x20] sm:$0xff]
        %v1943 = vld [vmem:[#allocation2 + $0x28] sm:$0xff]
        %1950 = vrot.lane.b32.xlu0 %v1938, 126
        %v1951 = vpop.permute.xlu0 %1950
        %1952 = vrot.lane.b32.xlu0 %v1939, 126
        %v1953 = vpop.permute.xlu0 %1952
        %1954 = vrot.lane.b32.xlu0 %v1940, 126
        %v1955 = vpop.permute.xlu0 %1954
        %1956 = vrot.lane.b32.xlu0 %v1941, 126
        %v1957 = vpop.permute.xlu0 %1956
        %1958 = vrot.lane.b32.xlu0 %v1942, 126
        %v1959 = vpop.permute.xlu0 %1958
        %1960 = vrot.lane.b32.xlu0 %v1943, 126
        %v1961 = vpop.permute.xlu0 %1960
        %v1962 = vsel %vm919, %v1951, %v1953
        %v1963 = vsel %vm919, %v1953, %v1955
        %v1964 = vsel %vm919, %v1957, %v1959
        %v1965 = vsel %vm919, %v1959, %v1961
        %1970 = vmatpush.msra.mxu0 0.0
        %1971 = vmatpush.msra.mxu0 0.0
        %1972 = vmatpush.msra.mxu0 0.0
        %1973 = vmatpush.msra.mxu0 0.0
        %1974 = vmatpush.msra.mxu0 0.0
        %1975 = vmatpush.msra.mxu0 0.0
        %1976 = vmatpush.msra.mxu0 0.0
        %1977 = vmatpush.msra.mxu0 0.0
        %1978 = vmatpush.msra.mxu0 0.0
        %1979 = vmatpush.msra.mxu0 0.0
        %1980 = vmatpush.msra.mxu0 0.0
        %1981 = vmatpush.msra.mxu0 0.0
        %1982 = vmatpush.msra.mxu0 0.0
        %1983 = vmatpush.msra.mxu0 0.0
        %1984 = vmatpush.msra.mxu0 %v1964
        %1985 = vmatpush.msra.mxu0 %v1962
        %1986 = vmatmul.f32.gmra.mxu0 %v929
        %v1987 = vpop.f32.mrf.mxu0
        %v1988 = vadd.f32 0.0, %v1987
        %1989 = vmatmul.f32.gmra.mxu0 %v932
        %v1990 = vpop.f32.mrf.mxu0
        %v1991 = vadd.f32 0.0, %v1990
        %1992 = vmatmul.f32.gmra.mxu0 %v935
        %v1993 = vpop.f32.mrf.mxu0
        %v1994 = vadd.f32 0.0, %v1993
        %1995 = vmatmul.f32.gmra.mxu0 %v938
        %v1996 = vpop.f32.mrf.mxu0
        %v1997 = vadd.f32 0.0, %v1996
        %1998 = vdwg.mxu0
        %1999 = vmatpush.msra.mxu0 0.0
        %2000 = vmatpush.msra.mxu0 0.0
        %2001 = vmatpush.msra.mxu0 0.0
        %2002 = vmatpush.msra.mxu0 0.0
        %2003 = vmatpush.msra.mxu0 0.0
        %2004 = vmatpush.msra.mxu0 0.0
        %2005 = vmatpush.msra.mxu0 0.0
        %2006 = vmatpush.msra.mxu0 0.0
        %2007 = vmatpush.msra.mxu0 0.0
        %2008 = vmatpush.msra.mxu0 0.0
        %2009 = vmatpush.msra.mxu0 0.0
        %2010 = vmatpush.msra.mxu0 0.0
        %2011 = vmatpush.msra.mxu0 0.0
        %2012 = vmatpush.msra.mxu0 0.0
        %2013 = vmatpush.msra.mxu0 %v1965
        %2014 = vmatpush.msra.mxu0 %v1963
        %2015 = vmatmul.f32.gmra.mxu0 %v929
        %v2016 = vpop.f32.mrf.mxu0
        %v2017 = vadd.f32 0.0, %v2016
        %2018 = vmatmul.f32.gmra.mxu0 %v932
        %v2019 = vpop.f32.mrf.mxu0
        %v2020 = vadd.f32 0.0, %v2019
        %2021 = vmatmul.f32.gmra.mxu0 %v935
        %v2022 = vpop.f32.mrf.mxu0
        %v2023 = vadd.f32 0.0, %v2022
        %2024 = vmatmul.f32.gmra.mxu0 %v938
        %v2025 = vpop.f32.mrf.mxu0
        %v2026 = vadd.f32 0.0, %v2025
        %2027 = vdwg.mxu0
        %v2028 = vadd.f32 %v1898, %v1988
        %v2029 = vadd.f32 %v1927, %v2017
        %v2030 = vadd.f32 %v1901, %v1991
        %v2031 = vadd.f32 %v1930, %v2020
        %v2032 = vadd.f32 %v1904, %v1994
        %v2033 = vadd.f32 %v1933, %v2023
        %v2034 = vadd.f32 %v1907, %v1997
        %v2035 = vadd.f32 %v1936, %v2026
        %v2036 = vadd.f32 %v2028, %v1009
        %v2037 = vadd.f32 %v2029, %v1009
        %v2038 = vadd.f32 %v2030, %v1014
        %v2039 = vadd.f32 %v2031, %v1014
        %v2040 = vadd.f32 %v2032, %v1019
        %v2041 = vadd.f32 %v2033, %v1019
        %v2042 = vadd.f32 %v2034, %v1024
        %v2043 = vadd.f32 %v2035, %v1024
        %v2044 = vmax.f32 %v2036, 0.0
        %v2045 = vmax.f32 %v2037, 0.0
        %v2046 = vmax.f32 %v2038, 0.0
        %v2047 = vmax.f32 %v2039, 0.0
        %v2048 = vmax.f32 %v2040, 0.0
        %v2049 = vmax.f32 %v2041, 0.0
        %v2050 = vmax.f32 %v2042, 0.0
        %v2051 = vmax.f32 %v2043, 0.0
        %2060 = vrot.lane.b32.xlu0 %v2044, 1
        %v2061 = vpop.permute.xlu0 %2060
        %2062 = vrot.lane.b32.xlu0 %v2045, 1
        %v2063 = vpop.permute.xlu0 %2062
        %2064 = vrot.lane.b32.xlu0 %v2046, 1
        %v2065 = vpop.permute.xlu0 %2064
        %2066 = vrot.lane.b32.xlu0 %v2047, 1
        %v2067 = vpop.permute.xlu0 %2066
        %2068 = vrot.lane.b32.xlu0 %v2048, 1
        %v2069 = vpop.permute.xlu0 %2068
        %2070 = vrot.lane.b32.xlu0 %v2049, 1
        %v2071 = vpop.permute.xlu0 %2070
        %2072 = vrot.lane.b32.xlu0 %v2050, 1
        %v2073 = vpop.permute.xlu0 %2072
        %2074 = vrot.lane.b32.xlu0 %v2051, 1
        %v2075 = vpop.permute.xlu0 %2074
        %v2076 = vsel %vm735, %v2061, %v2063
        %v2077 = vsel %vm735, %v2065, %v2067
        %v2078 = vsel %vm735, %v2069, %v2071
        %v2079 = vsel %vm735, %v2073, %v2075
        %2092 = vst.msk [vmem:[#allocation3] sm:$0xff] %vm744, %v2061
        %2093 = vst [vmem:[#allocation3 + $0x8] sm:$0xff] %v2076
        %2094 = vst.msk [vmem:[#allocation3 + $0x10] sm:$0xff] %vm735, %v2063
        %2095 = vst.msk [vmem:[#allocation3 + $0x18] sm:$0xff] %vm744, %v2065
        %2096 = vst [vmem:[#allocation3 + $0x20] sm:$0xff] %v2077
        %2097 = vst.msk [vmem:[#allocation3 + $0x28] sm:$0xff] %vm735, %v2067
        %2098 = vst.msk [vmem:[#allocation3 + $0x30] sm:$0xff] %vm744, %v2069
        %2099 = vst [vmem:[#allocation3 + $0x38] sm:$0xff] %v2078
        %2100 = vst.msk [vmem:[#allocation3 + $0x40] sm:$0xff] %vm735, %v2071
        %2101 = vst.msk [vmem:[#allocation3 + $0x48] sm:$0xff] %vm744, %v2073
        %2102 = vst [vmem:[#allocation3 + $0x50] sm:$0xff] %v2079
        %2103 = vst.msk [vmem:[#allocation3 + $0x58] sm:$0xff] %vm735, %v2075
        %v2104 = vld [vmem:[#allocation3] sm:$0xff]
        %v2105 = vld [vmem:[#allocation3 + $0x8] sm:$0xff]
        %v2106 = vld [vmem:[#allocation3 + $0x18] sm:$0xff]
        %v2107 = vld [vmem:[#allocation3 + $0x20] sm:$0xff]
        %v2108 = vld [vmem:[#allocation3 + $0x30] sm:$0xff]
        %v2109 = vld [vmem:[#allocation3 + $0x38] sm:$0xff]
        %v2110 = vld [vmem:[#allocation3 + $0x48] sm:$0xff]
        %v2111 = vld [vmem:[#allocation3 + $0x50] sm:$0xff]
        %2112 = vmatpush.msra.mxu0 0.0
        %2113 = vmatpush.msra.mxu0 0.0
        %2114 = vmatpush.msra.mxu0 0.0
        %2115 = vmatpush.msra.mxu0 0.0
        %2116 = vmatpush.msra.mxu0 0.0
        %2117 = vmatpush.msra.mxu0 0.0
        %2118 = vmatpush.msra.mxu0 0.0
        %2119 = vmatpush.msra.mxu0 0.0
        %2120 = vmatpush.msra.mxu0 0.0
        %2121 = vmatpush.msra.mxu0 0.0
        %2122 = vmatpush.msra.mxu0 0.0
        %2123 = vmatpush.msra.mxu0 0.0
        %2124 = vmatpush.msra.mxu0 %v2110
        %2125 = vmatpush.msra.mxu0 %v2108
        %2126 = vmatpush.msra.mxu0 %v2106
        %2127 = vmatpush.msra.mxu0 %v2104
        %2128 = vmatmul.f32.gmra.mxu0 %v1104
        %v2129 = vpop.f32.mrf.mxu0
        %v2130 = vadd.f32 0.0, %v2129
        %2131 = vmatmul.f32.gmra.mxu0 %v1107
        %v2132 = vpop.f32.mrf.mxu0
        %v2133 = vadd.f32 0.0, %v2132
        %2134 = vmatmul.f32.gmra.mxu0 %v1110
        %v2135 = vpop.f32.mrf.mxu0
        %v2136 = vadd.f32 0.0, %v2135
        %2137 = vmatmul.f32.gmra.mxu0 %v1113
        %v2138 = vpop.f32.mrf.mxu0
        %v2139 = vadd.f32 0.0, %v2138
        %2140 = vdwg.mxu0
        %2141 = vmatpush.msra.mxu0 0.0
        %2142 = vmatpush.msra.mxu0 0.0
        %2143 = vmatpush.msra.mxu0 0.0
        %2144 = vmatpush.msra.mxu0 0.0
        %2145 = vmatpush.msra.mxu0 0.0
        %2146 = vmatpush.msra.mxu0 0.0
        %2147 = vmatpush.msra.mxu0 0.0
        %2148 = vmatpush.msra.mxu0 0.0
        %2149 = vmatpush.msra.mxu0 0.0
        %2150 = vmatpush.msra.mxu0 0.0
        %2151 = vmatpush.msra.mxu0 0.0
        %2152 = vmatpush.msra.mxu0 0.0
        %2153 = vmatpush.msra.mxu0 %v2111
        %2154 = vmatpush.msra.mxu0 %v2109
        %2155 = vmatpush.msra.mxu0 %v2107
        %2156 = vmatpush.msra.mxu0 %v2105
        %2157 = vmatmul.f32.gmra.mxu0 %v1104
        %v2158 = vpop.f32.mrf.mxu0
        %v2159 = vadd.f32 0.0, %v2158
        %2160 = vmatmul.f32.gmra.mxu0 %v1107
        %v2161 = vpop.f32.mrf.mxu0
        %v2162 = vadd.f32 0.0, %v2161
        %2163 = vmatmul.f32.gmra.mxu0 %v1110
        %v2164 = vpop.f32.mrf.mxu0
        %v2165 = vadd.f32 0.0, %v2164
        %2166 = vmatmul.f32.gmra.mxu0 %v1113
        %v2167 = vpop.f32.mrf.mxu0
        %v2168 = vadd.f32 0.0, %v2167
        %2169 = vdwg.mxu0
        %2170 = vmatpush.msra.mxu0 0.0
        %2171 = vmatpush.msra.mxu0 0.0
        %2172 = vmatpush.msra.mxu0 0.0
        %2173 = vmatpush.msra.mxu0 0.0
        %2174 = vmatpush.msra.mxu0 0.0
        %2175 = vmatpush.msra.mxu0 0.0
        %2176 = vmatpush.msra.mxu0 0.0
        %2177 = vmatpush.msra.mxu0 0.0
        %2178 = vmatpush.msra.mxu0 0.0
        %2179 = vmatpush.msra.mxu0 0.0
        %2180 = vmatpush.msra.mxu0 0.0
        %2181 = vmatpush.msra.mxu0 0.0
        %2182 = vmatpush.msra.mxu0 %v2050
        %2183 = vmatpush.msra.mxu0 %v2048
        %2184 = vmatpush.msra.mxu0 %v2046
        %2185 = vmatpush.msra.mxu0 %v2044
        %2186 = vmatmul.f32.gmra.mxu0 %v1174
        %v2187 = vpop.f32.mrf.mxu0
        %v2188 = vadd.f32 %v2130, %v2187
        %2189 = vmatmul.f32.gmra.mxu0 %v1177
        %v2190 = vpop.f32.mrf.mxu0
        %v2191 = vadd.f32 %v2133, %v2190
        %2192 = vmatmul.f32.gmra.mxu0 %v1180
        %v2193 = vpop.f32.mrf.mxu0
        %v2194 = vadd.f32 %v2136, %v2193
        %2195 = vmatmul.f32.gmra.mxu0 %v1183
        %v2196 = vpop.f32.mrf.mxu0
        %v2197 = vadd.f32 %v2139, %v2196
        %2198 = vdwg.mxu0
        %2199 = vmatpush.msra.mxu0 0.0
        %2200 = vmatpush.msra.mxu0 0.0
        %2201 = vmatpush.msra.mxu0 0.0
        %2202 = vmatpush.msra.mxu0 0.0
        %2203 = vmatpush.msra.mxu0 0.0
        %2204 = vmatpush.msra.mxu0 0.0
        %2205 = vmatpush.msra.mxu0 0.0
        %2206 = vmatpush.msra.mxu0 0.0
        %2207 = vmatpush.msra.mxu0 0.0
        %2208 = vmatpush.msra.mxu0 0.0
        %2209 = vmatpush.msra.mxu0 0.0
        %2210 = vmatpush.msra.mxu0 0.0
        %2211 = vmatpush.msra.mxu0 %v2051
        %2212 = vmatpush.msra.mxu0 %v2049
        %2213 = vmatpush.msra.mxu0 %v2047
        %2214 = vmatpush.msra.mxu0 %v2045
        %2215 = vmatmul.f32.gmra.mxu0 %v1174
        %v2216 = vpop.f32.mrf.mxu0
        %v2217 = vadd.f32 %v2159, %v2216
        %2218 = vmatmul.f32.gmra.mxu0 %v1177
        %v2219 = vpop.f32.mrf.mxu0
        %v2220 = vadd.f32 %v2162, %v2219
        %2221 = vmatmul.f32.gmra.mxu0 %v1180
        %v2222 = vpop.f32.mrf.mxu0
        %v2223 = vadd.f32 %v2165, %v2222
        %2224 = vmatmul.f32.gmra.mxu0 %v1183
        %v2225 = vpop.f32.mrf.mxu0
        %v2226 = vadd.f32 %v2168, %v2225
        %2227 = vdwg.mxu0
        %v2228 = vld [vmem:[#allocation3] sm:$0xff]
        %v2229 = vld [vmem:[#allocation3 + $0x8] sm:$0xff]
        %v2230 = vld [vmem:[#allocation3 + $0x10] sm:$0xff]
        %v2231 = vld [vmem:[#allocation3 + $0x18] sm:$0xff]
        %v2232 = vld [vmem:[#allocation3 + $0x20] sm:$0xff]
        %v2233 = vld [vmem:[#allocation3 + $0x28] sm:$0xff]
        %v2234 = vld [vmem:[#allocation3 + $0x30] sm:$0xff]
        %v2235 = vld [vmem:[#allocation3 + $0x38] sm:$0xff]
        %v2236 = vld [vmem:[#allocation3 + $0x40] sm:$0xff]
        %v2237 = vld [vmem:[#allocation3 + $0x48] sm:$0xff]
        %v2238 = vld [vmem:[#allocation3 + $0x50] sm:$0xff]
        %v2239 = vld [vmem:[#allocation3 + $0x58] sm:$0xff]
        %2252 = vrot.lane.b32.xlu0 %v2228, 126
        %v2253 = vpop.permute.xlu0 %2252
        %2254 = vrot.lane.b32.xlu0 %v2229, 126
        %v2255 = vpop.permute.xlu0 %2254
        %2256 = vrot.lane.b32.xlu0 %v2230, 126
        %v2257 = vpop.permute.xlu0 %2256
        %2258 = vrot.lane.b32.xlu0 %v2231, 126
        %v2259 = vpop.permute.xlu0 %2258
        %2260 = vrot.lane.b32.xlu0 %v2232, 126
        %v2261 = vpop.permute.xlu0 %2260
        %2262 = vrot.lane.b32.xlu0 %v2233, 126
        %v2263 = vpop.permute.xlu0 %2262
        %2264 = vrot.lane.b32.xlu0 %v2234, 126
        %v2265 = vpop.permute.xlu0 %2264
        %2266 = vrot.lane.b32.xlu0 %v2235, 126
        %v2267 = vpop.permute.xlu0 %2266
        %2268 = vrot.lane.b32.xlu0 %v2236, 126
        %v2269 = vpop.permute.xlu0 %2268
        %2270 = vrot.lane.b32.xlu0 %v2237, 126
        %v2271 = vpop.permute.xlu0 %2270
        %2272 = vrot.lane.b32.xlu0 %v2238, 126
        %v2273 = vpop.permute.xlu0 %2272
        %2274 = vrot.lane.b32.xlu0 %v2239, 126
        %v2275 = vpop.permute.xlu0 %2274
        %v2276 = vsel %vm919, %v2253, %v2255
        %v2277 = vsel %vm919, %v2255, %v2257
        %v2278 = vsel %vm919, %v2259, %v2261
        %v2279 = vsel %vm919, %v2261, %v2263
        %v2280 = vsel %vm919, %v2265, %v2267
        %v2281 = vsel %vm919, %v2267, %v2269
        %v2282 = vsel %vm919, %v2271, %v2273
        %v2283 = vsel %vm919, %v2273, %v2275
        %2292 = vmatpush.msra.mxu0 0.0
        %2293 = vmatpush.msra.mxu0 0.0
        %2294 = vmatpush.msra.mxu0 0.0
        %2295 = vmatpush.msra.mxu0 0.0
        %2296 = vmatpush.msra.mxu0 0.0
        %2297 = vmatpush.msra.mxu0 0.0
        %2298 = vmatpush.msra.mxu0 0.0
        %2299 = vmatpush.msra.mxu0 0.0
        %2300 = vmatpush.msra.mxu0 0.0
        %2301 = vmatpush.msra.mxu0 0.0
        %2302 = vmatpush.msra.mxu0 0.0
        %2303 = vmatpush.msra.mxu0 0.0
        %2304 = vmatpush.msra.mxu0 %v2282
        %2305 = vmatpush.msra.mxu0 %v2280
        %2306 = vmatpush.msra.mxu0 %v2278
        %2307 = vmatpush.msra.mxu0 %v2276
        %2308 = vmatmul.f32.gmra.mxu0 %v1308
        %v2309 = vpop.f32.mrf.mxu0
        %v2310 = vadd.f32 0.0, %v2309
        %2311 = vmatmul.f32.gmra.mxu0 %v1311
        %v2312 = vpop.f32.mrf.mxu0
        %v2313 = vadd.f32 0.0, %v2312
        %2314 = vmatmul.f32.gmra.mxu0 %v1314
        %v2315 = vpop.f32.mrf.mxu0
        %v2316 = vadd.f32 0.0, %v2315
        %2317 = vmatmul.f32.gmra.mxu0 %v1317
        %v2318 = vpop.f32.mrf.mxu0
        %v2319 = vadd.f32 0.0, %v2318
        %2320 = vdwg.mxu0
        %2321 = vmatpush.msra.mxu0 0.0
        %2322 = vmatpush.msra.mxu0 0.0
        %2323 = vmatpush.msra.mxu0 0.0
        %2324 = vmatpush.msra.mxu0 0.0
        %2325 = vmatpush.msra.mxu0 0.0
        %2326 = vmatpush.msra.mxu0 0.0
        %2327 = vmatpush.msra.mxu0 0.0
        %2328 = vmatpush.msra.mxu0 0.0
        %2329 = vmatpush.msra.mxu0 0.0
        %2330 = vmatpush.msra.mxu0 0.0
        %2331 = vmatpush.msra.mxu0 0.0
        %2332 = vmatpush.msra.mxu0 0.0
        %2333 = vmatpush.msra.mxu0 %v2283
        %2334 = vmatpush.msra.mxu0 %v2281
        %2335 = vmatpush.msra.mxu0 %v2279
        %2336 = vmatpush.msra.mxu0 %v2277
        %2337 = vmatmul.f32.gmra.mxu0 %v1308
        %v2338 = vpop.f32.mrf.mxu0
        %v2339 = vadd.f32 0.0, %v2338
        %2340 = vmatmul.f32.gmra.mxu0 %v1311
        %v2341 = vpop.f32.mrf.mxu0
        %v2342 = vadd.f32 0.0, %v2341
        %2343 = vmatmul.f32.gmra.mxu0 %v1314
        %v2344 = vpop.f32.mrf.mxu0
        %v2345 = vadd.f32 0.0, %v2344
        %2346 = vmatmul.f32.gmra.mxu0 %v1317
        %v2347 = vpop.f32.mrf.mxu0
        %v2348 = vadd.f32 0.0, %v2347
        %2349 = vdwg.mxu0
        %v2350 = vadd.f32 %v2188, %v2310
        %v2351 = vadd.f32 %v2217, %v2339
        %v2352 = vadd.f32 %v2191, %v2313
        %v2353 = vadd.f32 %v2220, %v2342
        %v2354 = vadd.f32 %v2194, %v2316
        %v2355 = vadd.f32 %v2223, %v2345
        %v2356 = vadd.f32 %v2197, %v2319
        %v2357 = vadd.f32 %v2226, %v2348
        %v2358 = vadd.f32 %v2350, %v1388
        %v2359 = vadd.f32 %v2351, %v1388
        %v2360 = vadd.f32 %v2352, %v1393
        %v2361 = vadd.f32 %v2353, %v1393
        %v2362 = vadd.f32 %v2354, %v1398
        %v2363 = vadd.f32 %v2355, %v1398
        %v2364 = vadd.f32 %v2356, %v1403
        %v2365 = vadd.f32 %v2357, %v1403
        %v2366 = vmax.f32 %v2358, 0.0
        %v2367 = vmax.f32 %v2359, 0.0
        %v2368 = vmax.f32 %v2360, 0.0
        %v2369 = vmax.f32 %v2361, 0.0
        %v2370 = vmax.f32 %v2362, 0.0
        %v2371 = vmax.f32 %v2363, 0.0
        %v2372 = vmax.f32 %v2364, 0.0
        %v2373 = vmax.f32 %v2365, 0.0
        %v2374 = vadd.f32 %v2366, %v2367
        %2375 = vadd.xlane.f32.xlu0 %v2374
        %v2376 = vpop.xlane.xlu0 %2375
        %v2377 = vadd.f32 %v2368, %v2369
        %2378 = vadd.xlane.f32.xlu0 %v2377
        %v2379 = vpop.xlane.xlu0 %2378
        %v2380 = vadd.f32 %v2370, %v2371
        %2381 = vadd.xlane.f32.xlu0 %v2380
        %v2382 = vpop.xlane.xlu0 %2381
        %v2383 = vadd.f32 %v2372, %v2373
        %2384 = vadd.xlane.f32.xlu0 %v2383
        %v2385 = vpop.xlane.xlu0 %2384
        %v2386 = vmul.f32 %v2376, %v1439
        %v2387 = vmul.f32 %v2379, %v1439
        %v2388 = vmul.f32 %v2382, %v1439
        %v2389 = vmul.f32 %v2385, %v1439
        %v2390 = vmul.f32 %v615, %v2386
        %v2391 = vmul.f32 %v616, %v2387
        %v2392 = vmul.f32 %v617, %v2388
        %v2393 = vmul.f32 %v618, %v2389
        %v2394 = vsel %vm1448, %v2390, 0.0
        %v2395 = vsel %vm1448, %v2391, 0.0
        %v2396 = vadd.f32 %v2394, %v2395
        %v2397 = vsel %vm1448, %v2392, 0.0
        %v2398 = vadd.f32 %v2396, %v2397
        %v2399 = vsel %vm1448, %v2393, 0.0
        %v2400 = vadd.f32 %v2398, %v2399
        %v2401 = vrot.slane %v2400, 4
        %v2402 = vadd.f32 %v2400, %v2401
        %v2403 = vrot.slane %v2402, 2
        %v2404 = vadd.f32 %v2402, %v2403
        %v2405 = vrot.slane %v2404, 1
        %v2406 = vadd.f32 %v2404, %v2405
        %v2407 = vadd.f32 %v2406, %v619
        %v2408 = vmax.f32 %v2407, 0.0
        %v2409 = vperm.slane %v2408, 0
        %v2410 = vmul.f32 %v620, %v2409
        %v2411 = vmul.f32 %v621, %v2409
        %v2412 = vmul.f32 %v622, %v2409
        %v2413 = vmul.f32 %v623, %v2409
        %v2414 = vsel %vm1448, %v2410, 0.0
        %2415 = vadd.xlane.f32.xlu0 %v2414
        %v2416 = vpop.xlane.xlu0 %2415
        %v2417 = vsel %vm1448, %v2411, 0.0
        %2418 = vadd.xlane.f32.xlu0 %v2417
        %v2419 = vpop.xlane.xlu0 %2418
        %v2420 = vsel %vm1448, %v2412, 0.0
        %2421 = vadd.xlane.f32.xlu0 %v2420
        %v2422 = vpop.xlane.xlu0 %2421
        %v2423 = vsel %vm1448, %v2413, 0.0
        %2424 = vadd.xlane.f32.xlu0 %v2423
        %v2425 = vpop.xlane.xlu0 %2424
        %v2426 = vadd.f32 %v2416, %v624
        %v2427 = vadd.f32 %v2419, %v625
        %v2428 = vadd.f32 %v2422, %v626
        %v2429 = vadd.f32 %v2425, %v627
        %v2430 = vxor.u32 %v2426, 2147483648
        %v2431 = vxor.u32 %v2427, 2147483648
        %v2432 = vxor.u32 %v2428, 2147483648
        %v2433 = vxor.u32 %v2429, 2147483648
        %v2434 = vmul.f32 %v2430, 1.442695
        %v2435 = vpow.pop %v2434
        %v2436 = vmul.f32 %v2431, 1.442695
        %v2437 = vpow.pop %v2436
        %v2438 = vmul.f32 %v2432, 1.442695
        %v2439 = vpow.pop %v2438
        %v2440 = vmul.f32 %v2433, 1.442695
        %v2441 = vpow.pop %v2440
        %v2442 = vadd.f32 %v2435, 1.0
        %v2443 = vadd.f32 %v2437, 1.0
        %v2444 = vadd.f32 %v2439, 1.0
        %v2445 = vadd.f32 %v2441, 1.0
        %v2446 = vrcp.pop %v2442
        %v2447 = vmul.f32 %v2442, %v2446
        %v2448 = vsub.f32 1.0, %v2447
        %v2449 = vmul.f32 %v2446, %v2448
        %v2450 = vadd.f32 %v2446, %v2449
        %vm2451 = vweird.f32 %v2442
        %vm2452 = vweird.f32 %v2446
        %vm2453 = vmor %vm2451, %vm2452
        %v2454 = vsel %vm2453, %v2446, %v2450
        %v2455 = vand.u32 2147483647, %v2442
        %vm2456 = vcmp.eq.f32.partialorder %v2455, 8.507059e+37
        %v2457 = vand.u32 %v2442, 2147483648
        %v2458 = vor.u32 1.1754944e-38, %v2457
        %v2459 = vsel %vm2456, %v2458, %v2454
        %v2460 = vmul.f32 1.0, %v2459
        %v2461 = vrcp.pop %v2443
        %v2462 = vmul.f32 %v2443, %v2461
        %v2463 = vsub.f32 1.0, %v2462
        %v2464 = vmul.f32 %v2461, %v2463
        %v2465 = vadd.f32 %v2461, %v2464
        %vm2466 = vweird.f32 %v2443
        %vm2467 = vweird.f32 %v2461
        %vm2468 = vmor %vm2466, %vm2467
        %v2469 = vsel %vm2468, %v2461, %v2465
        %v2470 = vand.u32 2147483647, %v2443
        %vm2471 = vcmp.eq.f32.partialorder %v2470, 8.507059e+37
        %v2472 = vand.u32 %v2443, 2147483648
        %v2473 = vor.u32 1.1754944e-38, %v2472
        %v2474 = vsel %vm2471, %v2473, %v2469
        %v2475 = vmul.f32 1.0, %v2474
        %v2476 = vrcp.pop %v2444
        %v2477 = vmul.f32 %v2444, %v2476
        %v2478 = vsub.f32 1.0, %v2477
        %v2479 = vmul.f32 %v2476, %v2478
        %v2480 = vadd.f32 %v2476, %v2479
        %vm2481 = vweird.f32 %v2444
        %vm2482 = vweird.f32 %v2476
        %vm2483 = vmor %vm2481, %vm2482
        %v2484 = vsel %vm2483, %v2476, %v2480
        %v2485 = vand.u32 2147483647, %v2444
        %vm2486 = vcmp.eq.f32.partialorder %v2485, 8.507059e+37
        %v2487 = vand.u32 %v2444, 2147483648
        %v2488 = vor.u32 1.1754944e-38, %v2487
        %v2489 = vsel %vm2486, %v2488, %v2484
        %v2490 = vmul.f32 1.0, %v2489
        %v2491 = vrcp.pop %v2445
        %v2492 = vmul.f32 %v2445, %v2491
        %v2493 = vsub.f32 1.0, %v2492
        %v2494 = vmul.f32 %v2491, %v2493
        %v2495 = vadd.f32 %v2491, %v2494
        %vm2496 = vweird.f32 %v2445
        %vm2497 = vweird.f32 %v2491
        %vm2498 = vmor %vm2496, %vm2497
        %v2499 = vsel %vm2498, %v2491, %v2495
        %v2500 = vand.u32 2147483647, %v2445
        %vm2501 = vcmp.eq.f32.partialorder %v2500, 8.507059e+37
        %v2502 = vand.u32 %v2445, 2147483648
        %v2503 = vor.u32 1.1754944e-38, %v2502
        %v2504 = vsel %vm2501, %v2503, %v2499
        %v2505 = vmul.f32 1.0, %v2504
        %2507 = vset.pattern.permute.xlu0 0
        %2508 = vperm.xlu0 %2507, %v2460
        %v2509 = vpop.permute.xlu0 %2508
        %2512 = vset.pattern.permute.xlu0 0
        %2513 = vperm.xlu0 %2512, %v2475
        %v2514 = vpop.permute.xlu0 %2513
        %2517 = vset.pattern.permute.xlu0 0
        %2518 = vperm.xlu0 %2517, %v2490
        %v2519 = vpop.permute.xlu0 %2518
        %2522 = vset.pattern.permute.xlu0 0
        %2523 = vperm.xlu0 %2522, %v2505
        %v2524 = vpop.permute.xlu0 %2523
        %v2526 = vmul.f32 %v2366, %v2509
        %v2527 = vmul.f32 %v2367, %v2509
        %v2528 = vmul.f32 %v2368, %v2514
        %v2529 = vmul.f32 %v2369, %v2514
        %v2530 = vmul.f32 %v2370, %v2519
        %v2531 = vmul.f32 %v2371, %v2519
        %v2532 = vmul.f32 %v2372, %v2524
        %v2533 = vmul.f32 %v2373, %v2524
        %v2534 = vadd.f32 %v2526, %v1752
        %v2535 = vadd.f32 %v2527, %v1781
        %v2536 = vadd.f32 %v2528, %v1755
        %v2537 = vadd.f32 %v2529, %v1784
        %v2538 = vadd.f32 %v2530, %v1758
        %v2539 = vadd.f32 %v2531, %v1787
        %v2540 = vadd.f32 %v2532, %v1761
        %v2541 = vadd.f32 %v2533, %v1790
        %v2542 = vmax.f32 %v2534, 0.0
        %v2543 = vmax.f32 %v2535, 0.0
        %v2544 = vmax.f32 %v2536, 0.0
        %v2545 = vmax.f32 %v2537, 0.0
        %v2546 = vmax.f32 %v2538, 0.0
        %v2547 = vmax.f32 %v2539, 0.0
        %v2548 = vmax.f32 %v2540, 0.0
        %v2549 = vmax.f32 %v2541, 0.0
        %2550 = vmatpush.msra.mxu0 %v493
        %2551 = vmatpush.msra.mxu0 %v492
        %2552 = vmatpush.msra.mxu0 %v491
        %2553 = vmatpush.msra.mxu0 %v490
        %2554 = vmatpush.msra.mxu0 %v489
        %2555 = vmatpush.msra.mxu0 %v488
        %2556 = vmatpush.msra.mxu0 %v487
        %2557 = vmatpush.msra.mxu0 %v486
        %2558 = vmatpush.msra.mxu0 %v485
        %2559 = vmatpush.msra.mxu0 %v484
        %2560 = vmatpush.msra.mxu0 %v483
        %2561 = vmatpush.msra.mxu0 %v482
        %2562 = vmatpush.msra.mxu0 %v481
        %2563 = vmatpush.msra.mxu0 %v480
        %2564 = vmatpush.msra.mxu0 %v479
        %2565 = vmatpush.msra.mxu0 %v478
        %2566 = vmatmul.f32.gmra.mxu0 %v2542
        %v2567 = vpop.f32.mrf.mxu0
        %v2568 = vadd.f32 0.0, %v2567
        %2569 = vmatmul.f32.gmra.mxu0 %v2544
        %v2570 = vpop.f32.mrf.mxu0
        %v2571 = vadd.f32 0.0, %v2570
        %2572 = vmatmul.f32.gmra.mxu0 %v2546
        %v2573 = vpop.f32.mrf.mxu0
        %v2574 = vadd.f32 0.0, %v2573
        %2575 = vmatmul.f32.gmra.mxu0 %v2548
        %v2576 = vpop.f32.mrf.mxu0
        %v2577 = vadd.f32 0.0, %v2576
        %2578 = vdwg.mxu0
        %2579 = vmatpush.msra.mxu0 %v509
        %2580 = vmatpush.msra.mxu0 %v508
        %2581 = vmatpush.msra.mxu0 %v507
        %2582 = vmatpush.msra.mxu0 %v506
        %2583 = vmatpush.msra.mxu0 %v505
        %2584 = vmatpush.msra.mxu0 %v504
        %2585 = vmatpush.msra.mxu0 %v503
        %2586 = vmatpush.msra.mxu0 %v502
        %2587 = vmatpush.msra.mxu0 %v501
        %2588 = vmatpush.msra.mxu0 %v500
        %2589 = vmatpush.msra.mxu0 %v499
        %2590 = vmatpush.msra.mxu0 %v498
        %2591 = vmatpush.msra.mxu0 %v497
        %2592 = vmatpush.msra.mxu0 %v496
        %2593 = vmatpush.msra.mxu0 %v495
        %2594 = vmatpush.msra.mxu0 %v494
        %2595 = vmatmul.f32.gmra.mxu0 %v2543
        %v2596 = vpop.f32.mrf.mxu0
        %v2597 = vadd.f32 %v2568, %v2596
        %2598 = vmatmul.f32.gmra.mxu0 %v2545
        %v2599 = vpop.f32.mrf.mxu0
        %v2600 = vadd.f32 %v2571, %v2599
        %2601 = vmatmul.f32.gmra.mxu0 %v2547
        %v2602 = vpop.f32.mrf.mxu0
        %v2603 = vadd.f32 %v2574, %v2602
        %2604 = vmatmul.f32.gmra.mxu0 %v2549
        %v2605 = vpop.f32.mrf.mxu0
        %v2606 = vadd.f32 %v2577, %v2605
        %2607 = vdwg.mxu0
        %2608 = vmatpush.msra.mxu0 %v558
        %2609 = vmatpush.msra.mxu0 %v557
        %2610 = vmatpush.msra.mxu0 %v556
        %2611 = vmatpush.msra.mxu0 %v555
        %2612 = vmatpush.msra.mxu0 %v554
        %2613 = vmatpush.msra.mxu0 %v553
        %2614 = vmatpush.msra.mxu0 %v552
        %2615 = vmatpush.msra.mxu0 %v551
        %2616 = vmatpush.msra.mxu0 %v550
        %2617 = vmatpush.msra.mxu0 %v549
        %2618 = vmatpush.msra.mxu0 %v548
        %2619 = vmatpush.msra.mxu0 %v547
        %2620 = vmatpush.msra.mxu0 %v546
        %2621 = vmatpush.msra.mxu0 %v545
        %2622 = vmatpush.msra.mxu0 %v544
        %2623 = vmatpush.msra.mxu0 %v543
        %2624 = vmatmul.f32.gmra.mxu0 %v2542
        %v2625 = vpop.f32.mrf.mxu0
        %v2626 = vadd.f32 0.0, %v2625
        %2627 = vmatmul.f32.gmra.mxu0 %v2544
        %v2628 = vpop.f32.mrf.mxu0
        %v2629 = vadd.f32 0.0, %v2628
        %2630 = vmatmul.f32.gmra.mxu0 %v2546
        %v2631 = vpop.f32.mrf.mxu0
        %v2632 = vadd.f32 0.0, %v2631
        %2633 = vmatmul.f32.gmra.mxu0 %v2548
        %v2634 = vpop.f32.mrf.mxu0
        %v2635 = vadd.f32 0.0, %v2634
        %2636 = vdwg.mxu0
        %2637 = vmatpush.msra.mxu0 %v574
        %2638 = vmatpush.msra.mxu0 %v573
        %2639 = vmatpush.msra.mxu0 %v572
        %2640 = vmatpush.msra.mxu0 %v571
        %2641 = vmatpush.msra.mxu0 %v570
        %2642 = vmatpush.msra.mxu0 %v569
        %2643 = vmatpush.msra.mxu0 %v568
        %2644 = vmatpush.msra.mxu0 %v567
        %2645 = vmatpush.msra.mxu0 %v566
        %2646 = vmatpush.msra.mxu0 %v565
        %2647 = vmatpush.msra.mxu0 %v564
        %2648 = vmatpush.msra.mxu0 %v563
        %2649 = vmatpush.msra.mxu0 %v562
        %2650 = vmatpush.msra.mxu0 %v561
        %2651 = vmatpush.msra.mxu0 %v560
        %2652 = vmatpush.msra.mxu0 %v559
        %2653 = vmatmul.f32.gmra.mxu0 %v2543
        %v2654 = vpop.f32.mrf.mxu0
        %v2655 = vadd.f32 %v2626, %v2654
        %2656 = vmatmul.f32.gmra.mxu0 %v2545
        %v2657 = vpop.f32.mrf.mxu0
        %v2658 = vadd.f32 %v2629, %v2657
        %2659 = vmatmul.f32.gmra.mxu0 %v2547
        %v2660 = vpop.f32.mrf.mxu0
        %v2661 = vadd.f32 %v2632, %v2660
        %2662 = vmatmul.f32.gmra.mxu0 %v2549
        %v2663 = vpop.f32.mrf.mxu0
        %v2664 = vadd.f32 %v2635, %v2663
        %2665 = vdwg.mxu0
        %v2666 = vmax.f32 %v2597, %v2655
        %v2667 = vmax.f32 %v2600, %v2658
        %v2668 = vmax.f32 %v2603, %v2661
        %v2669 = vmax.f32 %v2606, %v2664
        %s2670 = scalar_lea.vmem %s382, 32 [#allocation4]
        %2671 = vst [vmem:[%s2670] sm:$0xff] %v2666
        %2672 = vst [vmem:[%s2670 + $0x8] sm:$0xff] %v2667
        %2673 = vst [vmem:[%s2670 + $0x10] sm:$0xff] %v2668
        %2674 = vst [vmem:[%s2670 + $0x18] sm:$0xff] %v2669
        %s2675 = sand.u32 %s269, 1
        %s2676 = scalar_lea.sflag [#allocation5], %s2675
        %s2677 = sand.u32 %s269, 1
        %s2678 = smul.addr %s2677, 64
        %s2679 = scalar_lea.vmem [#allocation4], %s2678
        // Predicated region
        $region65: #{residual_se_block.1} parent=63 // pred_check
          %p2680 = pneg %p279
        $region66: #{residual_se_block.1} parent=63 // pred_check_branch
          %2682 = sbr.rel (%p2680) target = $region68
        $region67: #{residual_se_block.1} parent=63 // pred_region
          %s2683 = smul.u32 2, %s25
          %2685 = vsyncadd %s2676, 0
          %s2686 = smul.addr %s2683, 4
          %s2687 = smul.addr %s2686, 8
          %s2688 = scalar_lea.hbm %s11, %s2687
          %s2689 = sshll.u32 %s2679, 4
          %s2690 = int_to_ptr.vmem [resolvable:$true] %s2689
          %s2691 = sshll.u32 %s2688, 4
          %s2692 = int_to_ptr.hbm [resolvable:$true] %s2691
          %2697 = dma.vmem_to_hbm [thread:$0]  %s2690, 1024, %s2692, %s2676, 128, 128, 8
        $region68: #{residual_se_block.1} parent=63 // pred_fallthru
          _
      $region64: #{residual_se_block.1} parent=5 // pred_fallthru
        _
      %p2698 = scmp.le.s32.totalorder 2, %s20
      // Predicated region
      $region69: #{residual_se_block.1} parent=5 // pred_check
        %p2699 = pneg %p2698
      $region70: #{residual_se_block.1} parent=5 // pred_check_branch
        %2701 = sbr.rel (%p2699) target = $region72
      $region71: #{residual_se_block.1} parent=5 // pred_region
        %s2702 = ssub.s32 %s20, 2
        // Predicated region
        $region73: #{residual_se_block.1} parent=71 // pred_check
          %p2703 = pneg %p285
        $region74: #{residual_se_block.1} parent=71 // pred_check_branch
          %2705 = sbr.rel (%p2703) target = $region76
        $region75: #{residual_se_block.1} parent=71 // pred_region
          %s2706 = sand.u32 %s270, 1
          %s2707 = scalar_lea.sflag [#allocation5], %s2706
          %s2708 = sand.u32 %s270, 1
          %s2709 = smul.addr %s2708, 64
          %s2710 = scalar_lea.vmem [#allocation4], %s2709
          %2712 = dma.done %s2707, 1024
        $region76: #{residual_se_block.1} parent=71 // pred_fallthru
          _
      $region72: #{residual_se_block.1} parent=5 // pred_fallthru
        _
    $region6: #{residual_se_block.1} parent=1 // loop_footer
      %s24 = sadd.s32 1, %s20
    $region7: #{residual_se_block.1} parent=1 // loop_footer_branch
      %19 = sbr.rel target = $region3
    $region8: #{residual_se_block.1} parent=1 // loop_exit
      _
    %2713 = vsyncpa [#allocation5], 1
    %s2714 = scalar_lea.sflag [#allocation5], 1
    %2715 = vsyncpa %s2714, 1

</llo_original>
